<compile_context>
chip_gen: v6e
topology: v6e:2x2x1
jax: 0.10.0
libtpu: 0.0.40
codegen_flags: <defaults>
</compile_context>

<pallas_src>
import numpy as np
import jax
import jax.numpy as jnp
from jax import lax
from jax.experimental import pallas as pl
from jax.experimental.pallas import tpu as pltpu


COMPUTE_DTYPE = jnp.bfloat16   # MXU operand dtype (f32 accumulation everywhere)


# ------------------------------- Pallas kernel ------------------------------ #

def _bottleneck_kernel(x_ref, w1_ref, b1_ref, w2_ref, b2_ref, w3_ref, b3_ref,
                       o_ref, y1p_ref):
    # One grid step == one batch element; all intermediates stay in VMEM.
    _, H, W, Cin = x_ref.shape
    Wd = w1_ref.shape[1]          # bottleneck width
    Cout = w3_ref.shape[1]        # planes * expansion (== Cin, identity residual)
    cdt = w1_ref.dtype            # MXU operand dtype (bf16)

    x = x_ref[0]                                   # (H, W, Cin) f32 (kept for residual)
    x2d = x.reshape(H * W, Cin)

    # --- conv1 (1x1) + BN1 + ReLU (BN scale folded into w1, shift into b1) ---
    y1 = jnp.dot(x2d.astype(cdt), w1_ref[...], preferred_element_type=jnp.float32)
    y1 = jnp.maximum(y1 + b1_ref[...], 0.0)        # (H*W, Wd) f32

    # --- zero-padded copy of y1 in VMEM for the 3x3 taps (padding = 1) ---
    # Full-buffer zero every step (cheap; keeps per-core scratch correct under
    # megacore grid sharding), interior overwritten with the fresh activation.
    y1p_ref[...] = jnp.zeros(y1p_ref.shape, y1p_ref.dtype)
    y1p_ref[1:H + 1, 1:W + 1, :] = y1.reshape(H, W, Wd).astype(y1p_ref.dtype)

    # --- conv2 (3x3, stride 1, pad 1) + BN2 + ReLU: 9 shifted-tap matmuls ---
    acc = jnp.zeros((H * W, Wd), jnp.float32)
    for ky in range(3):
        for kx in range(3):
            tap = y1p_ref[ky:ky + H, kx:kx + W, :].reshape(H * W, Wd)
            acc = acc + jnp.dot(tap, w2_ref[ky * 3 + kx],
                                preferred_element_type=jnp.float32)
    y2 = jnp.maximum(acc + b2_ref[...], 0.0)       # (H*W, Wd) f32

    # --- conv3 (1x1) + BN3, identity residual, final ReLU ---
    y3 = jnp.dot(y2.astype(cdt), w3_ref[...], preferred_element_type=jnp.float32)
    out = jnp.maximum(y3 + b3_ref[...] + x2d, 0.0)
    o_ref[0] = out.reshape(H, W, Cout).astype(o_ref.dtype)   # lane-dense (Cout=128)


def _fold_bn(w_oihw, bn_stats, eps):
    """Fold BN (eval mode) into the conv: returns HWIO weight * scale and bias."""
    gamma, beta, mean, var = bn_stats
    scale = gamma * lax.rsqrt(var + eps)           # (Cout,)
    bias = beta - mean * scale                     # conv1x1/conv3x3 have bias=False
    w_hwio = jnp.transpose(w_oihw, (2, 3, 1, 0)) * scale   # broadcast over Cout (last axis)
    return w_hwio, bias


def bottleneck_forward(x_nchw, params, eps=1e-5):
    """Bottleneck.forward (stride=1, groups=1, dilation=1, downsample=None)."""
    x = jnp.transpose(x_nchw, (0, 2, 3, 1)).astype(jnp.float32)   # NCHW -> NHWC
    N, H, W, Cin = x.shape
    width = params["w1"].shape[0]
    cout = params["w3"].shape[0]
    assert cout == Cin, "identity residual requires inplanes == planes * expansion"

    w1, b1 = _fold_bn(params["w1"], params["bn1"], eps)     # (1,1,Cin,width)
    w2, b2 = _fold_bn(params["w2"], params["bn2"], eps)     # (3,3,width,width)
    w3, b3 = _fold_bn(params["w3"], params["bn3"], eps)     # (1,1,width,cout)

    w1 = w1.reshape(Cin, width).astype(COMPUTE_DTYPE)
    w2 = w2.reshape(9, width, width).astype(COMPUTE_DTYPE)  # tap order ky*3+kx
    w3 = w3.reshape(width, cout).astype(COMPUTE_DTYPE)
    b1 = b1.reshape(1, width).astype(jnp.float32)
    b2 = b2.reshape(1, width).astype(jnp.float32)
    b3 = b3.reshape(1, cout).astype(jnp.float32)

    # Advisory cost estimate for the XLA scheduler (flops of the 3 convs, HBM bytes).
    flops = 2 * N * H * W * (Cin * width + 9 * width * width + width * cout)
    bytes_accessed = (N * H * W * (Cin + cout)) * 4 \
        + 2 * (Cin * width + 9 * width * width + width * cout)

    # NOTE(scaling): each grid step holds one full (H, W, C) image + taps in VMEM;
    # for large H*W*C add a spatial grid axis with halo tiles before scaling up
    # (v7x has 64 MiB VMEM).
    out_nhwc = pl.pallas_call(
        _bottleneck_kernel,
        out_shape=jax.ShapeDtypeStruct((N, H, W, cout), jnp.float32),
        grid=(N,),
        in_specs=[
            pl.BlockSpec((1, H, W, Cin), lambda n: (n, 0, 0, 0)),
            pl.BlockSpec((Cin, width), lambda n: (0, 0)),
            pl.BlockSpec((1, width), lambda n: (0, 0)),
            pl.BlockSpec((9, width, width), lambda n: (0, 0, 0)),
            pl.BlockSpec((1, width), lambda n: (0, 0)),
            pl.BlockSpec((width, cout), lambda n: (0, 0)),
            pl.BlockSpec((1, cout), lambda n: (0, 0)),
        ],
        out_specs=pl.BlockSpec((1, H, W, cout), lambda n: (n, 0, 0, 0)),
        scratch_shapes=[pltpu.VMEM((H + 2, W + 2, width), COMPUTE_DTYPE)],
        compiler_params=pltpu.CompilerParams(dimension_semantics=("parallel",)),
        cost_estimate=pl.CostEstimate(flops=int(flops), transcendentals=0,
                                      bytes_accessed=int(bytes_accessed)),
    )(x, w1, b1, w2, b2, w3, b3)

    return jnp.transpose(out_nhwc, (0, 3, 1, 2))             # back to NCHW


# --------------------------- params & pure-JAX reference -------------------- #

def init_params(key, inplanes, planes, expansion=4):
    width = planes
    cout = planes * expansion
    k1, k2, k3 = jax.random.split(key, 3)
    w1 = jax.random.normal(k1, (width, inplanes, 1, 1), jnp.float32) / jnp.sqrt(inplanes)
    w2 = jax.random.normal(k2, (width, width, 3, 3), jnp.float32) / jnp.sqrt(9.0 * width)
    w3 = jax.random.normal(k3, (cout, width, 1, 1), jnp.float32) / jnp.sqrt(width)

    def bn(c):
        i = jnp.arange(c, dtype=jnp.float32)
        gamma = 1.0 + 0.1 * i / c
        beta = 0.05 * i / c - 0.02
        mean = 0.01 * i / c
        var = 1.0 + 0.05 * i / c
        return gamma, beta, mean, var

    return dict(w1=w1, w2=w2, w3=w3, bn1=bn(width), bn2=bn(width), bn3=bn(cout))


def reference_forward(x_nchw, p, eps=1e-5):
    x = jnp.transpose(x_nchw, (0, 2, 3, 1)).astype(jnp.float32)
    dn = ("NHWC", "HWIO", "NHWC")

    def bn(z, stats):
        g, b, m, v = stats
        return (z - m) * lax.rsqrt(v + eps) * g + b

    w1 = jnp.transpose(p["w1"], (2, 3, 1, 0))
    z = lax.conv_general_dilated(x, w1, (1, 1), ((0, 0), (0, 0)),
                                 dimension_numbers=dn, precision=lax.Precision.HIGHEST)
    z = jnp.maximum(bn(z, p["bn1"]), 0.0)
    w2 = jnp.transpose(p["w2"], (2, 3, 1, 0))
    z = lax.conv_general_dilated(z, w2, (1, 1), ((1, 1), (1, 1)),
                                 dimension_numbers=dn, precision=lax.Precision.HIGHEST)
    z = jnp.maximum(bn(z, p["bn2"]), 0.0)
    w3 = jnp.transpose(p["w3"], (2, 3, 1, 0))
    z = lax.conv_general_dilated(z, w3, (1, 1), ((0, 0), (0, 0)),
                                 dimension_numbers=dn, precision=lax.Precision.HIGHEST)
    z = bn(z, p["bn3"])
    z = jnp.maximum(z + x, 0.0)
    return jnp.transpose(z, (0, 3, 1, 2))


if __name__ == "__main__":
    key = jax.random.PRNGKey(0)
    kx, kp = jax.random.split(key)

    # Small Bottleneck config: inplanes=128, planes=32 -> width=32, out=128
    # (inplanes == planes*expansion so the default identity residual applies,
    #  and 128 channels keeps the HBM output lane-dense).
    N, H = 2, 16
    inplanes, planes, expansion = 128, 32, 4

    x = jax.random.normal(kx, (N, inplanes, H, H), jnp.float32)   # NCHW like PyTorch
    params = init_params(kp, inplanes, planes, expansion)

    fwd = jax.jit(bottleneck_forward)
    out = jax.block_until_ready(fwd(x, params))
    assert out.shape == (N, planes * expansion, H, H)

    ref = reference_forward(x, params)
    # Tolerance sized for bf16 MXU operands with f32 accumulation vs f32 reference.
    np.testing.assert_allclose(np.asarray(out), np.asarray(ref), rtol=2e-2, atol=5e-2)

    print("KERNEL_OK")
</pallas_src>

<mosaic_0001>
module attributes {stable_mosaic.version = 11 : i64} {
  func.func @_bottleneck_kernel(%arg0: i32, %arg1: memref<1x16x16x128xf32, #tpu.memory_space<vmem>>, %arg2: memref<128x32xbf16, #tpu.memory_space<vmem>>, %arg3: memref<1x32xf32, #tpu.memory_space<vmem>>, %arg4: memref<9x32x32xbf16, #tpu.memory_space<vmem>>, %arg5: memref<1x32xf32, #tpu.memory_space<vmem>>, %arg6: memref<32x128xbf16, #tpu.memory_space<vmem>>, %arg7: memref<1x128xf32, #tpu.memory_space<vmem>>, %arg8: memref<1x16x16x128xf32, #tpu.memory_space<vmem>>, %arg9: memref<18x18x32xbf16, #tpu.memory_space<vmem>>) attributes {dimension_semantics = [#tpu.dimension_semantics<parallel>], iteration_bounds = array<i64: 2>, scalar_prefetch = 0 : i64, scratch_operands = 1 : i64, tpu.core_type = #tpu.core_type<tc>, window_params = [{transform_indices = @transform_0, window_bounds = array<i64: 1, 16, 16, 128>}, {pipeline_mode = #tpu.pipeline_mode<synchronous>, transform_indices = @transform_1, window_bounds = array<i64: 128, 32>}, {pipeline_mode = #tpu.pipeline_mode<synchronous>, transform_indices = @transform_2, window_bounds = array<i64: 1, 32>}, {pipeline_mode = #tpu.pipeline_mode<synchronous>, transform_indices = @transform_3, window_bounds = array<i64: 9, 32, 32>}, {pipeline_mode = #tpu.pipeline_mode<synchronous>, transform_indices = @transform_4, window_bounds = array<i64: 1, 32>}, {pipeline_mode = #tpu.pipeline_mode<synchronous>, transform_indices = @transform_5, window_bounds = array<i64: 32, 128>}, {pipeline_mode = #tpu.pipeline_mode<synchronous>, transform_indices = @transform_6, window_bounds = array<i64: 1, 128>}, {transform_indices = @transform_7, window_bounds = array<i64: 1, 16, 16, 128>}]} {
    %c0 = arith.constant 0 : index
    %c0_0 = arith.constant 0 : index
    %c0_1 = arith.constant 0 : index
    %c0_2 = arith.constant 0 : index
    %0 = vector.load %arg1[%c0, %c0_0, %c0_1, %c0_2] : memref<1x16x16x128xf32, #tpu.memory_space<vmem>>, vector<1x16x16x128xf32>
    %1 = vector.shape_cast %0 : vector<1x16x16x128xf32> to vector<16x16x128xf32>
    %2 = vector.shape_cast %1 : vector<16x16x128xf32> to vector<256x128xf32>
    %3 = arith.truncf %2 : vector<256x128xf32> to vector<256x128xbf16>
    %c0_3 = arith.constant 0 : index
    %c0_4 = arith.constant 0 : index
    %4 = vector.load %arg2[%c0_3, %c0_4] : memref<128x32xbf16, #tpu.memory_space<vmem>>, vector<128x32xbf16>
    %cst = arith.constant dense<0.000000e+00> : vector<256x32xf32>
    %5 = tpu.matmul %3, %4, %cst {dimension_numbers = #tpu.dot_dimension_numbers<[1], [0], [0], [1], [0, 0, 1, 1], [], []>} : vector<256x128xbf16>, vector<128x32xbf16>, vector<256x32xf32> -> vector<256x32xf32>
    %c0_5 = arith.constant 0 : index
    %c0_6 = arith.constant 0 : index
    %6 = vector.load %arg3[%c0_5, %c0_6] : memref<1x32xf32, #tpu.memory_space<vmem>>, vector<1x32xf32>
    %7 = vector.broadcast %6 : vector<1x32xf32> to vector<256x32xf32>
    %8 = arith.addf %5, %7 : vector<256x32xf32>
    %cst_7 = arith.constant 0.000000e+00 : f32
    %9 = vector.broadcast %cst_7 : f32 to vector<256x32xf32>
    %10 = arith.maximumf %8, %9 : vector<256x32xf32>
    %cst_8 = arith.constant 0.000000e+00 : bf16
    %11 = vector.broadcast %cst_8 : bf16 to vector<18x18x32xbf16>
    %c0_9 = arith.constant 0 : index
    %c0_10 = arith.constant 0 : index
    %c0_11 = arith.constant 0 : index
    %12 = vector.load %arg9[%c0_9, %c0_10, %c0_11] : memref<18x18x32xbf16, #tpu.memory_space<vmem>>, vector<18x18x32xbf16>
    tpu.vector_store %arg9[%c0_9, %c0_10, %c0_11], %11 {strides = array<i32>} : memref<18x18x32xbf16, #tpu.memory_space<vmem>>, vector<18x18x32xbf16>,
    %13 = vector.shape_cast %10 : vector<256x32xf32> to vector<16x16x32xf32>
    %14 = arith.truncf %13 : vector<16x16x32xf32> to vector<16x16x32xbf16>
    %c1 = arith.constant 1 : index
    %c1_12 = arith.constant 1 : index
    %c0_13 = arith.constant 0 : index
    %15 = vector.load %arg9[%c1, %c1_12, %c0_13] : memref<18x18x32xbf16, #tpu.memory_space<vmem>>, vector<16x16x32xbf16>
    tpu.vector_store %arg9[%c1, %c1_12, %c0_13], %14 {strides = array<i32>} : memref<18x18x32xbf16, #tpu.memory_space<vmem>>, vector<16x16x32xbf16>,
    %cst_14 = arith.constant 0.000000e+00 : f32
    %16 = vector.broadcast %cst_14 : f32 to vector<256x32xf32>
    %c0_15 = arith.constant 0 : index
    %c0_16 = arith.constant 0 : index
    %c0_17 = arith.constant 0 : index
    %17 = vector.load %arg9[%c0_15, %c0_16, %c0_17] : memref<18x18x32xbf16, #tpu.memory_space<vmem>>, vector<16x16x32xbf16>
    %18 = vector.shape_cast %17 : vector<16x16x32xbf16> to vector<256x32xbf16>
    %c0_18 = arith.constant 0 : index
    %c0_19 = arith.constant 0 : index
    %c0_20 = arith.constant 0 : index
    %19 = vector.load %arg4[%c0_18, %c0_19, %c0_20] : memref<9x32x32xbf16, #tpu.memory_space<vmem>>, vector<1x32x32xbf16>
    %20 = vector.shape_cast %19 : vector<1x32x32xbf16> to vector<32x32xbf16>
    %cst_21 = arith.constant dense<0.000000e+00> : vector<256x32xf32>
    %21 = tpu.matmul %18, %20, %cst_21 {dimension_numbers = #tpu.dot_dimension_numbers<[1], [0], [0], [1], [0, 0, 1, 1], [], []>} : vector<256x32xbf16>, vector<32x32xbf16>, vector<256x32xf32> -> vector<256x32xf32>
    %22 = arith.addf %16, %21 : vector<256x32xf32>
    %c0_22 = arith.constant 0 : index
    %c1_23 = arith.constant 1 : index
    %c0_24 = arith.constant 0 : index
    %23 = vector.load %arg9[%c0_22, %c1_23, %c0_24] : memref<18x18x32xbf16, #tpu.memory_space<vmem>>, vector<16x16x32xbf16>
    %24 = vector.shape_cast %23 : vector<16x16x32xbf16> to vector<256x32xbf16>
    %c1_25 = arith.constant 1 : index
    %c0_26 = arith.constant 0 : index
    %c0_27 = arith.constant 0 : index
    %25 = vector.load %arg4[%c1_25, %c0_26, %c0_27] : memref<9x32x32xbf16, #tpu.memory_space<vmem>>, vector<1x32x32xbf16>
    %26 = vector.shape_cast %25 : vector<1x32x32xbf16> to vector<32x32xbf16>
    %cst_28 = arith.constant dense<0.000000e+00> : vector<256x32xf32>
    %27 = tpu.matmul %24, %26, %cst_28 {dimension_numbers = #tpu.dot_dimension_numbers<[1], [0], [0], [1], [0, 0, 1, 1], [], []>} : vector<256x32xbf16>, vector<32x32xbf16>, vector<256x32xf32> -> vector<256x32xf32>
    %28 = arith.addf %22, %27 : vector<256x32xf32>
    %c0_29 = arith.constant 0 : index
    %c2 = arith.constant 2 : index
    %c0_30 = arith.constant 0 : index
    %29 = vector.load %arg9[%c0_29, %c2, %c0_30] : memref<18x18x32xbf16, #tpu.memory_space<vmem>>, vector<16x16x32xbf16>
    %30 = vector.shape_cast %29 : vector<16x16x32xbf16> to vector<256x32xbf16>
    %c2_31 = arith.constant 2 : index
    %c0_32 = arith.constant 0 : index
    %c0_33 = arith.constant 0 : index
    %31 = vector.load %arg4[%c2_31, %c0_32, %c0_33] : memref<9x32x32xbf16, #tpu.memory_space<vmem>>, vector<1x32x32xbf16>
    %32 = vector.shape_cast %31 : vector<1x32x32xbf16> to vector<32x32xbf16>
    %cst_34 = arith.constant dense<0.000000e+00> : vector<256x32xf32>
    %33 = tpu.matmul %30, %32, %cst_34 {dimension_numbers = #tpu.dot_dimension_numbers<[1], [0], [0], [1], [0, 0, 1, 1], [], []>} : vector<256x32xbf16>, vector<32x32xbf16>, vector<256x32xf32> -> vector<256x32xf32>
    %34 = arith.addf %28, %33 : vector<256x32xf32>
    %c1_35 = arith.constant 1 : index
    %c0_36 = arith.constant 0 : index
    %c0_37 = arith.constant 0 : index
    %35 = vector.load %arg9[%c1_35, %c0_36, %c0_37] : memref<18x18x32xbf16, #tpu.memory_space<vmem>>, vector<16x16x32xbf16>
    %36 = vector.shape_cast %35 : vector<16x16x32xbf16> to vector<256x32xbf16>
    %c3 = arith.constant 3 : index
    %c0_38 = arith.constant 0 : index
    %c0_39 = arith.constant 0 : index
    %37 = vector.load %arg4[%c3, %c0_38, %c0_39] : memref<9x32x32xbf16, #tpu.memory_space<vmem>>, vector<1x32x32xbf16>
    %38 = vector.shape_cast %37 : vector<1x32x32xbf16> to vector<32x32xbf16>
    %cst_40 = arith.constant dense<0.000000e+00> : vector<256x32xf32>
    %39 = tpu.matmul %36, %38, %cst_40 {dimension_numbers = #tpu.dot_dimension_numbers<[1], [0], [0], [1], [0, 0, 1, 1], [], []>} : vector<256x32xbf16>, vector<32x32xbf16>, vector<256x32xf32> -> vector<256x32xf32>
    %40 = arith.addf %34, %39 : vector<256x32xf32>
    %c1_41 = arith.constant 1 : index
    %c1_42 = arith.constant 1 : index
    %c0_43 = arith.constant 0 : index
    %41 = vector.load %arg9[%c1_41, %c1_42, %c0_43] : memref<18x18x32xbf16, #tpu.memory_space<vmem>>, vector<16x16x32xbf16>
    %42 = vector.shape_cast %41 : vector<16x16x32xbf16> to vector<256x32xbf16>
    %c4 = arith.constant 4 : index
    %c0_44 = arith.constant 0 : index
    %c0_45 = arith.constant 0 : index
    %43 = vector.load %arg4[%c4, %c0_44, %c0_45] : memref<9x32x32xbf16, #tpu.memory_space<vmem>>, vector<1x32x32xbf16>
    %44 = vector.shape_cast %43 : vector<1x32x32xbf16> to vector<32x32xbf16>
    %cst_46 = arith.constant dense<0.000000e+00> : vector<256x32xf32>
    %45 = tpu.matmul %42, %44, %cst_46 {dimension_numbers = #tpu.dot_dimension_numbers<[1], [0], [0], [1], [0, 0, 1, 1], [], []>} : vector<256x32xbf16>, vector<32x32xbf16>, vector<256x32xf32> -> vector<256x32xf32>
    %46 = arith.addf %40, %45 : vector<256x32xf32>
    %c1_47 = arith.constant 1 : index
    %c2_48 = arith.constant 2 : index
    %c0_49 = arith.constant 0 : index
    %47 = vector.load %arg9[%c1_47, %c2_48, %c0_49] : memref<18x18x32xbf16, #tpu.memory_space<vmem>>, vector<16x16x32xbf16>
    %48 = vector.shape_cast %47 : vector<16x16x32xbf16> to vector<256x32xbf16>
    %c5 = arith.constant 5 : index
    %c0_50 = arith.constant 0 : index
    %c0_51 = arith.constant 0 : index
    %49 = vector.load %arg4[%c5, %c0_50, %c0_51] : memref<9x32x32xbf16, #tpu.memory_space<vmem>>, vector<1x32x32xbf16>
    %50 = vector.shape_cast %49 : vector<1x32x32xbf16> to vector<32x32xbf16>
    %cst_52 = arith.constant dense<0.000000e+00> : vector<256x32xf32>
    %51 = tpu.matmul %48, %50, %cst_52 {dimension_numbers = #tpu.dot_dimension_numbers<[1], [0], [0], [1], [0, 0, 1, 1], [], []>} : vector<256x32xbf16>, vector<32x32xbf16>, vector<256x32xf32> -> vector<256x32xf32>
    %52 = arith.addf %46, %51 : vector<256x32xf32>
    %c2_53 = arith.constant 2 : index
    %c0_54 = arith.constant 0 : index
    %c0_55 = arith.constant 0 : index
    %53 = vector.load %arg9[%c2_53, %c0_54, %c0_55] : memref<18x18x32xbf16, #tpu.memory_space<vmem>>, vector<16x16x32xbf16>
    %54 = vector.shape_cast %53 : vector<16x16x32xbf16> to vector<256x32xbf16>
    %c6 = arith.constant 6 : index
    %c0_56 = arith.constant 0 : index
    %c0_57 = arith.constant 0 : index
    %55 = vector.load %arg4[%c6, %c0_56, %c0_57] : memref<9x32x32xbf16, #tpu.memory_space<vmem>>, vector<1x32x32xbf16>
    %56 = vector.shape_cast %55 : vector<1x32x32xbf16> to vector<32x32xbf16>
    %cst_58 = arith.constant dense<0.000000e+00> : vector<256x32xf32>
    %57 = tpu.matmul %54, %56, %cst_58 {dimension_numbers = #tpu.dot_dimension_numbers<[1], [0], [0], [1], [0, 0, 1, 1], [], []>} : vector<256x32xbf16>, vector<32x32xbf16>, vector<256x32xf32> -> vector<256x32xf32>
    %58 = arith.addf %52, %57 : vector<256x32xf32>
    %c2_59 = arith.constant 2 : index
    %c1_60 = arith.constant 1 : index
    %c0_61 = arith.constant 0 : index
    %59 = vector.load %arg9[%c2_59, %c1_60, %c0_61] : memref<18x18x32xbf16, #tpu.memory_space<vmem>>, vector<16x16x32xbf16>
    %60 = vector.shape_cast %59 : vector<16x16x32xbf16> to vector<256x32xbf16>
    %c7 = arith.constant 7 : index
    %c0_62 = arith.constant 0 : index
    %c0_63 = arith.constant 0 : index
    %61 = vector.load %arg4[%c7, %c0_62, %c0_63] : memref<9x32x32xbf16, #tpu.memory_space<vmem>>, vector<1x32x32xbf16>
    %62 = vector.shape_cast %61 : vector<1x32x32xbf16> to vector<32x32xbf16>
    %cst_64 = arith.constant dense<0.000000e+00> : vector<256x32xf32>
    %63 = tpu.matmul %60, %62, %cst_64 {dimension_numbers = #tpu.dot_dimension_numbers<[1], [0], [0], [1], [0, 0, 1, 1], [], []>} : vector<256x32xbf16>, vector<32x32xbf16>, vector<256x32xf32> -> vector<256x32xf32>
    %64 = arith.addf %58, %63 : vector<256x32xf32>
    %c2_65 = arith.constant 2 : index
    %c2_66 = arith.constant 2 : index
    %c0_67 = arith.constant 0 : index
    %65 = vector.load %arg9[%c2_65, %c2_66, %c0_67] : memref<18x18x32xbf16, #tpu.memory_space<vmem>>, vector<16x16x32xbf16>
    %66 = vector.shape_cast %65 : vector<16x16x32xbf16> to vector<256x32xbf16>
    %c8 = arith.constant 8 : index
    %c0_68 = arith.constant 0 : index
    %c0_69 = arith.constant 0 : index
    %67 = vector.load %arg4[%c8, %c0_68, %c0_69] : memref<9x32x32xbf16, #tpu.memory_space<vmem>>, vector<1x32x32xbf16>
    %68 = vector.shape_cast %67 : vector<1x32x32xbf16> to vector<32x32xbf16>
    %cst_70 = arith.constant dense<0.000000e+00> : vector<256x32xf32>
    %69 = tpu.matmul %66, %68, %cst_70 {dimension_numbers = #tpu.dot_dimension_numbers<[1], [0], [0], [1], [0, 0, 1, 1], [], []>} : vector<256x32xbf16>, vector<32x32xbf16>, vector<256x32xf32> -> vector<256x32xf32>
    %70 = arith.addf %64, %69 : vector<256x32xf32>
    %c0_71 = arith.constant 0 : index
    %c0_72 = arith.constant 0 : index
    %71 = vector.load %arg5[%c0_71, %c0_72] : memref<1x32xf32, #tpu.memory_space<vmem>>, vector<1x32xf32>
    %72 = vector.broadcast %71 : vector<1x32xf32> to vector<256x32xf32>
    %73 = arith.addf %70, %72 : vector<256x32xf32>
    %cst_73 = arith.constant 0.000000e+00 : f32
    %74 = vector.broadcast %cst_73 : f32 to vector<256x32xf32>
    %75 = arith.maximumf %73, %74 : vector<256x32xf32>
    %76 = arith.truncf %75 : vector<256x32xf32> to vector<256x32xbf16>
    %c0_74 = arith.constant 0 : index
    %c0_75 = arith.constant 0 : index
    %77 = vector.load %arg6[%c0_74, %c0_75] : memref<32x128xbf16, #tpu.memory_space<vmem>>, vector<32x128xbf16>
    %cst_76 = arith.constant dense<0.000000e+00> : vector<256x128xf32>
    %78 = tpu.matmul %76, %77, %cst_76 {dimension_numbers = #tpu.dot_dimension_numbers<[1], [0], [0], [1], [0, 0, 1, 1], [], []>} : vector<256x32xbf16>, vector<32x128xbf16>, vector<256x128xf32> -> vector<256x128xf32>
    %c0_77 = arith.constant 0 : index
    %c0_78 = arith.constant 0 : index
    %79 = vector.load %arg7[%c0_77, %c0_78] : memref<1x128xf32, #tpu.memory_space<vmem>>, vector<1x128xf32>
    %80 = vector.broadcast %79 : vector<1x128xf32> to vector<256x128xf32>
    %81 = arith.addf %78, %80 : vector<256x128xf32>
    %82 = arith.addf %81, %2 : vector<256x128xf32>
    %cst_79 = arith.constant 0.000000e+00 : f32
    %83 = vector.broadcast %cst_79 : f32 to vector<256x128xf32>
    %84 = arith.maximumf %82, %83 : vector<256x128xf32>
    %85 = vector.shape_cast %84 : vector<256x128xf32> to vector<16x16x128xf32>
    %c0_80 = arith.constant 0 : index
    %c0_81 = arith.constant 0 : index
    %c0_82 = arith.constant 0 : index
    %c0_83 = arith.constant 0 : index
    %86 = vector.load %arg8[%c0_80, %c0_81, %c0_82, %c0_83] : memref<1x16x16x128xf32, #tpu.memory_space<vmem>>, vector<1x16x16x128xf32>
    %87 = vector.shape_cast %86 : vector<1x16x16x128xf32> to vector<16x16x128xf32>
    %88 = vector.shape_cast %85 : vector<16x16x128xf32> to vector<1x16x16x128xf32>
    tpu.vector_store %arg8[%c0_80, %c0_81, %c0_82, %c0_83], %88 {strides = array<i32>} : memref<1x16x16x128xf32, #tpu.memory_space<vmem>>, vector<1x16x16x128xf32>,
    return
  }
  func.func @transform_0(%arg0: i32) -> (i32, i32, i32, i32) {
    %c0_i32 = arith.constant 0 : i32
    %c0_i32_0 = arith.constant 0 : i32
    %c0_i32_1 = arith.constant 0 : i32
    %c0_i32_2 = arith.constant 0 : i32
    return %arg0, %c0_i32, %c0_i32_0, %c0_i32_1 : i32, i32, i32, i32
  }
  func.func @transform_1(%arg0: i32) -> (i32, i32) {
    %c0_i32 = arith.constant 0 : i32
    %c0_i32_0 = arith.constant 0 : i32
    %c0_i32_1 = arith.constant 0 : i32
    return %c0_i32, %c0_i32_0 : i32, i32
  }
  func.func @transform_2(%arg0: i32) -> (i32, i32) {
    %c0_i32 = arith.constant 0 : i32
    %c0_i32_0 = arith.constant 0 : i32
    %c0_i32_1 = arith.constant 0 : i32
    return %c0_i32, %c0_i32_0 : i32, i32
  }
  func.func @transform_3(%arg0: i32) -> (i32, i32, i32) {
    %c0_i32 = arith.constant 0 : i32
    %c0_i32_0 = arith.constant 0 : i32
    %c0_i32_1 = arith.constant 0 : i32
    %c0_i32_2 = arith.constant 0 : i32
    return %c0_i32, %c0_i32_0, %c0_i32_1 : i32, i32, i32
  }
  func.func @transform_4(%arg0: i32) -> (i32, i32) {
    %c0_i32 = arith.constant 0 : i32
    %c0_i32_0 = arith.constant 0 : i32
    %c0_i32_1 = arith.constant 0 : i32
    return %c0_i32, %c0_i32_0 : i32, i32
  }
  func.func @transform_5(%arg0: i32) -> (i32, i32) {
    %c0_i32 = arith.constant 0 : i32
    %c0_i32_0 = arith.constant 0 : i32
    %c0_i32_1 = arith.constant 0 : i32
    return %c0_i32, %c0_i32_0 : i32, i32
  }
  func.func @transform_6(%arg0: i32) -> (i32, i32) {
    %c0_i32 = arith.constant 0 : i32
    %c0_i32_0 = arith.constant 0 : i32
    %c0_i32_1 = arith.constant 0 : i32
    return %c0_i32, %c0_i32_0 : i32, i32
  }
  func.func @transform_7(%arg0: i32) -> (i32, i32, i32, i32) {
    %c0_i32 = arith.constant 0 : i32
    %c0_i32_0 = arith.constant 0 : i32
    %c0_i32_1 = arith.constant 0 : i32
    %c0_i32_2 = arith.constant 0 : i32
    return %arg0, %c0_i32, %c0_i32_0, %c0_i32_1 : i32, i32, i32, i32
  }
}

</mosaic_0001>

<llo_original>
// kernel: bottleneck_forward.1
$region0: #{bottleneck_forward.1}
  #allocation0 [shape = 'u32[]', space=smem, size = 0x4, offset = 0x4, fixed_abs, tag = 'smem constant byte address 0x4 - core index']
  #allocation1 [shape = 'u32[144,128]{1,0:T(1,128)}', space=vmem, size = 0x12000, scoped, tag = 'internal scratch']
  #allocation2 [shape = 'bf16[18,18,32]{2,1,0:T(8,128)(2,1)}', space=vmem, size = 0x1b000, scoped, tag = 'scratch operand']
  %s0 = inlined_call_operand.vmem [shape: f32[2,16,16,128], index: 0, kind: input, shape index: {}]
  %s1 = inlined_call_operand.vmem [shape: bf16[128,32], index: 1, kind: input, shape index: {}]
  %s2 = inlined_call_operand.vmem [shape: f32[1,32], index: 2, kind: input, shape index: {}]
  %s3 = inlined_call_operand.vmem [shape: bf16[9,32,32], index: 3, kind: input, shape index: {}]
  %s4 = inlined_call_operand.vmem [shape: f32[1,32], index: 4, kind: input, shape index: {}]
  %s5 = inlined_call_operand.vmem [shape: bf16[32,128], index: 5, kind: input, shape index: {}]
  %s6 = inlined_call_operand.vmem [shape: f32[1,128], index: 6, kind: input, shape index: {}]
  %s7 = inlined_call_operand.hbm [shape: f32[2,16,16,128], index: 7, kind: output, shape index: {}]
  %s8 = sld [smem:[#allocation0]]
  $region61: #{bottleneck_forward.1} parent=0
    _
  %s10 = ssub.s32 1, %s8
  %s11 = scalar_select 0, %s10, %s8
  $region1: #{bottleneck_forward.1} parent=0
    #allocation3 [shape = 'u8[262144]{0}', space=vmem, size = 0x40000, scoped, tag = 'output window, operand 0']
    #allocation4 [shape = 's32[2]{0}', space=sflag, size = 0x8, scoped, tag = 'scoped memory for bottleneck_forward.1']
    %12 = vsyncpa [#allocation4], 0
    %s13 = scalar_lea.sflag [#allocation4], 1
    %14 = vsyncpa %s13, 0
    loop: start=0, step=1, limit=4
    $region2: #{bottleneck_forward.1} parent=1 // loop_pre_header
      _
    $region3: #{bottleneck_forward.1} parent=1 // loop_header
      %s16 = sphi 0, %s20
      %p17 = scmp.ge.s32.totalorder %s16, 4
      %s26 = sphi 0, %s28
      %s29 = sphi 0, %s26
      %s30 = sphi 0, %s29
      %s46 = sphi 0, %s30
      %s50 = sphi 0, %s50
      %s52 = sphi 0, %s50
      %s53 = sphi 0, %s52
      %s67 = sphi 0, %s53
      %s71 = sphi 0, %s71
      %s73 = sphi 0, %s71
      %s74 = sphi 0, %s73
      %s88 = sphi 0, %s74
      %s92 = sphi 0, %s92
      %s94 = sphi 0, %s92
      %s95 = sphi 0, %s94
      %s109 = sphi 0, %s95
      %s113 = sphi 0, %s113
      %s115 = sphi 0, %s113
      %s116 = sphi 0, %s115
      %s130 = sphi 0, %s116
      %s134 = sphi 0, %s134
      %s136 = sphi 0, %s134
      %s137 = sphi 0, %s136
      %s151 = sphi 0, %s137
      %s155 = sphi 0, %s155
      %s157 = sphi 0, %s155
      %s158 = sphi 0, %s157
      %s172 = sphi 0, %s158
      %s178 = sphi 0, %s180
      %s181 = sphi 0, %s178
      %s182 = sphi 0, %s181
      %s198 = sphi 0, %s182
    $region4: #{bottleneck_forward.1} parent=1 // loop_header_branch
      %19 = sbr.rel (%p17) target = $region8
    $region5: #{bottleneck_forward.1} parent=1 // loop_body
      %s21 = ssub.s32 %s16, 1
      %s22 = ssub.s32 %s16, 2
      %s23 = sadd.s32 %s16, 1
      %s24 = ssub.s32 %s16, %s23
      %p25 = scmp.eq.s32.totalorder %s24, 0
      %s27 = sadd.s32 %s26, 1
      %s28 = scalar_select %p25, %s26, %s27
      %p31 = pneg %p25
      %p32 = scmp.eq.s32.totalorder %s16, 1
      %p33 = por %p31, %p32
      %p34 = scmp.ne.s32.totalorder %s26, %s29
      %p35 = scmp.eq.s32.totalorder %s16, 0
      %p36 = por %p34, %p35
      %p37 = scmp.ne.s32.totalorder %s26, %s29
      %p38 = scmp.eq.s32.totalorder %s21, 1
      %p39 = por %p37, %p38
      %p40 = scmp.ne.s32.totalorder %s29, %s30
      %p41 = scmp.eq.s32.totalorder %s21, 0
      %p42 = por %p40, %p41
      %p43 = scmp.ne.s32.totalorder %s29, %s30
      %p44 = scmp.eq.s32.totalorder %s22, 1
      %p45 = por %p43, %p44
      %p47 = scmp.ne.s32.totalorder %s30, %s46
      %p48 = scmp.eq.s32.totalorder %s22, 0
      %p49 = por %p47, %p48
      %s51 = sadd.s32 %s50, 1
      %p54 = scmp.eq.s32.totalorder %s16, 1
      %p55 = scmp.ne.s32.totalorder %s50, %s52
      %p56 = scmp.eq.s32.totalorder %s16, 0
      %p57 = por %p55, %p56
      %p58 = scmp.ne.s32.totalorder %s50, %s52
      %p59 = scmp.eq.s32.totalorder %s21, 1
      %p60 = por %p58, %p59
      %p61 = scmp.ne.s32.totalorder %s52, %s53
      %p62 = scmp.eq.s32.totalorder %s21, 0
      %p63 = por %p61, %p62
      %p64 = scmp.ne.s32.totalorder %s52, %s53
      %p65 = scmp.eq.s32.totalorder %s22, 1
      %p66 = por %p64, %p65
      %p68 = scmp.ne.s32.totalorder %s53, %s67
      %p69 = scmp.eq.s32.totalorder %s22, 0
      %p70 = por %p68, %p69
      %s72 = sadd.s32 %s71, 1
      %p75 = scmp.eq.s32.totalorder %s16, 1
      %p76 = scmp.ne.s32.totalorder %s71, %s73
      %p77 = scmp.eq.s32.totalorder %s16, 0
      %p78 = por %p76, %p77
      %p79 = scmp.ne.s32.totalorder %s71, %s73
      %p80 = scmp.eq.s32.totalorder %s21, 1
      %p81 = por %p79, %p80
      %p82 = scmp.ne.s32.totalorder %s73, %s74
      %p83 = scmp.eq.s32.totalorder %s21, 0
      %p84 = por %p82, %p83
      %p85 = scmp.ne.s32.totalorder %s73, %s74
      %p86 = scmp.eq.s32.totalorder %s22, 1
      %p87 = por %p85, %p86
      %p89 = scmp.ne.s32.totalorder %s74, %s88
      %p90 = scmp.eq.s32.totalorder %s22, 0
      %p91 = por %p89, %p90
      %s93 = sadd.s32 %s92, 1
      %p96 = scmp.eq.s32.totalorder %s16, 1
      %p97 = scmp.ne.s32.totalorder %s92, %s94
      %p98 = scmp.eq.s32.totalorder %s16, 0
      %p99 = por %p97, %p98
      %p100 = scmp.ne.s32.totalorder %s92, %s94
      %p101 = scmp.eq.s32.totalorder %s21, 1
      %p102 = por %p100, %p101
      %p103 = scmp.ne.s32.totalorder %s94, %s95
      %p104 = scmp.eq.s32.totalorder %s21, 0
      %p105 = por %p103, %p104
      %p106 = scmp.ne.s32.totalorder %s94, %s95
      %p107 = scmp.eq.s32.totalorder %s22, 1
      %p108 = por %p106, %p107
      %p110 = scmp.ne.s32.totalorder %s95, %s109
      %p111 = scmp.eq.s32.totalorder %s22, 0
      %p112 = por %p110, %p111
      %s114 = sadd.s32 %s113, 1
      %p117 = scmp.eq.s32.totalorder %s16, 1
      %p118 = scmp.ne.s32.totalorder %s113, %s115
      %p119 = scmp.eq.s32.totalorder %s16, 0
      %p120 = por %p118, %p119
      %p121 = scmp.ne.s32.totalorder %s113, %s115
      %p122 = scmp.eq.s32.totalorder %s21, 1
      %p123 = por %p121, %p122
      %p124 = scmp.ne.s32.totalorder %s115, %s116
      %p125 = scmp.eq.s32.totalorder %s21, 0
      %p126 = por %p124, %p125
      %p127 = scmp.ne.s32.totalorder %s115, %s116
      %p128 = scmp.eq.s32.totalorder %s22, 1
      %p129 = por %p127, %p128
      %p131 = scmp.ne.s32.totalorder %s116, %s130
      %p132 = scmp.eq.s32.totalorder %s22, 0
      %p133 = por %p131, %p132
      %s135 = sadd.s32 %s134, 1
      %p138 = scmp.eq.s32.totalorder %s16, 1
      %p139 = scmp.ne.s32.totalorder %s134, %s136
      %p140 = scmp.eq.s32.totalorder %s16, 0
      %p141 = por %p139, %p140
      %p142 = scmp.ne.s32.totalorder %s134, %s136
      %p143 = scmp.eq.s32.totalorder %s21, 1
      %p144 = por %p142, %p143
      %p145 = scmp.ne.s32.totalorder %s136, %s137
      %p146 = scmp.eq.s32.totalorder %s21, 0
      %p147 = por %p145, %p146
      %p148 = scmp.ne.s32.totalorder %s136, %s137
      %p149 = scmp.eq.s32.totalorder %s22, 1
      %p150 = por %p148, %p149
      %p152 = scmp.ne.s32.totalorder %s137, %s151
      %p153 = scmp.eq.s32.totalorder %s22, 0
      %p154 = por %p152, %p153
      %s156 = sadd.s32 %s155, 1
      %p159 = scmp.eq.s32.totalorder %s16, 1
      %p160 = scmp.ne.s32.totalorder %s155, %s157
      %p161 = scmp.eq.s32.totalorder %s16, 0
      %p162 = por %p160, %p161
      %p163 = scmp.ne.s32.totalorder %s155, %s157
      %p164 = scmp.eq.s32.totalorder %s21, 1
      %p165 = por %p163, %p164
      %p166 = scmp.ne.s32.totalorder %s157, %s158
      %p167 = scmp.eq.s32.totalorder %s21, 0
      %p168 = por %p166, %p167
      %p169 = scmp.ne.s32.totalorder %s157, %s158
      %p170 = scmp.eq.s32.totalorder %s22, 1
      %p171 = por %p169, %p170
      %p173 = scmp.ne.s32.totalorder %s158, %s172
      %p174 = scmp.eq.s32.totalorder %s22, 0
      %p175 = por %p173, %p174
      %s176 = ssub.s32 %s16, %s23
      %p177 = scmp.eq.s32.totalorder %s176, 0
      %s179 = sadd.s32 %s178, 1
      %s180 = scalar_select %p177, %s178, %s179
      %p183 = pneg %p177
      %p184 = scmp.eq.s32.totalorder %s16, 1
      %p185 = por %p183, %p184
      %p186 = scmp.ne.s32.totalorder %s178, %s181
      %p187 = scmp.eq.s32.totalorder %s16, 0
      %p188 = por %p186, %p187
      %p189 = scmp.ne.s32.totalorder %s178, %s181
      %p190 = scmp.eq.s32.totalorder %s21, 1
      %p191 = por %p189, %p190
      %p192 = scmp.ne.s32.totalorder %s181, %s182
      %p193 = scmp.eq.s32.totalorder %s21, 0
      %p194 = por %p192, %p193
      %p195 = scmp.ne.s32.totalorder %s181, %s182
      %p196 = scmp.eq.s32.totalorder %s22, 1
      %p197 = por %p195, %p196
      %p199 = scmp.ne.s32.totalorder %s182, %s198
      %p200 = scmp.eq.s32.totalorder %s22, 0
      %p201 = por %p199, %p200
      %p202 = scmp.le.s32.totalorder 1, %s16
      %p203 = scmp.lt.s32.totalorder %s16, 3
      %p204 = pnand %p202, %p203
      %p205 = pneg %p204
      // Predicated region
      $region9: #{bottleneck_forward.1} parent=5 // pred_check
        _
      $region10: #{bottleneck_forward.1} parent=5 // pred_check_branch
        %207 = sbr.rel (%p204) target = $region12
      $region11: #{bottleneck_forward.1} parent=5 // pred_region
        %s208 = ssub.s32 %s16, 1
        // Predicated region
        $region13: #{bottleneck_forward.1} parent=11 // pred_check
          %p209 = pneg %p63
        $region14: #{bottleneck_forward.1} parent=11 // pred_check_branch
          %211 = sbr.rel (%p209) target = $region16
        $region15: #{bottleneck_forward.1} parent=11 // pred_region
          _
        $region16: #{bottleneck_forward.1} parent=11 // pred_fallthru
          _
        // Predicated region
        $region17: #{bottleneck_forward.1} parent=11 // pred_check
          %p212 = pneg %p84
        $region18: #{bottleneck_forward.1} parent=11 // pred_check_branch
          %214 = sbr.rel (%p212) target = $region20
        $region19: #{bottleneck_forward.1} parent=11 // pred_region
          _
        $region20: #{bottleneck_forward.1} parent=11 // pred_fallthru
          _
        // Predicated region
        $region21: #{bottleneck_forward.1} parent=11 // pred_check
          %p215 = pneg %p105
        $region22: #{bottleneck_forward.1} parent=11 // pred_check_branch
          %217 = sbr.rel (%p215) target = $region24
        $region23: #{bottleneck_forward.1} parent=11 // pred_region
          _
        $region24: #{bottleneck_forward.1} parent=11 // pred_fallthru
          _
        // Predicated region
        $region25: #{bottleneck_forward.1} parent=11 // pred_check
          %p218 = pneg %p126
        $region26: #{bottleneck_forward.1} parent=11 // pred_check_branch
          %220 = sbr.rel (%p218) target = $region28
        $region27: #{bottleneck_forward.1} parent=11 // pred_region
          _
        $region28: #{bottleneck_forward.1} parent=11 // pred_fallthru
          _
        // Predicated region
        $region29: #{bottleneck_forward.1} parent=11 // pred_check
          %p221 = pneg %p147
        $region30: #{bottleneck_forward.1} parent=11 // pred_check_branch
          %223 = sbr.rel (%p221) target = $region32
        $region31: #{bottleneck_forward.1} parent=11 // pred_region
          _
        $region32: #{bottleneck_forward.1} parent=11 // pred_fallthru
          _
        // Predicated region
        $region33: #{bottleneck_forward.1} parent=11 // pred_check
          %p224 = pneg %p168
        $region34: #{bottleneck_forward.1} parent=11 // pred_check_branch
          %226 = sbr.rel (%p224) target = $region36
        $region35: #{bottleneck_forward.1} parent=11 // pred_region
          _
        $region36: #{bottleneck_forward.1} parent=11 // pred_fallthru
          _
      $region12: #{bottleneck_forward.1} parent=5 // pred_fallthru
        _
      %p227 = scmp.lt.s32.totalorder %s16, 2
      // Predicated region
      $region37: #{bottleneck_forward.1} parent=5 // pred_check
        %p228 = pneg %p227
      $region38: #{bottleneck_forward.1} parent=5 // pred_check_branch
        %230 = sbr.rel (%p228) target = $region40
      $region39: #{bottleneck_forward.1} parent=5 // pred_region
        // Predicated region
        $region41: #{bottleneck_forward.1} parent=39 // pred_check
          %p231 = pneg %p36
        $region42: #{bottleneck_forward.1} parent=39 // pred_check_branch
          %233 = sbr.rel (%p231) target = $region44
        $region43: #{bottleneck_forward.1} parent=39 // pred_region
          %p234 = scmp.lt.s32.totalorder %s16, 1
          %s235 = scalar_select %p234, %s16, 1
          %s236 = smul.addr %s235, 32
          %s237 = smul.addr %s236, 8
          %s238 = scalar_lea.vmem %s0, %s237
        $region44: #{bottleneck_forward.1} parent=39 // pred_fallthru
          _
      $region40: #{bottleneck_forward.1} parent=5 // pred_fallthru
        _
      %p239 = scmp.le.s32.totalorder 1, %s16
      %p240 = scmp.lt.s32.totalorder %s16, 3
      %p241 = pnand %p239, %p240
      %p242 = pneg %p241
      // Predicated region
      $region45: #{bottleneck_forward.1} parent=5 // pred_check
        _
      $region46: #{bottleneck_forward.1} parent=5 // pred_check_branch
        %244 = sbr.rel (%p241) target = $region48
      $region47: #{bottleneck_forward.1} parent=5 // pred_region
        %s245 = ssub.s32 %s16, 1
        %p246 = scmp.lt.s32.totalorder %s21, 1
        %s247 = scalar_select %p246, %s21, 1
        %s248 = smul.addr %s247, 32
        %s249 = smul.addr %s248, 8
        %s250 = scalar_lea.vmem %s0, %s249
        %p251 = pneg %p42
        %p252 = pneg %p39
        %p253 = pneg %p63
        %p254 = pneg %p60
        %p255 = pneg %p84
        %p256 = pneg %p81
        %p257 = pneg %p105
        %p258 = pneg %p102
        %p259 = pneg %p126
        %p260 = pneg %p123
        %p261 = pneg %p147
        %p262 = pneg %p144
        %p263 = pneg %p168
        %p264 = pneg %p165
        %p265 = pneg %p194
        %p266 = pneg %p191
        %s267 = sand.u32 %s181, 1
        %s268 = scalar_lea.sflag [#allocation4], %s267
        %s269 = sand.u32 %s181, 1
        %s270 = smul.addr %s269, 256
        %s271 = scalar_lea.vmem [#allocation3], %s270
        %p272 = scmp.lt.s32.totalorder %s21, 1
        %s273 = scalar_select %p272, %s21, 1
        %s274 = smul.addr %s273, 32
        %s275 = smul.addr %s274, 8
        %s276 = scalar_lea.vmem %s0, %s275
        %v278 = vld [vmem:[%s276] sm:$0xff]
        %v279 = vld [vmem:[%s276 + $0x8] sm:$0xff]
        %v280 = vld [vmem:[%s276 + $0x10] sm:$0xff]
        %v281 = vld [vmem:[%s276 + $0x18] sm:$0xff]
        %v282 = vld [vmem:[%s276 + $0x20] sm:$0xff]
        %v283 = vld [vmem:[%s276 + $0x28] sm:$0xff]
        %v284 = vld [vmem:[%s276 + $0x30] sm:$0xff]
        %v285 = vld [vmem:[%s276 + $0x38] sm:$0xff]
        %v286 = vld [vmem:[%s276 + $0x40] sm:$0xff]
        %v287 = vld [vmem:[%s276 + $0x48] sm:$0xff]
        %v288 = vld [vmem:[%s276 + $0x50] sm:$0xff]
        %v289 = vld [vmem:[%s276 + $0x58] sm:$0xff]
        %v290 = vld [vmem:[%s276 + $0x60] sm:$0xff]
        %v291 = vld [vmem:[%s276 + $0x68] sm:$0xff]
        %v292 = vld [vmem:[%s276 + $0x70] sm:$0xff]
        %v293 = vld [vmem:[%s276 + $0x78] sm:$0xff]
        %v294 = vld [vmem:[%s276 + $0x80] sm:$0xff]
        %v295 = vld [vmem:[%s276 + $0x88] sm:$0xff]
        %v296 = vld [vmem:[%s276 + $0x90] sm:$0xff]
        %v297 = vld [vmem:[%s276 + $0x98] sm:$0xff]
        %v298 = vld [vmem:[%s276 + $0xa0] sm:$0xff]
        %v299 = vld [vmem:[%s276 + $0xa8] sm:$0xff]
        %v300 = vld [vmem:[%s276 + $0xb0] sm:$0xff]
        %v301 = vld [vmem:[%s276 + $0xb8] sm:$0xff]
        %v302 = vld [vmem:[%s276 + $0xc0] sm:$0xff]
        %v303 = vld [vmem:[%s276 + $0xc8] sm:$0xff]
        %v304 = vld [vmem:[%s276 + $0xd0] sm:$0xff]
        %v305 = vld [vmem:[%s276 + $0xd8] sm:$0xff]
        %v306 = vld [vmem:[%s276 + $0xe0] sm:$0xff]
        %v307 = vld [vmem:[%s276 + $0xe8] sm:$0xff]
        %v308 = vld [vmem:[%s276 + $0xf0] sm:$0xff]
        %v309 = vld [vmem:[%s276 + $0xf8] sm:$0xff]
        %v310 = vpack.c.bf16 %v279, %v278
        %v311 = vpack.c.bf16 %v281, %v280
        %v312 = vpack.c.bf16 %v283, %v282
        %v313 = vpack.c.bf16 %v285, %v284
        %v314 = vpack.c.bf16 %v287, %v286
        %v315 = vpack.c.bf16 %v289, %v288
        %v316 = vpack.c.bf16 %v291, %v290
        %v317 = vpack.c.bf16 %v293, %v292
        %v318 = vpack.c.bf16 %v295, %v294
        %v319 = vpack.c.bf16 %v297, %v296
        %v320 = vpack.c.bf16 %v299, %v298
        %v321 = vpack.c.bf16 %v301, %v300
        %v322 = vpack.c.bf16 %v303, %v302
        %v323 = vpack.c.bf16 %v305, %v304
        %v324 = vpack.c.bf16 %v307, %v306
        %v325 = vpack.c.bf16 %v309, %v308
        %v326 = vld [vmem:[%s1] sm:$0xf]
        %v327 = vld [vmem:[%s1 + $0x4] sm:$0xf]
        %v328 = vld [vmem:[%s1 + $0x8] sm:$0xf]
        %v329 = vld [vmem:[%s1 + $0xc] sm:$0xf]
        %v330 = vld [vmem:[%s1 + $0x10] sm:$0xf]
        %v331 = vld [vmem:[%s1 + $0x14] sm:$0xf]
        %v332 = vld [vmem:[%s1 + $0x18] sm:$0xf]
        %v333 = vld [vmem:[%s1 + $0x1c] sm:$0xf]
        %v334 = vld [vmem:[%s1 + $0x20] sm:$0xf]
        %v335 = vld [vmem:[%s1 + $0x24] sm:$0xf]
        %v336 = vld [vmem:[%s1 + $0x28] sm:$0xf]
        %v337 = vld [vmem:[%s1 + $0x2c] sm:$0xf]
        %v338 = vld [vmem:[%s1 + $0x30] sm:$0xf]
        %v339 = vld [vmem:[%s1 + $0x34] sm:$0xf]
        %v340 = vld [vmem:[%s1 + $0x38] sm:$0xf]
        %v341 = vld [vmem:[%s1 + $0x3c] sm:$0xf]
        %v342 = vld [vmem:[%s2] sm:$0x1]
        %v344 = vlaneseq
        %v345 = vshrl.u32 %v344, 7
        %v346 = vsub.s32 0, %v345
        %v347 = vrot.slane %v342, %v346
        %v365 = vunpack.c.l.b16 %v326
        %v366 = vunpack.c.l.b16 %v327
        %v367 = vunpack.c.l.b16 %v328
        %v368 = vunpack.c.l.b16 %v329
        %v369 = vunpack.c.l.b16 %v330
        %v370 = vunpack.c.l.b16 %v331
        %v371 = vunpack.c.l.b16 %v332
        %v372 = vunpack.c.l.b16 %v333
        %v373 = vunpack.c.l.b16 %v334
        %v374 = vunpack.c.l.b16 %v335
        %v375 = vunpack.c.l.b16 %v336
        %v376 = vunpack.c.l.b16 %v337
        %v377 = vunpack.c.l.b16 %v338
        %v378 = vunpack.c.l.b16 %v339
        %v379 = vunpack.c.l.b16 %v340
        %v380 = vunpack.c.l.b16 %v341
        %v381 = vpack.c.b16 %v366, %v365
        %v382 = vpack.c.b16 %v368, %v367
        %v383 = vpack.c.b16 %v370, %v369
        %v384 = vpack.c.b16 %v372, %v371
        %v385 = vpack.c.b16 %v374, %v373
        %v386 = vpack.c.b16 %v376, %v375
        %v387 = vpack.c.b16 %v378, %v377
        %v388 = vpack.c.b16 %v380, %v379
        %397 = vmatprep.subr.bf16.mxu0 0
        %398 = vmatpush1.bf16.msra.mxu0 %v388
        %399 = vmatprep.subr.bf16.mxu0 0
        %400 = vmatpush1.bf16.msra.mxu0 %v387
        %401 = vmatprep.subr.bf16.mxu0 0
        %402 = vmatpush1.bf16.msra.mxu0 %v386
        %403 = vmatprep.subr.bf16.mxu0 0
        %404 = vmatpush1.bf16.msra.mxu0 %v385
        %405 = vmatprep.subr.bf16.mxu0 0
        %406 = vmatpush1.bf16.msra.mxu0 %v384
        %407 = vmatprep.subr.bf16.mxu0 0
        %408 = vmatpush1.bf16.msra.mxu0 %v383
        %409 = vmatprep.subr.bf16.mxu0 0
        %410 = vmatpush1.bf16.msra.mxu0 %v382
        %411 = vmatprep.subr.bf16.mxu0 0
        %412 = vmatpush1.bf16.msra.mxu0 %v381
        %413 = vmatprep.subr.bf16.mxu0 0
        %414 = vmatpush2.bf16.msra.mxu0 0
        %415 = vmatprep.subr.bf16.mxu0 0
        %416 = vmatpush2.bf16.msra.mxu0 0
        %417 = vmatprep.subr.bf16.mxu0 0
        %418 = vmatpush2.bf16.msra.mxu0 0
        %419 = vmatprep.subr.bf16.mxu0 0
        %420 = vmatpush2.bf16.msra.mxu0 0
        %421 = vmatprep.subr.bf16.mxu0 0
        %422 = vmatpush2.bf16.msra.mxu0 0
        %423 = vmatprep.subr.bf16.mxu0 0
        %424 = vmatpush2.bf16.msra.mxu0 0
        %425 = vmatprep.subr.bf16.mxu0 0
        %426 = vmatpush2.bf16.msra.mxu0 0
        %427 = vmatprep.subr.bf16.mxu0 0
        %428 = vmatpush2.bf16.msra.mxu0 0
        %429 = vmatprep.mubr.bf16.mxu0 0
        %430 = vmatmul.mubr.bf16.gmra.mxu0 %v310
        %v431 = vpop.f32.mrf.mxu0
        %v432 = vadd.f32 %v347, %v431
        %v433 = vpop.f32.mrf.mxu0
        %v434 = vpop.f32.mrf.mxu0
        %v435 = vadd.f32 %v347, %v434
        %v436 = vpop.f32.mrf.mxu0
        %437 = vmatprep.mubr.bf16.mxu0 0
        %438 = vmatmul.mubr.bf16.gmra.mxu0 %v311
        %v439 = vpop.f32.mrf.mxu0
        %v440 = vadd.f32 %v347, %v439
        %v441 = vpop.f32.mrf.mxu0
        %v442 = vpop.f32.mrf.mxu0
        %v443 = vadd.f32 %v347, %v442
        %v444 = vpop.f32.mrf.mxu0
        %445 = vmatprep.mubr.bf16.mxu0 0
        %446 = vmatmul.mubr.bf16.gmra.mxu0 %v312
        %v447 = vpop.f32.mrf.mxu0
        %v448 = vadd.f32 %v347, %v447
        %v449 = vpop.f32.mrf.mxu0
        %v450 = vpop.f32.mrf.mxu0
        %v451 = vadd.f32 %v347, %v450
        %v452 = vpop.f32.mrf.mxu0
        %453 = vmatprep.mubr.bf16.mxu0 0
        %454 = vmatmul.mubr.bf16.gmra.mxu0 %v313
        %v455 = vpop.f32.mrf.mxu0
        %v456 = vadd.f32 %v347, %v455
        %v457 = vpop.f32.mrf.mxu0
        %v458 = vpop.f32.mrf.mxu0
        %v459 = vadd.f32 %v347, %v458
        %v460 = vpop.f32.mrf.mxu0
        %461 = vmatprep.mubr.bf16.mxu0 0
        %462 = vmatmul.mubr.bf16.gmra.mxu0 %v314
        %v463 = vpop.f32.mrf.mxu0
        %v464 = vadd.f32 %v347, %v463
        %v465 = vpop.f32.mrf.mxu0
        %v466 = vpop.f32.mrf.mxu0
        %v467 = vadd.f32 %v347, %v466
        %v468 = vpop.f32.mrf.mxu0
        %469 = vmatprep.mubr.bf16.mxu0 0
        %470 = vmatmul.mubr.bf16.gmra.mxu0 %v315
        %v471 = vpop.f32.mrf.mxu0
        %v472 = vadd.f32 %v347, %v471
        %v473 = vpop.f32.mrf.mxu0
        %v474 = vpop.f32.mrf.mxu0
        %v475 = vadd.f32 %v347, %v474
        %v476 = vpop.f32.mrf.mxu0
        %477 = vmatprep.mubr.bf16.mxu0 0
        %478 = vmatmul.mubr.bf16.gmra.mxu0 %v316
        %v479 = vpop.f32.mrf.mxu0
        %v480 = vadd.f32 %v347, %v479
        %v481 = vpop.f32.mrf.mxu0
        %v482 = vpop.f32.mrf.mxu0
        %v483 = vadd.f32 %v347, %v482
        %v484 = vpop.f32.mrf.mxu0
        %485 = vmatprep.mubr.bf16.mxu0 0
        %486 = vmatmul.mubr.bf16.gmra.mxu0 %v317
        %v487 = vpop.f32.mrf.mxu0
        %v488 = vadd.f32 %v347, %v487
        %v489 = vpop.f32.mrf.mxu0
        %v490 = vpop.f32.mrf.mxu0
        %v491 = vadd.f32 %v347, %v490
        %v492 = vpop.f32.mrf.mxu0
        %493 = vmatprep.mubr.bf16.mxu0 0
        %494 = vmatmul.mubr.bf16.gmra.mxu0 %v318
        %v495 = vpop.f32.mrf.mxu0
        %v496 = vadd.f32 %v347, %v495
        %v497 = vpop.f32.mrf.mxu0
        %v498 = vpop.f32.mrf.mxu0
        %v499 = vadd.f32 %v347, %v498
        %v500 = vpop.f32.mrf.mxu0
        %501 = vmatprep.mubr.bf16.mxu0 0
        %502 = vmatmul.mubr.bf16.gmra.mxu0 %v319
        %v503 = vpop.f32.mrf.mxu0
        %v504 = vadd.f32 %v347, %v503
        %v505 = vpop.f32.mrf.mxu0
        %v506 = vpop.f32.mrf.mxu0
        %v507 = vadd.f32 %v347, %v506
        %v508 = vpop.f32.mrf.mxu0
        %509 = vmatprep.mubr.bf16.mxu0 0
        %510 = vmatmul.mubr.bf16.gmra.mxu0 %v320
        %v511 = vpop.f32.mrf.mxu0
        %v512 = vadd.f32 %v347, %v511
        %v513 = vpop.f32.mrf.mxu0
        %v514 = vpop.f32.mrf.mxu0
        %v515 = vadd.f32 %v347, %v514
        %v516 = vpop.f32.mrf.mxu0
        %517 = vmatprep.mubr.bf16.mxu0 0
        %518 = vmatmul.mubr.bf16.gmra.mxu0 %v321
        %v519 = vpop.f32.mrf.mxu0
        %v520 = vadd.f32 %v347, %v519
        %v521 = vpop.f32.mrf.mxu0
        %v522 = vpop.f32.mrf.mxu0
        %v523 = vadd.f32 %v347, %v522
        %v524 = vpop.f32.mrf.mxu0
        %525 = vmatprep.mubr.bf16.mxu0 0
        %526 = vmatmul.mubr.bf16.gmra.mxu0 %v322
        %v527 = vpop.f32.mrf.mxu0
        %v528 = vadd.f32 %v347, %v527
        %v529 = vpop.f32.mrf.mxu0
        %v530 = vpop.f32.mrf.mxu0
        %v531 = vadd.f32 %v347, %v530
        %v532 = vpop.f32.mrf.mxu0
        %533 = vmatprep.mubr.bf16.mxu0 0
        %534 = vmatmul.mubr.bf16.gmra.mxu0 %v323
        %v535 = vpop.f32.mrf.mxu0
        %v536 = vadd.f32 %v347, %v535
        %v537 = vpop.f32.mrf.mxu0
        %v538 = vpop.f32.mrf.mxu0
        %v539 = vadd.f32 %v347, %v538
        %v540 = vpop.f32.mrf.mxu0
        %541 = vmatprep.mubr.bf16.mxu0 0
        %542 = vmatmul.mubr.bf16.gmra.mxu0 %v324
        %v543 = vpop.f32.mrf.mxu0
        %v544 = vadd.f32 %v347, %v543
        %v545 = vpop.f32.mrf.mxu0
        %v546 = vpop.f32.mrf.mxu0
        %v547 = vadd.f32 %v347, %v546
        %v548 = vpop.f32.mrf.mxu0
        %549 = vmatprep.mubr.bf16.mxu0 0
        %550 = vmatmul.mubr.bf16.gmra.mxu0 %v325
        %v551 = vpop.f32.mrf.mxu0
        %v552 = vadd.f32 %v347, %v551
        %v553 = vpop.f32.mrf.mxu0
        %v554 = vpop.f32.mrf.mxu0
        %v555 = vadd.f32 %v347, %v554
        %v556 = vpop.f32.mrf.mxu0
        %557 = vdwg.mxu0
        %v558 = vmax.f32 %v432, 0.0
        %v559 = vmax.f32 %v435, 0.0
        %v560 = vmax.f32 %v440, 0.0
        %v561 = vmax.f32 %v443, 0.0
        %v562 = vmax.f32 %v448, 0.0
        %v563 = vmax.f32 %v451, 0.0
        %v564 = vmax.f32 %v456, 0.0
        %v565 = vmax.f32 %v459, 0.0
        %v566 = vmax.f32 %v464, 0.0
        %v567 = vmax.f32 %v467, 0.0
        %v568 = vmax.f32 %v472, 0.0
        %v569 = vmax.f32 %v475, 0.0
        %v570 = vmax.f32 %v480, 0.0
        %v571 = vmax.f32 %v483, 0.0
        %v572 = vmax.f32 %v488, 0.0
        %v573 = vmax.f32 %v491, 0.0
        %v574 = vmax.f32 %v496, 0.0
        %v575 = vmax.f32 %v499, 0.0
        %v576 = vmax.f32 %v504, 0.0
        %v577 = vmax.f32 %v507, 0.0
        %v578 = vmax.f32 %v512, 0.0
        %v579 = vmax.f32 %v515, 0.0
        %v580 = vmax.f32 %v520, 0.0
        %v581 = vmax.f32 %v523, 0.0
        %v582 = vmax.f32 %v528, 0.0
        %v583 = vmax.f32 %v531, 0.0
        %v584 = vmax.f32 %v536, 0.0
        %v585 = vmax.f32 %v539, 0.0
        %v586 = vmax.f32 %v544, 0.0
        %v587 = vmax.f32 %v547, 0.0
        %v588 = vmax.f32 %v552, 0.0
        %v589 = vmax.f32 %v555, 0.0
        %vm590 = vcmask 257024
        %591 = vst.msk [vmem:[#allocation2] sm:$0xf] %vm590, 0
        %592 = vst.msk [vmem:[#allocation2 + $0x4] sm:$0xf] %vm590, 0
        %vm593 = vcmask 253952
        %594 = vst.msk [vmem:[#allocation2 + $0x8] sm:$0x1] %vm593, 0
        %595 = vst.msk [vmem:[#allocation2 + $0xc] sm:$0xf] %vm590, 0
        %596 = vst.msk [vmem:[#allocation2 + $0x10] sm:$0xf] %vm590, 0
        %597 = vst.msk [vmem:[#allocation2 + $0x14] sm:$0x1] %vm593, 0
        %598 = vst.msk [vmem:[#allocation2 + $0x18] sm:$0xf] %vm590, 0
        %599 = vst.msk [vmem:[#allocation2 + $0x1c] sm:$0xf] %vm590, 0
        %600 = vst.msk [vmem:[#allocation2 + $0x20] sm:$0x1] %vm593, 0
        %601 = vst.msk [vmem:[#allocation2 + $0x24] sm:$0xf] %vm590, 0
        %602 = vst.msk [vmem:[#allocation2 + $0x28] sm:$0xf] %vm590, 0
        %603 = vst.msk [vmem:[#allocation2 + $0x2c] sm:$0x1] %vm593, 0
        %604 = vst.msk [vmem:[#allocation2 + $0x30] sm:$0xf] %vm590, 0
        %605 = vst.msk [vmem:[#allocation2 + $0x34] sm:$0xf] %vm590, 0
        %606 = vst.msk [vmem:[#allocation2 + $0x38] sm:$0x1] %vm593, 0
        %607 = vst.msk [vmem:[#allocation2 + $0x3c] sm:$0xf] %vm590, 0
        %608 = vst.msk [vmem:[#allocation2 + $0x40] sm:$0xf] %vm590, 0
        %609 = vst.msk [vmem:[#allocation2 + $0x44] sm:$0x1] %vm593, 0
        %610 = vst.msk [vmem:[#allocation2 + $0x48] sm:$0xf] %vm590, 0
        %611 = vst.msk [vmem:[#allocation2 + $0x4c] sm:$0xf] %vm590, 0
        %612 = vst.msk [vmem:[#allocation2 + $0x50] sm:$0x1] %vm593, 0
        %613 = vst.msk [vmem:[#allocation2 + $0x54] sm:$0xf] %vm590, 0
        %614 = vst.msk [vmem:[#allocation2 + $0x58] sm:$0xf] %vm590, 0
        %615 = vst.msk [vmem:[#allocation2 + $0x5c] sm:$0x1] %vm593, 0
        %616 = vst.msk [vmem:[#allocation2 + $0x60] sm:$0xf] %vm590, 0
        %617 = vst.msk [vmem:[#allocation2 + $0x64] sm:$0xf] %vm590, 0
        %618 = vst.msk [vmem:[#allocation2 + $0x68] sm:$0x1] %vm593, 0
        %619 = vst.msk [vmem:[#allocation2 + $0x6c] sm:$0xf] %vm590, 0
        %620 = vst.msk [vmem:[#allocation2 + $0x70] sm:$0xf] %vm590, 0
        %621 = vst.msk [vmem:[#allocation2 + $0x74] sm:$0x1] %vm593, 0
        %622 = vst.msk [vmem:[#allocation2 + $0x78] sm:$0xf] %vm590, 0
        %623 = vst.msk [vmem:[#allocation2 + $0x7c] sm:$0xf] %vm590, 0
        %624 = vst.msk [vmem:[#allocation2 + $0x80] sm:$0x1] %vm593, 0
        %625 = vst.msk [vmem:[#allocation2 + $0x84] sm:$0xf] %vm590, 0
        %626 = vst.msk [vmem:[#allocation2 + $0x88] sm:$0xf] %vm590, 0
        %627 = vst.msk [vmem:[#allocation2 + $0x8c] sm:$0x1] %vm593, 0
        %628 = vst.msk [vmem:[#allocation2 + $0x90] sm:$0xf] %vm590, 0
        %629 = vst.msk [vmem:[#allocation2 + $0x94] sm:$0xf] %vm590, 0
        %630 = vst.msk [vmem:[#allocation2 + $0x98] sm:$0x1] %vm593, 0
        %631 = vst.msk [vmem:[#allocation2 + $0x9c] sm:$0xf] %vm590, 0
        %632 = vst.msk [vmem:[#allocation2 + $0xa0] sm:$0xf] %vm590, 0
        %633 = vst.msk [vmem:[#allocation2 + $0xa4] sm:$0x1] %vm593, 0
        %634 = vst.msk [vmem:[#allocation2 + $0xa8] sm:$0xf] %vm590, 0
        %635 = vst.msk [vmem:[#allocation2 + $0xac] sm:$0xf] %vm590, 0
        %636 = vst.msk [vmem:[#allocation2 + $0xb0] sm:$0x1] %vm593, 0
        %637 = vst.msk [vmem:[#allocation2 + $0xb4] sm:$0xf] %vm590, 0
        %638 = vst.msk [vmem:[#allocation2 + $0xb8] sm:$0xf] %vm590, 0
        %639 = vst.msk [vmem:[#allocation2 + $0xbc] sm:$0x1] %vm593, 0
        %640 = vst.msk [vmem:[#allocation2 + $0xc0] sm:$0xf] %vm590, 0
        %641 = vst.msk [vmem:[#allocation2 + $0xc4] sm:$0xf] %vm590, 0
        %642 = vst.msk [vmem:[#allocation2 + $0xc8] sm:$0x1] %vm593, 0
        %643 = vst.msk [vmem:[#allocation2 + $0xcc] sm:$0xf] %vm590, 0
        %644 = vst.msk [vmem:[#allocation2 + $0xd0] sm:$0xf] %vm590, 0
        %645 = vst.msk [vmem:[#allocation2 + $0xd4] sm:$0x1] %vm593, 0
        %v646 = vpack.c.bf16 %v559, %v558
        %v647 = vpack.c.bf16 %v561, %v560
        %v648 = vpack.c.bf16 %v563, %v562
        %v649 = vpack.c.bf16 %v565, %v564
        %v650 = vpack.c.bf16 %v567, %v566
        %v651 = vpack.c.bf16 %v569, %v568
        %v652 = vpack.c.bf16 %v571, %v570
        %v653 = vpack.c.bf16 %v573, %v572
        %v654 = vpack.c.bf16 %v575, %v574
        %v655 = vpack.c.bf16 %v577, %v576
        %v656 = vpack.c.bf16 %v579, %v578
        %v657 = vpack.c.bf16 %v581, %v580
        %v658 = vpack.c.bf16 %v583, %v582
        %v659 = vpack.c.bf16 %v585, %v584
        %v660 = vpack.c.bf16 %v587, %v586
        %v661 = vpack.c.bf16 %v589, %v588
        %v678 = vunpack.c.l.b16 %v646
        %v679 = vunpack.c.h.b16 %v646
        %v680 = vunpack.c.l.b16 %v647
        %v681 = vunpack.c.h.b16 %v647
        %v682 = vunpack.c.l.b16 %v648
        %v683 = vunpack.c.h.b16 %v648
        %v684 = vunpack.c.l.b16 %v649
        %v685 = vunpack.c.h.b16 %v649
        %v686 = vunpack.c.l.b16 %v650
        %v687 = vunpack.c.h.b16 %v650
        %v688 = vunpack.c.l.b16 %v651
        %v689 = vunpack.c.h.b16 %v651
        %v690 = vunpack.c.l.b16 %v652
        %v691 = vunpack.c.h.b16 %v652
        %v692 = vunpack.c.l.b16 %v653
        %v693 = vunpack.c.h.b16 %v653
        %v694 = vunpack.c.l.b16 %v654
        %v695 = vunpack.c.h.b16 %v654
        %v696 = vunpack.c.l.b16 %v655
        %v697 = vunpack.c.h.b16 %v655
        %v698 = vunpack.c.l.b16 %v656
        %v699 = vunpack.c.h.b16 %v656
        %v700 = vunpack.c.l.b16 %v657
        %v701 = vunpack.c.h.b16 %v657
        %v702 = vunpack.c.l.b16 %v658
        %v703 = vunpack.c.h.b16 %v658
        %v704 = vunpack.c.l.b16 %v659
        %v705 = vunpack.c.h.b16 %v659
        %v706 = vunpack.c.l.b16 %v660
        %v707 = vunpack.c.h.b16 %v660
        %v708 = vunpack.c.l.b16 %v661
        %v709 = vunpack.c.h.b16 %v661
        %v710 = vpack.c.b16 %v678, %v678
        %v711 = vpack.c.b16 %v679, %v679
        %v712 = vpack.c.b16 %v680, %v680
        %v713 = vpack.c.b16 %v681, %v681
        %v714 = vpack.c.b16 %v682, %v682
        %v715 = vpack.c.b16 %v683, %v683
        %v716 = vpack.c.b16 %v684, %v684
        %v717 = vpack.c.b16 %v685, %v685
        %v718 = vpack.c.b16 %v686, %v686
        %v719 = vpack.c.b16 %v687, %v687
        %v720 = vpack.c.b16 %v688, %v688
        %v721 = vpack.c.b16 %v689, %v689
        %v722 = vpack.c.b16 %v690, %v690
        %v723 = vpack.c.b16 %v691, %v691
        %v724 = vpack.c.b16 %v692, %v692
        %v725 = vpack.c.b16 %v693, %v693
        %v726 = vpack.c.b16 %v694, %v694
        %v727 = vpack.c.b16 %v695, %v695
        %v728 = vpack.c.b16 %v696, %v696
        %v729 = vpack.c.b16 %v697, %v697
        %v730 = vpack.c.b16 %v698, %v698
        %v731 = vpack.c.b16 %v699, %v699
        %v732 = vpack.c.b16 %v700, %v700
        %v733 = vpack.c.b16 %v701, %v701
        %v734 = vpack.c.b16 %v702, %v702
        %v735 = vpack.c.b16 %v703, %v703
        %v736 = vpack.c.b16 %v704, %v704
        %v737 = vpack.c.b16 %v705, %v705
        %v738 = vpack.c.b16 %v706, %v706
        %v739 = vpack.c.b16 %v707, %v707
        %v740 = vpack.c.b16 %v708, %v708
        %v741 = vpack.c.b16 %v709, %v709
        %vm742 = vsmask.f32 256
        %vm743 = vsmask.f32 4368
        %vm744 = vmor %vm742, %vm743
        %v746 = vshrl.u32 %v710, 16
        %v748 = vrot.slane %v746, 7
        %v749 = vshll.u32 %v710, 16
        %v751 = vor.u32 %v748, %v749
        %v752 = vrot.slane %v748, 4
        %v754 = vshrl.u32 %v711, 16
        %v756 = vrot.slane %v754, 7
        %v757 = vshll.u32 %v711, 16
        %v759 = vor.u32 %v756, %v757
        %v760 = vsel %vm744, %v752, %v759
        %v761 = vrot.slane %v756, 4
        %v763 = vshrl.u32 %v712, 16
        %v765 = vrot.slane %v763, 7
        %v766 = vshll.u32 %v712, 16
        %v768 = vor.u32 %v765, %v766
        %v769 = vrot.slane %v765, 4
        %v771 = vshrl.u32 %v713, 16
        %v773 = vrot.slane %v771, 7
        %v774 = vshll.u32 %v713, 16
        %v776 = vor.u32 %v773, %v774
        %v777 = vsel %vm744, %v769, %v776
        %v778 = vrot.slane %v773, 4
        %v780 = vshrl.u32 %v714, 16
        %v782 = vrot.slane %v780, 7
        %v783 = vshll.u32 %v714, 16
        %v785 = vor.u32 %v782, %v783
        %v786 = vrot.slane %v782, 4
        %v788 = vshrl.u32 %v715, 16
        %v790 = vrot.slane %v788, 7
        %v791 = vshll.u32 %v715, 16
        %v793 = vor.u32 %v790, %v791
        %v794 = vsel %vm744, %v786, %v793
        %v795 = vrot.slane %v790, 4
        %v797 = vshrl.u32 %v716, 16
        %v799 = vrot.slane %v797, 7
        %v800 = vshll.u32 %v716, 16
        %v802 = vor.u32 %v799, %v800
        %v803 = vrot.slane %v799, 4
        %v805 = vshrl.u32 %v717, 16
        %v807 = vrot.slane %v805, 7
        %v808 = vshll.u32 %v717, 16
        %v810 = vor.u32 %v807, %v808
        %v811 = vsel %vm744, %v803, %v810
        %v812 = vrot.slane %v807, 4
        %v814 = vshrl.u32 %v718, 16
        %v816 = vrot.slane %v814, 7
        %v817 = vshll.u32 %v718, 16
        %v819 = vor.u32 %v816, %v817
        %v820 = vrot.slane %v816, 4
        %v822 = vshrl.u32 %v719, 16
        %v824 = vrot.slane %v822, 7
        %v825 = vshll.u32 %v719, 16
        %v827 = vor.u32 %v824, %v825
        %v828 = vsel %vm744, %v820, %v827
        %v829 = vrot.slane %v824, 4
        %v831 = vshrl.u32 %v720, 16
        %v833 = vrot.slane %v831, 7
        %v834 = vshll.u32 %v720, 16
        %v836 = vor.u32 %v833, %v834
        %v837 = vrot.slane %v833, 4
        %v839 = vshrl.u32 %v721, 16
        %v841 = vrot.slane %v839, 7
        %v842 = vshll.u32 %v721, 16
        %v844 = vor.u32 %v841, %v842
        %v845 = vsel %vm744, %v837, %v844
        %v846 = vrot.slane %v841, 4
        %v848 = vshrl.u32 %v722, 16
        %v850 = vrot.slane %v848, 7
        %v851 = vshll.u32 %v722, 16
        %v853 = vor.u32 %v850, %v851
        %v854 = vrot.slane %v850, 4
        %v856 = vshrl.u32 %v723, 16
        %v858 = vrot.slane %v856, 7
        %v859 = vshll.u32 %v723, 16
        %v861 = vor.u32 %v858, %v859
        %v862 = vsel %vm744, %v854, %v861
        %v863 = vrot.slane %v858, 4
        %v865 = vshrl.u32 %v724, 16
        %v867 = vrot.slane %v865, 7
        %v868 = vshll.u32 %v724, 16
        %v870 = vor.u32 %v867, %v868
        %v871 = vrot.slane %v867, 4
        %v873 = vshrl.u32 %v725, 16
        %v875 = vrot.slane %v873, 7
        %v876 = vshll.u32 %v725, 16
        %v878 = vor.u32 %v875, %v876
        %v879 = vsel %vm744, %v871, %v878
        %v880 = vrot.slane %v875, 4
        %v882 = vshrl.u32 %v726, 16
        %v884 = vrot.slane %v882, 7
        %v885 = vshll.u32 %v726, 16
        %v887 = vor.u32 %v884, %v885
        %v888 = vrot.slane %v884, 4
        %v890 = vshrl.u32 %v727, 16
        %v892 = vrot.slane %v890, 7
        %v893 = vshll.u32 %v727, 16
        %v895 = vor.u32 %v892, %v893
        %v896 = vsel %vm744, %v888, %v895
        %v897 = vrot.slane %v892, 4
        %v899 = vshrl.u32 %v728, 16
        %v901 = vrot.slane %v899, 7
        %v902 = vshll.u32 %v728, 16
        %v904 = vor.u32 %v901, %v902
        %v905 = vrot.slane %v901, 4
        %v907 = vshrl.u32 %v729, 16
        %v909 = vrot.slane %v907, 7
        %v910 = vshll.u32 %v729, 16
        %v912 = vor.u32 %v909, %v910
        %v913 = vsel %vm744, %v905, %v912
        %v914 = vrot.slane %v909, 4
        %v916 = vshrl.u32 %v730, 16
        %v918 = vrot.slane %v916, 7
        %v919 = vshll.u32 %v730, 16
        %v921 = vor.u32 %v918, %v919
        %v922 = vrot.slane %v918, 4
        %v924 = vshrl.u32 %v731, 16
        %v926 = vrot.slane %v924, 7
        %v927 = vshll.u32 %v731, 16
        %v929 = vor.u32 %v926, %v927
        %v930 = vsel %vm744, %v922, %v929
        %v931 = vrot.slane %v926, 4
        %v933 = vshrl.u32 %v732, 16
        %v935 = vrot.slane %v933, 7
        %v936 = vshll.u32 %v732, 16
        %v938 = vor.u32 %v935, %v936
        %v939 = vrot.slane %v935, 4
        %v941 = vshrl.u32 %v733, 16
        %v943 = vrot.slane %v941, 7
        %v944 = vshll.u32 %v733, 16
        %v946 = vor.u32 %v943, %v944
        %v947 = vsel %vm744, %v939, %v946
        %v948 = vrot.slane %v943, 4
        %v950 = vshrl.u32 %v734, 16
        %v952 = vrot.slane %v950, 7
        %v953 = vshll.u32 %v734, 16
        %v955 = vor.u32 %v952, %v953
        %v956 = vrot.slane %v952, 4
        %v958 = vshrl.u32 %v735, 16
        %v960 = vrot.slane %v958, 7
        %v961 = vshll.u32 %v735, 16
        %v963 = vor.u32 %v960, %v961
        %v964 = vsel %vm744, %v956, %v963
        %v965 = vrot.slane %v960, 4
        %v967 = vshrl.u32 %v736, 16
        %v969 = vrot.slane %v967, 7
        %v970 = vshll.u32 %v736, 16
        %v972 = vor.u32 %v969, %v970
        %v973 = vrot.slane %v969, 4
        %v975 = vshrl.u32 %v737, 16
        %v977 = vrot.slane %v975, 7
        %v978 = vshll.u32 %v737, 16
        %v980 = vor.u32 %v977, %v978
        %v981 = vsel %vm744, %v973, %v980
        %v982 = vrot.slane %v977, 4
        %v984 = vshrl.u32 %v738, 16
        %v986 = vrot.slane %v984, 7
        %v987 = vshll.u32 %v738, 16
        %v989 = vor.u32 %v986, %v987
        %v990 = vrot.slane %v986, 4
        %v992 = vshrl.u32 %v739, 16
        %v994 = vrot.slane %v992, 7
        %v995 = vshll.u32 %v739, 16
        %v997 = vor.u32 %v994, %v995
        %v998 = vsel %vm744, %v990, %v997
        %v999 = vrot.slane %v994, 4
        %v1001 = vshrl.u32 %v740, 16
        %v1003 = vrot.slane %v1001, 7
        %v1004 = vshll.u32 %v740, 16
        %v1006 = vor.u32 %v1003, %v1004
        %v1007 = vrot.slane %v1003, 4
        %v1009 = vshrl.u32 %v741, 16
        %v1011 = vrot.slane %v1009, 7
        %v1012 = vshll.u32 %v741, 16
        %v1014 = vor.u32 %v1011, %v1012
        %v1015 = vsel %vm744, %v1007, %v1014
        %v1016 = vrot.slane %v1011, 4
        %s1065 = scalar_lea.vmem [#allocation2], 12
        %vm1066 = vcmask 257024
        %vm1067 = vsmask.f32 7938
        %vm1068 = vmand %vm1066, %vm1067
        %v1069 = vld [vmem:[%s1065] sm:$0xf]
        %v1070 = vsel %vm1068, %v751, %v1069
        %1071 = vst [vmem:[%s1065] sm:$0xf] %v1070
        %1072 = vst.msk [vmem:[%s1065 + $0x4] sm:$0xf] %vm590, %v760
        %vm1073 = vcmask 253952
        %vm1074 = vmand %vm1073, %vm742
        %v1075 = vld [vmem:[%s1065 + $0x8] sm:$0x1]
        %v1076 = vsel %vm1074, %v761, %v1075
        %1077 = vst [vmem:[%s1065 + $0x8] sm:$0x1] %v1076
        %v1078 = vld [vmem:[%s1065 + $0xc] sm:$0xf]
        %v1079 = vsel %vm1068, %v768, %v1078
        %1080 = vst [vmem:[%s1065 + $0xc] sm:$0xf] %v1079
        %1081 = vst.msk [vmem:[%s1065 + $0x10] sm:$0xf] %vm590, %v777
        %v1082 = vld [vmem:[%s1065 + $0x14] sm:$0x1]
        %v1083 = vsel %vm1074, %v778, %v1082
        %1084 = vst [vmem:[%s1065 + $0x14] sm:$0x1] %v1083
        %v1085 = vld [vmem:[%s1065 + $0x18] sm:$0xf]
        %v1086 = vsel %vm1068, %v785, %v1085
        %1087 = vst [vmem:[%s1065 + $0x18] sm:$0xf] %v1086
        %1088 = vst.msk [vmem:[%s1065 + $0x1c] sm:$0xf] %vm590, %v794
        %v1089 = vld [vmem:[%s1065 + $0x20] sm:$0x1]
        %v1090 = vsel %vm1074, %v795, %v1089
        %1091 = vst [vmem:[%s1065 + $0x20] sm:$0x1] %v1090
        %v1092 = vld [vmem:[%s1065 + $0x24] sm:$0xf]
        %v1093 = vsel %vm1068, %v802, %v1092
        %1094 = vst [vmem:[%s1065 + $0x24] sm:$0xf] %v1093
        %1095 = vst.msk [vmem:[%s1065 + $0x28] sm:$0xf] %vm590, %v811
        %v1096 = vld [vmem:[%s1065 + $0x2c] sm:$0x1]
        %v1097 = vsel %vm1074, %v812, %v1096
        %1098 = vst [vmem:[%s1065 + $0x2c] sm:$0x1] %v1097
        %v1099 = vld [vmem:[%s1065 + $0x30] sm:$0xf]
        %v1100 = vsel %vm1068, %v819, %v1099
        %1101 = vst [vmem:[%s1065 + $0x30] sm:$0xf] %v1100
        %1102 = vst.msk [vmem:[%s1065 + $0x34] sm:$0xf] %vm590, %v828
        %v1103 = vld [vmem:[%s1065 + $0x38] sm:$0x1]
        %v1104 = vsel %vm1074, %v829, %v1103
        %1105 = vst [vmem:[%s1065 + $0x38] sm:$0x1] %v1104
        %v1106 = vld [vmem:[%s1065 + $0x3c] sm:$0xf]
        %v1107 = vsel %vm1068, %v836, %v1106
        %1108 = vst [vmem:[%s1065 + $0x3c] sm:$0xf] %v1107
        %1109 = vst.msk [vmem:[%s1065 + $0x40] sm:$0xf] %vm590, %v845
        %v1110 = vld [vmem:[%s1065 + $0x44] sm:$0x1]
        %v1111 = vsel %vm1074, %v846, %v1110
        %1112 = vst [vmem:[%s1065 + $0x44] sm:$0x1] %v1111
        %v1113 = vld [vmem:[%s1065 + $0x48] sm:$0xf]
        %v1114 = vsel %vm1068, %v853, %v1113
        %1115 = vst [vmem:[%s1065 + $0x48] sm:$0xf] %v1114
        %1116 = vst.msk [vmem:[%s1065 + $0x4c] sm:$0xf] %vm590, %v862
        %v1117 = vld [vmem:[%s1065 + $0x50] sm:$0x1]
        %v1118 = vsel %vm1074, %v863, %v1117
        %1119 = vst [vmem:[%s1065 + $0x50] sm:$0x1] %v1118
        %v1120 = vld [vmem:[%s1065 + $0x54] sm:$0xf]
        %v1121 = vsel %vm1068, %v870, %v1120
        %1122 = vst [vmem:[%s1065 + $0x54] sm:$0xf] %v1121
        %1123 = vst.msk [vmem:[%s1065 + $0x58] sm:$0xf] %vm590, %v879
        %v1124 = vld [vmem:[%s1065 + $0x5c] sm:$0x1]
        %v1125 = vsel %vm1074, %v880, %v1124
        %1126 = vst [vmem:[%s1065 + $0x5c] sm:$0x1] %v1125
        %v1127 = vld [vmem:[%s1065 + $0x60] sm:$0xf]
        %v1128 = vsel %vm1068, %v887, %v1127
        %1129 = vst [vmem:[%s1065 + $0x60] sm:$0xf] %v1128
        %1130 = vst.msk [vmem:[%s1065 + $0x64] sm:$0xf] %vm590, %v896
        %v1131 = vld [vmem:[%s1065 + $0x68] sm:$0x1]
        %v1132 = vsel %vm1074, %v897, %v1131
        %1133 = vst [vmem:[%s1065 + $0x68] sm:$0x1] %v1132
        %v1134 = vld [vmem:[%s1065 + $0x6c] sm:$0xf]
        %v1135 = vsel %vm1068, %v904, %v1134
        %1136 = vst [vmem:[%s1065 + $0x6c] sm:$0xf] %v1135
        %1137 = vst.msk [vmem:[%s1065 + $0x70] sm:$0xf] %vm590, %v913
        %v1138 = vld [vmem:[%s1065 + $0x74] sm:$0x1]
        %v1139 = vsel %vm1074, %v914, %v1138
        %1140 = vst [vmem:[%s1065 + $0x74] sm:$0x1] %v1139
        %v1141 = vld [vmem:[%s1065 + $0x78] sm:$0xf]
        %v1142 = vsel %vm1068, %v921, %v1141
        %1143 = vst [vmem:[%s1065 + $0x78] sm:$0xf] %v1142
        %1144 = vst.msk [vmem:[%s1065 + $0x7c] sm:$0xf] %vm590, %v930
        %v1145 = vld [vmem:[%s1065 + $0x80] sm:$0x1]
        %v1146 = vsel %vm1074, %v931, %v1145
        %1147 = vst [vmem:[%s1065 + $0x80] sm:$0x1] %v1146
        %v1148 = vld [vmem:[%s1065 + $0x84] sm:$0xf]
        %v1149 = vsel %vm1068, %v938, %v1148
        %1150 = vst [vmem:[%s1065 + $0x84] sm:$0xf] %v1149
        %1151 = vst.msk [vmem:[%s1065 + $0x88] sm:$0xf] %vm590, %v947
        %v1152 = vld [vmem:[%s1065 + $0x8c] sm:$0x1]
        %v1153 = vsel %vm1074, %v948, %v1152
        %1154 = vst [vmem:[%s1065 + $0x8c] sm:$0x1] %v1153
        %v1155 = vld [vmem:[%s1065 + $0x90] sm:$0xf]
        %v1156 = vsel %vm1068, %v955, %v1155
        %1157 = vst [vmem:[%s1065 + $0x90] sm:$0xf] %v1156
        %1158 = vst.msk [vmem:[%s1065 + $0x94] sm:$0xf] %vm590, %v964
        %v1159 = vld [vmem:[%s1065 + $0x98] sm:$0x1]
        %v1160 = vsel %vm1074, %v965, %v1159
        %1161 = vst [vmem:[%s1065 + $0x98] sm:$0x1] %v1160
        %v1162 = vld [vmem:[%s1065 + $0x9c] sm:$0xf]
        %v1163 = vsel %vm1068, %v972, %v1162
        %1164 = vst [vmem:[%s1065 + $0x9c] sm:$0xf] %v1163
        %1165 = vst.msk [vmem:[%s1065 + $0xa0] sm:$0xf] %vm590, %v981
        %v1166 = vld [vmem:[%s1065 + $0xa4] sm:$0x1]
        %v1167 = vsel %vm1074, %v982, %v1166
        %1168 = vst [vmem:[%s1065 + $0xa4] sm:$0x1] %v1167
        %v1169 = vld [vmem:[%s1065 + $0xa8] sm:$0xf]
        %v1170 = vsel %vm1068, %v989, %v1169
        %1171 = vst [vmem:[%s1065 + $0xa8] sm:$0xf] %v1170
        %1172 = vst.msk [vmem:[%s1065 + $0xac] sm:$0xf] %vm590, %v998
        %v1173 = vld [vmem:[%s1065 + $0xb0] sm:$0x1]
        %v1174 = vsel %vm1074, %v999, %v1173
        %1175 = vst [vmem:[%s1065 + $0xb0] sm:$0x1] %v1174
        %v1176 = vld [vmem:[%s1065 + $0xb4] sm:$0xf]
        %v1177 = vsel %vm1068, %v1006, %v1176
        %1178 = vst [vmem:[%s1065 + $0xb4] sm:$0xf] %v1177
        %1179 = vst.msk [vmem:[%s1065 + $0xb8] sm:$0xf] %vm590, %v1015
        %v1180 = vld [vmem:[%s1065 + $0xbc] sm:$0x1]
        %v1181 = vsel %vm1074, %v1016, %v1180
        %1182 = vst [vmem:[%s1065 + $0xbc] sm:$0x1] %v1181
        %v1183 = vld [vmem:[#allocation2] sm:$0xf]
        %v1184 = vld [vmem:[#allocation2 + $0x4] sm:$0xf]
        %v1185 = vld [vmem:[#allocation2 + $0xc] sm:$0xf]
        %v1186 = vld [vmem:[#allocation2 + $0x10] sm:$0xf]
        %v1187 = vld [vmem:[#allocation2 + $0x18] sm:$0xf]
        %v1188 = vld [vmem:[#allocation2 + $0x1c] sm:$0xf]
        %v1189 = vld [vmem:[#allocation2 + $0x24] sm:$0xf]
        %v1190 = vld [vmem:[#allocation2 + $0x28] sm:$0xf]
        %v1191 = vld [vmem:[#allocation2 + $0x30] sm:$0xf]
        %v1192 = vld [vmem:[#allocation2 + $0x34] sm:$0xf]
        %v1193 = vld [vmem:[#allocation2 + $0x3c] sm:$0xf]
        %v1194 = vld [vmem:[#allocation2 + $0x40] sm:$0xf]
        %v1195 = vld [vmem:[#allocation2 + $0x48] sm:$0xf]
        %v1196 = vld [vmem:[#allocation2 + $0x4c] sm:$0xf]
        %v1197 = vld [vmem:[#allocation2 + $0x54] sm:$0xf]
        %v1198 = vld [vmem:[#allocation2 + $0x58] sm:$0xf]
        %v1199 = vld [vmem:[#allocation2 + $0x60] sm:$0xf]
        %v1200 = vld [vmem:[#allocation2 + $0x64] sm:$0xf]
        %v1201 = vld [vmem:[#allocation2 + $0x6c] sm:$0xf]
        %v1202 = vld [vmem:[#allocation2 + $0x70] sm:$0xf]
        %v1203 = vld [vmem:[#allocation2 + $0x78] sm:$0xf]
        %v1204 = vld [vmem:[#allocation2 + $0x7c] sm:$0xf]
        %v1205 = vld [vmem:[#allocation2 + $0x84] sm:$0xf]
        %v1206 = vld [vmem:[#allocation2 + $0x88] sm:$0xf]
        %v1207 = vld [vmem:[#allocation2 + $0x90] sm:$0xf]
        %v1208 = vld [vmem:[#allocation2 + $0x94] sm:$0xf]
        %v1209 = vld [vmem:[#allocation2 + $0x9c] sm:$0xf]
        %v1210 = vld [vmem:[#allocation2 + $0xa0] sm:$0xf]
        %v1211 = vld [vmem:[#allocation2 + $0xa8] sm:$0xf]
        %v1212 = vld [vmem:[#allocation2 + $0xac] sm:$0xf]
        %v1213 = vld [vmem:[#allocation2 + $0xb4] sm:$0xf]
        %v1214 = vld [vmem:[#allocation2 + $0xb8] sm:$0xf]
        %v1215 = vld [vmem:[%s3] sm:$0xf]
        %v1216 = vld [vmem:[%s3 + $0x4] sm:$0xf]
        %v1217 = vld [vmem:[%s3 + $0x8] sm:$0xf]
        %v1218 = vld [vmem:[%s3 + $0xc] sm:$0xf]
        %v1219 = vld [vmem:[#allocation2 + $0x8] sm:$0x1]
        %v1220 = vld [vmem:[#allocation2 + $0x14] sm:$0x1]
        %v1221 = vld [vmem:[#allocation2 + $0x20] sm:$0x1]
        %v1222 = vld [vmem:[#allocation2 + $0x2c] sm:$0x1]
        %v1223 = vld [vmem:[#allocation2 + $0x38] sm:$0x1]
        %v1224 = vld [vmem:[#allocation2 + $0x44] sm:$0x1]
        %v1225 = vld [vmem:[#allocation2 + $0x50] sm:$0x1]
        %v1226 = vld [vmem:[#allocation2 + $0x5c] sm:$0x1]
        %v1227 = vld [vmem:[#allocation2 + $0x68] sm:$0x1]
        %v1228 = vld [vmem:[#allocation2 + $0x74] sm:$0x1]
        %v1229 = vld [vmem:[#allocation2 + $0x80] sm:$0x1]
        %v1230 = vld [vmem:[#allocation2 + $0x8c] sm:$0x1]
        %v1231 = vld [vmem:[#allocation2 + $0x98] sm:$0x1]
        %v1232 = vld [vmem:[#allocation2 + $0xa4] sm:$0x1]
        %v1233 = vld [vmem:[#allocation2 + $0xb0] sm:$0x1]
        %v1234 = vld [vmem:[#allocation2 + $0xbc] sm:$0x1]
        %vm1235 = vsmask.f32 3328
        %vm1236 = vsmask.f32 7440
        %vm1237 = vmor %vm1235, %vm1236
        %v1239 = vshrl.u32 %v1183, 16
        %v1241 = vrot.slane %v1239, 4
        %v1242 = vshll.u32 %v1183, 16
        %v1244 = vrot.slane %v1242, 5
        %v1245 = vor.u32 %v1241, %v1244
        %v1246 = vrot.slane %v1245, 4
        %v1248 = vshll.u32 %v1184, 16
        %v1250 = vrot.slane %v1248, 5
        %v1251 = vsel %vm1237, %v1246, %v1250
        %v1252 = vshrl.u32 %v1184, 16
        %v1254 = vrot.slane %v1252, 4
        %v1255 = vor.u32 %v1254, %v1250
        %v1256 = vrot.slane %v1255, 4
        %v1258 = vshll.u32 %v1219, 16
        %v1260 = vrot.slane %v1258, 5
        %v1261 = vsel %vm1237, %v1256, %v1260
        %v1263 = vshrl.u32 %v1185, 16
        %v1265 = vrot.slane %v1263, 4
        %v1266 = vshll.u32 %v1185, 16
        %v1268 = vrot.slane %v1266, 5
        %v1269 = vor.u32 %v1265, %v1268
        %v1270 = vrot.slane %v1269, 4
        %v1272 = vshll.u32 %v1186, 16
        %v1274 = vrot.slane %v1272, 5
        %v1275 = vsel %vm1237, %v1270, %v1274
        %v1276 = vshrl.u32 %v1186, 16
        %v1278 = vrot.slane %v1276, 4
        %v1279 = vor.u32 %v1278, %v1274
        %v1280 = vrot.slane %v1279, 4
        %v1282 = vshll.u32 %v1220, 16
        %v1284 = vrot.slane %v1282, 5
        %v1285 = vsel %vm1237, %v1280, %v1284
        %v1287 = vshrl.u32 %v1187, 16
        %v1289 = vrot.slane %v1287, 4
        %v1290 = vshll.u32 %v1187, 16
        %v1292 = vrot.slane %v1290, 5
        %v1293 = vor.u32 %v1289, %v1292
        %v1294 = vrot.slane %v1293, 4
        %v1296 = vshll.u32 %v1188, 16
        %v1298 = vrot.slane %v1296, 5
        %v1299 = vsel %vm1237, %v1294, %v1298
        %v1300 = vshrl.u32 %v1188, 16
        %v1302 = vrot.slane %v1300, 4
        %v1303 = vor.u32 %v1302, %v1298
        %v1304 = vrot.slane %v1303, 4
        %v1306 = vshll.u32 %v1221, 16
        %v1308 = vrot.slane %v1306, 5
        %v1309 = vsel %vm1237, %v1304, %v1308
        %v1311 = vshrl.u32 %v1189, 16
        %v1313 = vrot.slane %v1311, 4
        %v1314 = vshll.u32 %v1189, 16
        %v1316 = vrot.slane %v1314, 5
        %v1317 = vor.u32 %v1313, %v1316
        %v1318 = vrot.slane %v1317, 4
        %v1320 = vshll.u32 %v1190, 16
        %v1322 = vrot.slane %v1320, 5
        %v1323 = vsel %vm1237, %v1318, %v1322
        %v1324 = vshrl.u32 %v1190, 16
        %v1326 = vrot.slane %v1324, 4
        %v1327 = vor.u32 %v1326, %v1322
        %v1328 = vrot.slane %v1327, 4
        %v1330 = vshll.u32 %v1222, 16
        %v1332 = vrot.slane %v1330, 5
        %v1333 = vsel %vm1237, %v1328, %v1332
        %v1335 = vshrl.u32 %v1191, 16
        %v1337 = vrot.slane %v1335, 4
        %v1338 = vshll.u32 %v1191, 16
        %v1340 = vrot.slane %v1338, 5
        %v1341 = vor.u32 %v1337, %v1340
        %v1342 = vrot.slane %v1341, 4
        %v1344 = vshll.u32 %v1192, 16
        %v1346 = vrot.slane %v1344, 5
        %v1347 = vsel %vm1237, %v1342, %v1346
        %v1348 = vshrl.u32 %v1192, 16
        %v1350 = vrot.slane %v1348, 4
        %v1351 = vor.u32 %v1350, %v1346
        %v1352 = vrot.slane %v1351, 4
        %v1354 = vshll.u32 %v1223, 16
        %v1356 = vrot.slane %v1354, 5
        %v1357 = vsel %vm1237, %v1352, %v1356
        %v1359 = vshrl.u32 %v1193, 16
        %v1361 = vrot.slane %v1359, 4
        %v1362 = vshll.u32 %v1193, 16
        %v1364 = vrot.slane %v1362, 5
        %v1365 = vor.u32 %v1361, %v1364
        %v1366 = vrot.slane %v1365, 4
        %v1368 = vshll.u32 %v1194, 16
        %v1370 = vrot.slane %v1368, 5
        %v1371 = vsel %vm1237, %v1366, %v1370
        %v1372 = vshrl.u32 %v1194, 16
        %v1374 = vrot.slane %v1372, 4
        %v1375 = vor.u32 %v1374, %v1370
        %v1376 = vrot.slane %v1375, 4
        %v1378 = vshll.u32 %v1224, 16
        %v1380 = vrot.slane %v1378, 5
        %v1381 = vsel %vm1237, %v1376, %v1380
        %v1383 = vshrl.u32 %v1195, 16
        %v1385 = vrot.slane %v1383, 4
        %v1386 = vshll.u32 %v1195, 16
        %v1388 = vrot.slane %v1386, 5
        %v1389 = vor.u32 %v1385, %v1388
        %v1390 = vrot.slane %v1389, 4
        %v1392 = vshll.u32 %v1196, 16
        %v1394 = vrot.slane %v1392, 5
        %v1395 = vsel %vm1237, %v1390, %v1394
        %v1396 = vshrl.u32 %v1196, 16
        %v1398 = vrot.slane %v1396, 4
        %v1399 = vor.u32 %v1398, %v1394
        %v1400 = vrot.slane %v1399, 4
        %v1402 = vshll.u32 %v1225, 16
        %v1404 = vrot.slane %v1402, 5
        %v1405 = vsel %vm1237, %v1400, %v1404
        %v1407 = vshrl.u32 %v1197, 16
        %v1409 = vrot.slane %v1407, 4
        %v1410 = vshll.u32 %v1197, 16
        %v1412 = vrot.slane %v1410, 5
        %v1413 = vor.u32 %v1409, %v1412
        %v1414 = vrot.slane %v1413, 4
        %v1416 = vshll.u32 %v1198, 16
        %v1418 = vrot.slane %v1416, 5
        %v1419 = vsel %vm1237, %v1414, %v1418
        %v1420 = vshrl.u32 %v1198, 16
        %v1422 = vrot.slane %v1420, 4
        %v1423 = vor.u32 %v1422, %v1418
        %v1424 = vrot.slane %v1423, 4
        %v1426 = vshll.u32 %v1226, 16
        %v1428 = vrot.slane %v1426, 5
        %v1429 = vsel %vm1237, %v1424, %v1428
        %v1431 = vshrl.u32 %v1199, 16
        %v1433 = vrot.slane %v1431, 4
        %v1434 = vshll.u32 %v1199, 16
        %v1436 = vrot.slane %v1434, 5
        %v1437 = vor.u32 %v1433, %v1436
        %v1438 = vrot.slane %v1437, 4
        %v1440 = vshll.u32 %v1200, 16
        %v1442 = vrot.slane %v1440, 5
        %v1443 = vsel %vm1237, %v1438, %v1442
        %v1444 = vshrl.u32 %v1200, 16
        %v1446 = vrot.slane %v1444, 4
        %v1447 = vor.u32 %v1446, %v1442
        %v1448 = vrot.slane %v1447, 4
        %v1450 = vshll.u32 %v1227, 16
        %v1452 = vrot.slane %v1450, 5
        %v1453 = vsel %vm1237, %v1448, %v1452
        %v1455 = vshrl.u32 %v1201, 16
        %v1457 = vrot.slane %v1455, 4
        %v1458 = vshll.u32 %v1201, 16
        %v1460 = vrot.slane %v1458, 5
        %v1461 = vor.u32 %v1457, %v1460
        %v1462 = vrot.slane %v1461, 4
        %v1464 = vshll.u32 %v1202, 16
        %v1466 = vrot.slane %v1464, 5
        %v1467 = vsel %vm1237, %v1462, %v1466
        %v1468 = vshrl.u32 %v1202, 16
        %v1470 = vrot.slane %v1468, 4
        %v1471 = vor.u32 %v1470, %v1466
        %v1472 = vrot.slane %v1471, 4
        %v1474 = vshll.u32 %v1228, 16
        %v1476 = vrot.slane %v1474, 5
        %v1477 = vsel %vm1237, %v1472, %v1476
        %v1479 = vshrl.u32 %v1203, 16
        %v1481 = vrot.slane %v1479, 4
        %v1482 = vshll.u32 %v1203, 16
        %v1484 = vrot.slane %v1482, 5
        %v1485 = vor.u32 %v1481, %v1484
        %v1486 = vrot.slane %v1485, 4
        %v1488 = vshll.u32 %v1204, 16
        %v1490 = vrot.slane %v1488, 5
        %v1491 = vsel %vm1237, %v1486, %v1490
        %v1492 = vshrl.u32 %v1204, 16
        %v1494 = vrot.slane %v1492, 4
        %v1495 = vor.u32 %v1494, %v1490
        %v1496 = vrot.slane %v1495, 4
        %v1498 = vshll.u32 %v1229, 16
        %v1500 = vrot.slane %v1498, 5
        %v1501 = vsel %vm1237, %v1496, %v1500
        %v1503 = vshrl.u32 %v1205, 16
        %v1505 = vrot.slane %v1503, 4
        %v1506 = vshll.u32 %v1205, 16
        %v1508 = vrot.slane %v1506, 5
        %v1509 = vor.u32 %v1505, %v1508
        %v1510 = vrot.slane %v1509, 4
        %v1512 = vshll.u32 %v1206, 16
        %v1514 = vrot.slane %v1512, 5
        %v1515 = vsel %vm1237, %v1510, %v1514
        %v1516 = vshrl.u32 %v1206, 16
        %v1518 = vrot.slane %v1516, 4
        %v1519 = vor.u32 %v1518, %v1514
        %v1520 = vrot.slane %v1519, 4
        %v1522 = vshll.u32 %v1230, 16
        %v1524 = vrot.slane %v1522, 5
        %v1525 = vsel %vm1237, %v1520, %v1524
        %v1527 = vshrl.u32 %v1207, 16
        %v1529 = vrot.slane %v1527, 4
        %v1530 = vshll.u32 %v1207, 16
        %v1532 = vrot.slane %v1530, 5
        %v1533 = vor.u32 %v1529, %v1532
        %v1534 = vrot.slane %v1533, 4
        %v1536 = vshll.u32 %v1208, 16
        %v1538 = vrot.slane %v1536, 5
        %v1539 = vsel %vm1237, %v1534, %v1538
        %v1540 = vshrl.u32 %v1208, 16
        %v1542 = vrot.slane %v1540, 4
        %v1543 = vor.u32 %v1542, %v1538
        %v1544 = vrot.slane %v1543, 4
        %v1546 = vshll.u32 %v1231, 16
        %v1548 = vrot.slane %v1546, 5
        %v1549 = vsel %vm1237, %v1544, %v1548
        %v1551 = vshrl.u32 %v1209, 16
        %v1553 = vrot.slane %v1551, 4
        %v1554 = vshll.u32 %v1209, 16
        %v1556 = vrot.slane %v1554, 5
        %v1557 = vor.u32 %v1553, %v1556
        %v1558 = vrot.slane %v1557, 4
        %v1560 = vshll.u32 %v1210, 16
        %v1562 = vrot.slane %v1560, 5
        %v1563 = vsel %vm1237, %v1558, %v1562
        %v1564 = vshrl.u32 %v1210, 16
        %v1566 = vrot.slane %v1564, 4
        %v1567 = vor.u32 %v1566, %v1562
        %v1568 = vrot.slane %v1567, 4
        %v1570 = vshll.u32 %v1232, 16
        %v1572 = vrot.slane %v1570, 5
        %v1573 = vsel %vm1237, %v1568, %v1572
        %v1575 = vshrl.u32 %v1211, 16
        %v1577 = vrot.slane %v1575, 4
        %v1578 = vshll.u32 %v1211, 16
        %v1580 = vrot.slane %v1578, 5
        %v1581 = vor.u32 %v1577, %v1580
        %v1582 = vrot.slane %v1581, 4
        %v1584 = vshll.u32 %v1212, 16
        %v1586 = vrot.slane %v1584, 5
        %v1587 = vsel %vm1237, %v1582, %v1586
        %v1588 = vshrl.u32 %v1212, 16
        %v1590 = vrot.slane %v1588, 4
        %v1591 = vor.u32 %v1590, %v1586
        %v1592 = vrot.slane %v1591, 4
        %v1594 = vshll.u32 %v1233, 16
        %v1596 = vrot.slane %v1594, 5
        %v1597 = vsel %vm1237, %v1592, %v1596
        %v1599 = vshrl.u32 %v1213, 16
        %v1601 = vrot.slane %v1599, 4
        %v1602 = vshll.u32 %v1213, 16
        %v1604 = vrot.slane %v1602, 5
        %v1605 = vor.u32 %v1601, %v1604
        %v1606 = vrot.slane %v1605, 4
        %v1608 = vshll.u32 %v1214, 16
        %v1610 = vrot.slane %v1608, 5
        %v1611 = vsel %vm1237, %v1606, %v1610
        %v1612 = vshrl.u32 %v1214, 16
        %v1614 = vrot.slane %v1612, 4
        %v1615 = vor.u32 %v1614, %v1610
        %v1616 = vrot.slane %v1615, 4
        %v1618 = vshll.u32 %v1234, 16
        %v1620 = vrot.slane %v1618, 5
        %v1621 = vsel %vm1237, %v1616, %v1620
        %s1622 = scalar_lea.vmem %s3, 16
        %v1623 = vld [vmem:[%s1622] sm:$0xf]
        %v1624 = vld [vmem:[%s1622 + $0x4] sm:$0xf]
        %v1625 = vld [vmem:[%s1622 + $0x8] sm:$0xf]
        %v1626 = vld [vmem:[%s1622 + $0xc] sm:$0xf]
        %v1627 = vunpack.c.l.b16 %v1251
        %v1628 = vunpack.c.l.b16 %v1261
        %v1629 = vunpack.c.l.b16 %v1275
        %v1630 = vunpack.c.l.b16 %v1285
        %v1631 = vunpack.c.l.b16 %v1299
        %v1632 = vunpack.c.l.b16 %v1309
        %v1633 = vunpack.c.l.b16 %v1323
        %v1634 = vunpack.c.l.b16 %v1333
        %v1635 = vunpack.c.l.b16 %v1347
        %v1636 = vunpack.c.l.b16 %v1357
        %v1637 = vunpack.c.l.b16 %v1371
        %v1638 = vunpack.c.l.b16 %v1381
        %v1639 = vunpack.c.l.b16 %v1395
        %v1640 = vunpack.c.l.b16 %v1405
        %v1641 = vunpack.c.l.b16 %v1419
        %v1642 = vunpack.c.l.b16 %v1429
        %v1643 = vunpack.c.l.b16 %v1443
        %v1644 = vunpack.c.l.b16 %v1453
        %v1645 = vunpack.c.l.b16 %v1467
        %v1646 = vunpack.c.l.b16 %v1477
        %v1647 = vunpack.c.l.b16 %v1491
        %v1648 = vunpack.c.l.b16 %v1501
        %v1649 = vunpack.c.l.b16 %v1515
        %v1650 = vunpack.c.l.b16 %v1525
        %v1651 = vunpack.c.l.b16 %v1539
        %v1652 = vunpack.c.l.b16 %v1549
        %v1653 = vunpack.c.l.b16 %v1563
        %v1654 = vunpack.c.l.b16 %v1573
        %v1655 = vunpack.c.l.b16 %v1587
        %v1656 = vunpack.c.l.b16 %v1597
        %v1657 = vunpack.c.l.b16 %v1611
        %v1658 = vunpack.c.l.b16 %v1621
        %v1659 = vpack.c.b16 %v1628, %v1627
        %v1660 = vpack.c.b16 %v1630, %v1629
        %v1661 = vpack.c.b16 %v1632, %v1631
        %v1662 = vpack.c.b16 %v1634, %v1633
        %v1663 = vpack.c.b16 %v1636, %v1635
        %v1664 = vpack.c.b16 %v1638, %v1637
        %v1665 = vpack.c.b16 %v1640, %v1639
        %v1666 = vpack.c.b16 %v1642, %v1641
        %v1667 = vpack.c.b16 %v1644, %v1643
        %v1668 = vpack.c.b16 %v1646, %v1645
        %v1669 = vpack.c.b16 %v1648, %v1647
        %v1670 = vpack.c.b16 %v1650, %v1649
        %v1671 = vpack.c.b16 %v1652, %v1651
        %v1672 = vpack.c.b16 %v1654, %v1653
        %v1673 = vpack.c.b16 %v1656, %v1655
        %v1674 = vpack.c.b16 %v1658, %v1657
        %v1679 = vunpack.c.l.b16 %v1623
        %v1680 = vunpack.c.l.b16 %v1624
        %v1681 = vunpack.c.l.b16 %v1625
        %v1682 = vunpack.c.l.b16 %v1626
        %v1683 = vpack.c.b16 %v1680, %v1679
        %v1684 = vpack.c.b16 %v1682, %v1681
        %vm1687 = vcmask 261120
        %v1689 = vsel %vm1687, %v1659, 0
        %v1692 = vsel %vm1687, %v1660, 0
        %v1695 = vsel %vm1687, %v1661, 0
        %v1698 = vsel %vm1687, %v1662, 0
        %v1701 = vsel %vm1687, %v1663, 0
        %v1704 = vsel %vm1687, %v1664, 0
        %v1707 = vsel %vm1687, %v1665, 0
        %v1710 = vsel %vm1687, %v1666, 0
        %v1713 = vsel %vm1687, %v1667, 0
        %v1716 = vsel %vm1687, %v1668, 0
        %v1719 = vsel %vm1687, %v1669, 0
        %v1722 = vsel %vm1687, %v1670, 0
        %v1725 = vsel %vm1687, %v1671, 0
        %v1728 = vsel %vm1687, %v1672, 0
        %v1731 = vsel %vm1687, %v1673, 0
        %v1734 = vsel %vm1687, %v1674, 0
        %1736 = vmatprep.subr.bf16.mxu0 0
        %1737 = vmatpush1.bf16.msra.mxu0 0
        %1738 = vmatprep.subr.bf16.mxu0 0
        %1739 = vmatpush1.bf16.msra.mxu0 0
        %1740 = vmatprep.subr.bf16.mxu0 0
        %1741 = vmatpush1.bf16.msra.mxu0 0
        %1742 = vmatprep.subr.bf16.mxu0 0
        %1743 = vmatpush1.bf16.msra.mxu0 0
        %1744 = vmatprep.subr.bf16.mxu0 0
        %1745 = vmatpush1.bf16.msra.mxu0 0
        %1746 = vmatprep.subr.bf16.mxu0 0
        %1747 = vmatpush1.bf16.msra.mxu0 0
        %1748 = vmatprep.subr.bf16.mxu0 0
        %1749 = vmatpush1.bf16.msra.mxu0 %v1684
        %1750 = vmatprep.subr.bf16.mxu0 0
        %1751 = vmatpush1.bf16.msra.mxu0 %v1683
        %1752 = vmatprep.subr.bf16.mxu0 0
        %1753 = vmatpush2.bf16.msra.mxu0 0
        %1754 = vmatprep.subr.bf16.mxu0 0
        %1755 = vmatpush2.bf16.msra.mxu0 0
        %1756 = vmatprep.subr.bf16.mxu0 0
        %1757 = vmatpush2.bf16.msra.mxu0 0
        %1758 = vmatprep.subr.bf16.mxu0 0
        %1759 = vmatpush2.bf16.msra.mxu0 0
        %1760 = vmatprep.subr.bf16.mxu0 0
        %1761 = vmatpush2.bf16.msra.mxu0 0
        %1762 = vmatprep.subr.bf16.mxu0 0
        %1763 = vmatpush2.bf16.msra.mxu0 0
        %1764 = vmatprep.subr.bf16.mxu0 0
        %1765 = vmatpush2.bf16.msra.mxu0 0
        %1766 = vmatprep.subr.bf16.mxu0 0
        %1767 = vmatpush2.bf16.msra.mxu0 0
        %1768 = vmatprep.mubr.bf16.mxu0 0
        %1769 = vmatmul.mubr.bf16.gmra.mxu0 %v1689
        %v1770 = vpop.f32.mrf.mxu0
        %v1771 = vadd.f32 0.0, %v1770
        %v1772 = vpop.f32.mrf.mxu0
        %v1773 = vpop.f32.mrf.mxu0
        %v1774 = vadd.f32 0.0, %v1773
        %v1775 = vpop.f32.mrf.mxu0
        %1776 = vmatprep.mubr.bf16.mxu0 0
        %1777 = vmatmul.mubr.bf16.gmra.mxu0 %v1692
        %v1778 = vpop.f32.mrf.mxu0
        %v1779 = vadd.f32 0.0, %v1778
        %v1780 = vpop.f32.mrf.mxu0
        %v1781 = vpop.f32.mrf.mxu0
        %v1782 = vadd.f32 0.0, %v1781
        %v1783 = vpop.f32.mrf.mxu0
        %1784 = vmatprep.mubr.bf16.mxu0 0
        %1785 = vmatmul.mubr.bf16.gmra.mxu0 %v1695
        %v1786 = vpop.f32.mrf.mxu0
        %v1787 = vadd.f32 0.0, %v1786
        %v1788 = vpop.f32.mrf.mxu0
        %v1789 = vpop.f32.mrf.mxu0
        %v1790 = vadd.f32 0.0, %v1789
        %v1791 = vpop.f32.mrf.mxu0
        %1792 = vmatprep.mubr.bf16.mxu0 0
        %1793 = vmatmul.mubr.bf16.gmra.mxu0 %v1698
        %v1794 = vpop.f32.mrf.mxu0
        %v1795 = vadd.f32 0.0, %v1794
        %v1796 = vpop.f32.mrf.mxu0
        %v1797 = vpop.f32.mrf.mxu0
        %v1798 = vadd.f32 0.0, %v1797
        %v1799 = vpop.f32.mrf.mxu0
        %1800 = vmatprep.mubr.bf16.mxu0 0
        %1801 = vmatmul.mubr.bf16.gmra.mxu0 %v1701
        %v1802 = vpop.f32.mrf.mxu0
        %v1803 = vadd.f32 0.0, %v1802
        %v1804 = vpop.f32.mrf.mxu0
        %v1805 = vpop.f32.mrf.mxu0
        %v1806 = vadd.f32 0.0, %v1805
        %v1807 = vpop.f32.mrf.mxu0
        %1808 = vmatprep.mubr.bf16.mxu0 0
        %1809 = vmatmul.mubr.bf16.gmra.mxu0 %v1704
        %v1810 = vpop.f32.mrf.mxu0
        %v1811 = vadd.f32 0.0, %v1810
        %v1812 = vpop.f32.mrf.mxu0
        %v1813 = vpop.f32.mrf.mxu0
        %v1814 = vadd.f32 0.0, %v1813
        %v1815 = vpop.f32.mrf.mxu0
        %1816 = vmatprep.mubr.bf16.mxu0 0
        %1817 = vmatmul.mubr.bf16.gmra.mxu0 %v1707
        %v1818 = vpop.f32.mrf.mxu0
        %v1819 = vadd.f32 0.0, %v1818
        %v1820 = vpop.f32.mrf.mxu0
        %v1821 = vpop.f32.mrf.mxu0
        %v1822 = vadd.f32 0.0, %v1821
        %v1823 = vpop.f32.mrf.mxu0
        %1824 = vmatprep.mubr.bf16.mxu0 0
        %1825 = vmatmul.mubr.bf16.gmra.mxu0 %v1710
        %v1826 = vpop.f32.mrf.mxu0
        %v1827 = vadd.f32 0.0, %v1826
        %v1828 = vpop.f32.mrf.mxu0
        %v1829 = vpop.f32.mrf.mxu0
        %v1830 = vadd.f32 0.0, %v1829
        %v1831 = vpop.f32.mrf.mxu0
        %1832 = vmatprep.mubr.bf16.mxu0 0
        %1833 = vmatmul.mubr.bf16.gmra.mxu0 %v1713
        %v1834 = vpop.f32.mrf.mxu0
        %v1835 = vadd.f32 0.0, %v1834
        %v1836 = vpop.f32.mrf.mxu0
        %v1837 = vpop.f32.mrf.mxu0
        %v1838 = vadd.f32 0.0, %v1837
        %v1839 = vpop.f32.mrf.mxu0
        %1840 = vmatprep.mubr.bf16.mxu0 0
        %1841 = vmatmul.mubr.bf16.gmra.mxu0 %v1716
        %v1842 = vpop.f32.mrf.mxu0
        %v1843 = vadd.f32 0.0, %v1842
        %v1844 = vpop.f32.mrf.mxu0
        %v1845 = vpop.f32.mrf.mxu0
        %v1846 = vadd.f32 0.0, %v1845
        %v1847 = vpop.f32.mrf.mxu0
        %1848 = vmatprep.mubr.bf16.mxu0 0
        %1849 = vmatmul.mubr.bf16.gmra.mxu0 %v1719
        %v1850 = vpop.f32.mrf.mxu0
        %v1851 = vadd.f32 0.0, %v1850
        %v1852 = vpop.f32.mrf.mxu0
        %v1853 = vpop.f32.mrf.mxu0
        %v1854 = vadd.f32 0.0, %v1853
        %v1855 = vpop.f32.mrf.mxu0
        %1856 = vmatprep.mubr.bf16.mxu0 0
        %1857 = vmatmul.mubr.bf16.gmra.mxu0 %v1722
        %v1858 = vpop.f32.mrf.mxu0
        %v1859 = vadd.f32 0.0, %v1858
        %v1860 = vpop.f32.mrf.mxu0
        %v1861 = vpop.f32.mrf.mxu0
        %v1862 = vadd.f32 0.0, %v1861
        %v1863 = vpop.f32.mrf.mxu0
        %1864 = vmatprep.mubr.bf16.mxu0 0
        %1865 = vmatmul.mubr.bf16.gmra.mxu0 %v1725
        %v1866 = vpop.f32.mrf.mxu0
        %v1867 = vadd.f32 0.0, %v1866
        %v1868 = vpop.f32.mrf.mxu0
        %v1869 = vpop.f32.mrf.mxu0
        %v1870 = vadd.f32 0.0, %v1869
        %v1871 = vpop.f32.mrf.mxu0
        %1872 = vmatprep.mubr.bf16.mxu0 0
        %1873 = vmatmul.mubr.bf16.gmra.mxu0 %v1728
        %v1874 = vpop.f32.mrf.mxu0
        %v1875 = vadd.f32 0.0, %v1874
        %v1876 = vpop.f32.mrf.mxu0
        %v1877 = vpop.f32.mrf.mxu0
        %v1878 = vadd.f32 0.0, %v1877
        %v1879 = vpop.f32.mrf.mxu0
        %1880 = vmatprep.mubr.bf16.mxu0 0
        %1881 = vmatmul.mubr.bf16.gmra.mxu0 %v1731
        %v1882 = vpop.f32.mrf.mxu0
        %v1883 = vadd.f32 0.0, %v1882
        %v1884 = vpop.f32.mrf.mxu0
        %v1885 = vpop.f32.mrf.mxu0
        %v1886 = vadd.f32 0.0, %v1885
        %v1887 = vpop.f32.mrf.mxu0
        %1888 = vmatprep.mubr.bf16.mxu0 0
        %1889 = vmatmul.mubr.bf16.gmra.mxu0 %v1734
        %v1890 = vpop.f32.mrf.mxu0
        %v1891 = vadd.f32 0.0, %v1890
        %v1892 = vpop.f32.mrf.mxu0
        %v1893 = vpop.f32.mrf.mxu0
        %v1894 = vadd.f32 0.0, %v1893
        %v1895 = vpop.f32.mrf.mxu0
        %1896 = vdwg.mxu0
        %v1929 = vunpack.c.l.b16 %v1183
        %v1930 = vunpack.c.l.b16 %v1184
        %v1931 = vunpack.c.l.b16 %v1185
        %v1932 = vunpack.c.l.b16 %v1186
        %v1933 = vunpack.c.l.b16 %v1187
        %v1934 = vunpack.c.l.b16 %v1188
        %v1935 = vunpack.c.l.b16 %v1189
        %v1936 = vunpack.c.l.b16 %v1190
        %v1937 = vunpack.c.l.b16 %v1191
        %v1938 = vunpack.c.l.b16 %v1192
        %v1939 = vunpack.c.l.b16 %v1193
        %v1940 = vunpack.c.l.b16 %v1194
        %v1941 = vunpack.c.l.b16 %v1195
        %v1942 = vunpack.c.l.b16 %v1196
        %v1943 = vunpack.c.l.b16 %v1197
        %v1944 = vunpack.c.l.b16 %v1198
        %v1945 = vunpack.c.l.b16 %v1199
        %v1946 = vunpack.c.l.b16 %v1200
        %v1947 = vunpack.c.l.b16 %v1201
        %v1948 = vunpack.c.l.b16 %v1202
        %v1949 = vunpack.c.l.b16 %v1203
        %v1950 = vunpack.c.l.b16 %v1204
        %v1951 = vunpack.c.l.b16 %v1205
        %v1952 = vunpack.c.l.b16 %v1206
        %v1953 = vunpack.c.l.b16 %v1207
        %v1954 = vunpack.c.l.b16 %v1208
        %v1955 = vunpack.c.l.b16 %v1209
        %v1956 = vunpack.c.l.b16 %v1210
        %v1957 = vunpack.c.l.b16 %v1211
        %v1958 = vunpack.c.l.b16 %v1212
        %v1959 = vunpack.c.l.b16 %v1213
        %v1960 = vunpack.c.l.b16 %v1214
        %v1961 = vpack.c.b16 %v1930, %v1929
        %v1962 = vpack.c.b16 %v1932, %v1931
        %v1963 = vpack.c.b16 %v1934, %v1933
        %v1964 = vpack.c.b16 %v1936, %v1935
        %v1965 = vpack.c.b16 %v1938, %v1937
        %v1966 = vpack.c.b16 %v1940, %v1939
        %v1967 = vpack.c.b16 %v1942, %v1941
        %v1968 = vpack.c.b16 %v1944, %v1943
        %v1969 = vpack.c.b16 %v1946, %v1945
        %v1970 = vpack.c.b16 %v1948, %v1947
        %v1971 = vpack.c.b16 %v1950, %v1949
        %v1972 = vpack.c.b16 %v1952, %v1951
        %v1973 = vpack.c.b16 %v1954, %v1953
        %v1974 = vpack.c.b16 %v1956, %v1955
        %v1975 = vpack.c.b16 %v1958, %v1957
        %v1976 = vpack.c.b16 %v1960, %v1959
        %v1981 = vunpack.c.l.b16 %v1215
        %v1982 = vunpack.c.l.b16 %v1216
        %v1983 = vunpack.c.l.b16 %v1217
        %v1984 = vunpack.c.l.b16 %v1218
        %v1985 = vpack.c.b16 %v1982, %v1981
        %v1986 = vpack.c.b16 %v1984, %v1983
        %v1990 = vsel %vm1687, %v1961, 0
        %v1993 = vsel %vm1687, %v1962, 0
        %v1996 = vsel %vm1687, %v1963, 0
        %v1999 = vsel %vm1687, %v1964, 0
        %v2002 = vsel %vm1687, %v1965, 0
        %v2005 = vsel %vm1687, %v1966, 0
        %v2008 = vsel %vm1687, %v1967, 0
        %v2011 = vsel %vm1687, %v1968, 0
        %v2014 = vsel %vm1687, %v1969, 0
        %v2017 = vsel %vm1687, %v1970, 0
        %v2020 = vsel %vm1687, %v1971, 0
        %v2023 = vsel %vm1687, %v1972, 0
        %v2026 = vsel %vm1687, %v1973, 0
        %v2029 = vsel %vm1687, %v1974, 0
        %v2032 = vsel %vm1687, %v1975, 0
        %v2035 = vsel %vm1687, %v1976, 0
        %2037 = vmatprep.subr.bf16.mxu0 0
        %2038 = vmatpush1.bf16.msra.mxu0 0
        %2039 = vmatprep.subr.bf16.mxu0 0
        %2040 = vmatpush1.bf16.msra.mxu0 0
        %2041 = vmatprep.subr.bf16.mxu0 0
        %2042 = vmatpush1.bf16.msra.mxu0 0
        %2043 = vmatprep.subr.bf16.mxu0 0
        %2044 = vmatpush1.bf16.msra.mxu0 0
        %2045 = vmatprep.subr.bf16.mxu0 0
        %2046 = vmatpush1.bf16.msra.mxu0 0
        %2047 = vmatprep.subr.bf16.mxu0 0
        %2048 = vmatpush1.bf16.msra.mxu0 0
        %2049 = vmatprep.subr.bf16.mxu0 0
        %2050 = vmatpush1.bf16.msra.mxu0 %v1986
        %2051 = vmatprep.subr.bf16.mxu0 0
        %2052 = vmatpush1.bf16.msra.mxu0 %v1985
        %2053 = vmatprep.subr.bf16.mxu0 0
        %2054 = vmatpush2.bf16.msra.mxu0 0
        %2055 = vmatprep.subr.bf16.mxu0 0
        %2056 = vmatpush2.bf16.msra.mxu0 0
        %2057 = vmatprep.subr.bf16.mxu0 0
        %2058 = vmatpush2.bf16.msra.mxu0 0
        %2059 = vmatprep.subr.bf16.mxu0 0
        %2060 = vmatpush2.bf16.msra.mxu0 0
        %2061 = vmatprep.subr.bf16.mxu0 0
        %2062 = vmatpush2.bf16.msra.mxu0 0
        %2063 = vmatprep.subr.bf16.mxu0 0
        %2064 = vmatpush2.bf16.msra.mxu0 0
        %2065 = vmatprep.subr.bf16.mxu0 0
        %2066 = vmatpush2.bf16.msra.mxu0 0
        %2067 = vmatprep.subr.bf16.mxu0 0
        %2068 = vmatpush2.bf16.msra.mxu0 0
        %2069 = vmatprep.mubr.bf16.mxu0 0
        %2070 = vmatmul.mubr.bf16.gmra.mxu0 %v1990
        %v2071 = vpop.f32.mrf.mxu0
        %v2072 = vadd.f32 %v1771, %v2071
        %v2073 = vpop.f32.mrf.mxu0
        %v2074 = vpop.f32.mrf.mxu0
        %v2075 = vadd.f32 %v1774, %v2074
        %v2076 = vpop.f32.mrf.mxu0
        %2077 = vmatprep.mubr.bf16.mxu0 0
        %2078 = vmatmul.mubr.bf16.gmra.mxu0 %v1993
        %v2079 = vpop.f32.mrf.mxu0
        %v2080 = vadd.f32 %v1779, %v2079
        %v2081 = vpop.f32.mrf.mxu0
        %v2082 = vpop.f32.mrf.mxu0
        %v2083 = vadd.f32 %v1782, %v2082
        %v2084 = vpop.f32.mrf.mxu0
        %2085 = vmatprep.mubr.bf16.mxu0 0
        %2086 = vmatmul.mubr.bf16.gmra.mxu0 %v1996
        %v2087 = vpop.f32.mrf.mxu0
        %v2088 = vadd.f32 %v1787, %v2087
        %v2089 = vpop.f32.mrf.mxu0
        %v2090 = vpop.f32.mrf.mxu0
        %v2091 = vadd.f32 %v1790, %v2090
        %v2092 = vpop.f32.mrf.mxu0
        %2093 = vmatprep.mubr.bf16.mxu0 0
        %2094 = vmatmul.mubr.bf16.gmra.mxu0 %v1999
        %v2095 = vpop.f32.mrf.mxu0
        %v2096 = vadd.f32 %v1795, %v2095
        %v2097 = vpop.f32.mrf.mxu0
        %v2098 = vpop.f32.mrf.mxu0
        %v2099 = vadd.f32 %v1798, %v2098
        %v2100 = vpop.f32.mrf.mxu0
        %2101 = vmatprep.mubr.bf16.mxu0 0
        %2102 = vmatmul.mubr.bf16.gmra.mxu0 %v2002
        %v2103 = vpop.f32.mrf.mxu0
        %v2104 = vadd.f32 %v1803, %v2103
        %v2105 = vpop.f32.mrf.mxu0
        %v2106 = vpop.f32.mrf.mxu0
        %v2107 = vadd.f32 %v1806, %v2106
        %v2108 = vpop.f32.mrf.mxu0
        %2109 = vmatprep.mubr.bf16.mxu0 0
        %2110 = vmatmul.mubr.bf16.gmra.mxu0 %v2005
        %v2111 = vpop.f32.mrf.mxu0
        %v2112 = vadd.f32 %v1811, %v2111
        %v2113 = vpop.f32.mrf.mxu0
        %v2114 = vpop.f32.mrf.mxu0
        %v2115 = vadd.f32 %v1814, %v2114
        %v2116 = vpop.f32.mrf.mxu0
        %2117 = vmatprep.mubr.bf16.mxu0 0
        %2118 = vmatmul.mubr.bf16.gmra.mxu0 %v2008
        %v2119 = vpop.f32.mrf.mxu0
        %v2120 = vadd.f32 %v1819, %v2119
        %v2121 = vpop.f32.mrf.mxu0
        %v2122 = vpop.f32.mrf.mxu0
        %v2123 = vadd.f32 %v1822, %v2122
        %v2124 = vpop.f32.mrf.mxu0
        %2125 = vmatprep.mubr.bf16.mxu0 0
        %2126 = vmatmul.mubr.bf16.gmra.mxu0 %v2011
        %v2127 = vpop.f32.mrf.mxu0
        %v2128 = vadd.f32 %v1827, %v2127
        %v2129 = vpop.f32.mrf.mxu0
        %v2130 = vpop.f32.mrf.mxu0
        %v2131 = vadd.f32 %v1830, %v2130
        %v2132 = vpop.f32.mrf.mxu0
        %2133 = vmatprep.mubr.bf16.mxu0 0
        %2134 = vmatmul.mubr.bf16.gmra.mxu0 %v2014
        %v2135 = vpop.f32.mrf.mxu0
        %v2136 = vadd.f32 %v1835, %v2135
        %v2137 = vpop.f32.mrf.mxu0
        %v2138 = vpop.f32.mrf.mxu0
        %v2139 = vadd.f32 %v1838, %v2138
        %v2140 = vpop.f32.mrf.mxu0
        %2141 = vmatprep.mubr.bf16.mxu0 0
        %2142 = vmatmul.mubr.bf16.gmra.mxu0 %v2017
        %v2143 = vpop.f32.mrf.mxu0
        %v2144 = vadd.f32 %v1843, %v2143
        %v2145 = vpop.f32.mrf.mxu0
        %v2146 = vpop.f32.mrf.mxu0
        %v2147 = vadd.f32 %v1846, %v2146
        %v2148 = vpop.f32.mrf.mxu0
        %2149 = vmatprep.mubr.bf16.mxu0 0
        %2150 = vmatmul.mubr.bf16.gmra.mxu0 %v2020
        %v2151 = vpop.f32.mrf.mxu0
        %v2152 = vadd.f32 %v1851, %v2151
        %v2153 = vpop.f32.mrf.mxu0
        %v2154 = vpop.f32.mrf.mxu0
        %v2155 = vadd.f32 %v1854, %v2154
        %v2156 = vpop.f32.mrf.mxu0
        %2157 = vmatprep.mubr.bf16.mxu0 0
        %2158 = vmatmul.mubr.bf16.gmra.mxu0 %v2023
        %v2159 = vpop.f32.mrf.mxu0
        %v2160 = vadd.f32 %v1859, %v2159
        %v2161 = vpop.f32.mrf.mxu0
        %v2162 = vpop.f32.mrf.mxu0
        %v2163 = vadd.f32 %v1862, %v2162
        %v2164 = vpop.f32.mrf.mxu0
        %2165 = vmatprep.mubr.bf16.mxu0 0
        %2166 = vmatmul.mubr.bf16.gmra.mxu0 %v2026
        %v2167 = vpop.f32.mrf.mxu0
        %v2168 = vadd.f32 %v1867, %v2167
        %v2169 = vpop.f32.mrf.mxu0
        %v2170 = vpop.f32.mrf.mxu0
        %v2171 = vadd.f32 %v1870, %v2170
        %v2172 = vpop.f32.mrf.mxu0
        %2173 = vmatprep.mubr.bf16.mxu0 0
        %2174 = vmatmul.mubr.bf16.gmra.mxu0 %v2029
        %v2175 = vpop.f32.mrf.mxu0
        %v2176 = vadd.f32 %v1875, %v2175
        %v2177 = vpop.f32.mrf.mxu0
        %v2178 = vpop.f32.mrf.mxu0
        %v2179 = vadd.f32 %v1878, %v2178
        %v2180 = vpop.f32.mrf.mxu0
        %2181 = vmatprep.mubr.bf16.mxu0 0
        %2182 = vmatmul.mubr.bf16.gmra.mxu0 %v2032
        %v2183 = vpop.f32.mrf.mxu0
        %v2184 = vadd.f32 %v1883, %v2183
        %v2185 = vpop.f32.mrf.mxu0
        %v2186 = vpop.f32.mrf.mxu0
        %v2187 = vadd.f32 %v1886, %v2186
        %v2188 = vpop.f32.mrf.mxu0
        %2189 = vmatprep.mubr.bf16.mxu0 0
        %2190 = vmatmul.mubr.bf16.gmra.mxu0 %v2035
        %v2191 = vpop.f32.mrf.mxu0
        %v2192 = vadd.f32 %v1891, %v2191
        %v2193 = vpop.f32.mrf.mxu0
        %v2194 = vpop.f32.mrf.mxu0
        %v2195 = vadd.f32 %v1894, %v2194
        %v2196 = vpop.f32.mrf.mxu0
        %2197 = vdwg.mxu0
        %v2198 = vld [vmem:[#allocation2] sm:$0xe]
        %v2199 = vld [vmem:[#allocation2 + $0xc] sm:$0xe]
        %v2200 = vld [vmem:[#allocation2 + $0x18] sm:$0xe]
        %v2201 = vld [vmem:[#allocation2 + $0x24] sm:$0xe]
        %v2202 = vld [vmem:[#allocation2 + $0x30] sm:$0xe]
        %v2203 = vld [vmem:[#allocation2 + $0x3c] sm:$0xe]
        %v2204 = vld [vmem:[#allocation2 + $0x48] sm:$0xe]
        %v2205 = vld [vmem:[#allocation2 + $0x54] sm:$0xe]
        %v2206 = vld [vmem:[#allocation2 + $0x60] sm:$0xe]
        %v2207 = vld [vmem:[#allocation2 + $0x6c] sm:$0xe]
        %v2208 = vld [vmem:[#allocation2 + $0x78] sm:$0xe]
        %v2209 = vld [vmem:[#allocation2 + $0x84] sm:$0xe]
        %v2210 = vld [vmem:[#allocation2 + $0x90] sm:$0xe]
        %v2211 = vld [vmem:[#allocation2 + $0x9c] sm:$0xe]
        %v2212 = vld [vmem:[#allocation2 + $0xa8] sm:$0xe]
        %v2213 = vld [vmem:[#allocation2 + $0xb4] sm:$0xe]
        %vm2246 = vcmask 1042432
        %vm2247 = vcmask 1046532
        %vm2248 = vmor %vm2246, %vm2247
        %v2249 = vrot.slane %v2198, 5
        %v2250 = vrot.slane %v2249, 4
        %v2251 = vrot.slane %v1184, 5
        %v2252 = vsel %vm2248, %v2250, %v2251
        %v2253 = vrot.slane %v2251, 4
        %v2254 = vrot.slane %v1219, 5
        %v2255 = vsel %vm2248, %v2253, %v2254
        %v2256 = vrot.slane %v2199, 5
        %v2257 = vrot.slane %v2256, 4
        %v2258 = vrot.slane %v1186, 5
        %v2259 = vsel %vm2248, %v2257, %v2258
        %v2260 = vrot.slane %v2258, 4
        %v2261 = vrot.slane %v1220, 5
        %v2262 = vsel %vm2248, %v2260, %v2261
        %v2263 = vrot.slane %v2200, 5
        %v2264 = vrot.slane %v2263, 4
        %v2265 = vrot.slane %v1188, 5
        %v2266 = vsel %vm2248, %v2264, %v2265
        %v2267 = vrot.slane %v2265, 4
        %v2268 = vrot.slane %v1221, 5
        %v2269 = vsel %vm2248, %v2267, %v2268
        %v2270 = vrot.slane %v2201, 5
        %v2271 = vrot.slane %v2270, 4
        %v2272 = vrot.slane %v1190, 5
        %v2273 = vsel %vm2248, %v2271, %v2272
        %v2274 = vrot.slane %v2272, 4
        %v2275 = vrot.slane %v1222, 5
        %v2276 = vsel %vm2248, %v2274, %v2275
        %v2277 = vrot.slane %v2202, 5
        %v2278 = vrot.slane %v2277, 4
        %v2279 = vrot.slane %v1192, 5
        %v2280 = vsel %vm2248, %v2278, %v2279
        %v2281 = vrot.slane %v2279, 4
        %v2282 = vrot.slane %v1223, 5
        %v2283 = vsel %vm2248, %v2281, %v2282
        %v2284 = vrot.slane %v2203, 5
        %v2285 = vrot.slane %v2284, 4
        %v2286 = vrot.slane %v1194, 5
        %v2287 = vsel %vm2248, %v2285, %v2286
        %v2288 = vrot.slane %v2286, 4
        %v2289 = vrot.slane %v1224, 5
        %v2290 = vsel %vm2248, %v2288, %v2289
        %v2291 = vrot.slane %v2204, 5
        %v2292 = vrot.slane %v2291, 4
        %v2293 = vrot.slane %v1196, 5
        %v2294 = vsel %vm2248, %v2292, %v2293
        %v2295 = vrot.slane %v2293, 4
        %v2296 = vrot.slane %v1225, 5
        %v2297 = vsel %vm2248, %v2295, %v2296
        %v2298 = vrot.slane %v2205, 5
        %v2299 = vrot.slane %v2298, 4
        %v2300 = vrot.slane %v1198, 5
        %v2301 = vsel %vm2248, %v2299, %v2300
        %v2302 = vrot.slane %v2300, 4
        %v2303 = vrot.slane %v1226, 5
        %v2304 = vsel %vm2248, %v2302, %v2303
        %v2305 = vrot.slane %v2206, 5
        %v2306 = vrot.slane %v2305, 4
        %v2307 = vrot.slane %v1200, 5
        %v2308 = vsel %vm2248, %v2306, %v2307
        %v2309 = vrot.slane %v2307, 4
        %v2310 = vrot.slane %v1227, 5
        %v2311 = vsel %vm2248, %v2309, %v2310
        %v2312 = vrot.slane %v2207, 5
        %v2313 = vrot.slane %v2312, 4
        %v2314 = vrot.slane %v1202, 5
        %v2315 = vsel %vm2248, %v2313, %v2314
        %v2316 = vrot.slane %v2314, 4
        %v2317 = vrot.slane %v1228, 5
        %v2318 = vsel %vm2248, %v2316, %v2317
        %v2319 = vrot.slane %v2208, 5
        %v2320 = vrot.slane %v2319, 4
        %v2321 = vrot.slane %v1204, 5
        %v2322 = vsel %vm2248, %v2320, %v2321
        %v2323 = vrot.slane %v2321, 4
        %v2324 = vrot.slane %v1229, 5
        %v2325 = vsel %vm2248, %v2323, %v2324
        %v2326 = vrot.slane %v2209, 5
        %v2327 = vrot.slane %v2326, 4
        %v2328 = vrot.slane %v1206, 5
        %v2329 = vsel %vm2248, %v2327, %v2328
        %v2330 = vrot.slane %v2328, 4
        %v2331 = vrot.slane %v1230, 5
        %v2332 = vsel %vm2248, %v2330, %v2331
        %v2333 = vrot.slane %v2210, 5
        %v2334 = vrot.slane %v2333, 4
        %v2335 = vrot.slane %v1208, 5
        %v2336 = vsel %vm2248, %v2334, %v2335
        %v2337 = vrot.slane %v2335, 4
        %v2338 = vrot.slane %v1231, 5
        %v2339 = vsel %vm2248, %v2337, %v2338
        %v2340 = vrot.slane %v2211, 5
        %v2341 = vrot.slane %v2340, 4
        %v2342 = vrot.slane %v1210, 5
        %v2343 = vsel %vm2248, %v2341, %v2342
        %v2344 = vrot.slane %v2342, 4
        %v2345 = vrot.slane %v1232, 5
        %v2346 = vsel %vm2248, %v2344, %v2345
        %v2347 = vrot.slane %v2212, 5
        %v2348 = vrot.slane %v2347, 4
        %v2349 = vrot.slane %v1212, 5
        %v2350 = vsel %vm2248, %v2348, %v2349
        %v2351 = vrot.slane %v2349, 4
        %v2352 = vrot.slane %v1233, 5
        %v2353 = vsel %vm2248, %v2351, %v2352
        %v2354 = vrot.slane %v2213, 5
        %v2355 = vrot.slane %v2354, 4
        %v2356 = vrot.slane %v1214, 5
        %v2357 = vsel %vm2248, %v2355, %v2356
        %v2358 = vrot.slane %v2356, 4
        %v2359 = vrot.slane %v1234, 5
        %v2360 = vsel %vm2248, %v2358, %v2359
        %s2361 = scalar_lea.vmem %s3, 32
        %v2362 = vld [vmem:[%s2361] sm:$0xf]
        %v2363 = vld [vmem:[%s2361 + $0x4] sm:$0xf]
        %v2364 = vld [vmem:[%s2361 + $0x8] sm:$0xf]
        %v2365 = vld [vmem:[%s2361 + $0xc] sm:$0xf]
        %v2366 = vunpack.c.l.b16 %v2252
        %v2367 = vunpack.c.l.b16 %v2255
        %v2368 = vunpack.c.l.b16 %v2259
        %v2369 = vunpack.c.l.b16 %v2262
        %v2370 = vunpack.c.l.b16 %v2266
        %v2371 = vunpack.c.l.b16 %v2269
        %v2372 = vunpack.c.l.b16 %v2273
        %v2373 = vunpack.c.l.b16 %v2276
        %v2374 = vunpack.c.l.b16 %v2280
        %v2375 = vunpack.c.l.b16 %v2283
        %v2376 = vunpack.c.l.b16 %v2287
        %v2377 = vunpack.c.l.b16 %v2290
        %v2378 = vunpack.c.l.b16 %v2294
        %v2379 = vunpack.c.l.b16 %v2297
        %v2380 = vunpack.c.l.b16 %v2301
        %v2381 = vunpack.c.l.b16 %v2304
        %v2382 = vunpack.c.l.b16 %v2308
        %v2383 = vunpack.c.l.b16 %v2311
        %v2384 = vunpack.c.l.b16 %v2315
        %v2385 = vunpack.c.l.b16 %v2318
        %v2386 = vunpack.c.l.b16 %v2322
        %v2387 = vunpack.c.l.b16 %v2325
        %v2388 = vunpack.c.l.b16 %v2329
        %v2389 = vunpack.c.l.b16 %v2332
        %v2390 = vunpack.c.l.b16 %v2336
        %v2391 = vunpack.c.l.b16 %v2339
        %v2392 = vunpack.c.l.b16 %v2343
        %v2393 = vunpack.c.l.b16 %v2346
        %v2394 = vunpack.c.l.b16 %v2350
        %v2395 = vunpack.c.l.b16 %v2353
        %v2396 = vunpack.c.l.b16 %v2357
        %v2397 = vunpack.c.l.b16 %v2360
        %v2398 = vpack.c.b16 %v2367, %v2366
        %v2399 = vpack.c.b16 %v2369, %v2368
        %v2400 = vpack.c.b16 %v2371, %v2370
        %v2401 = vpack.c.b16 %v2373, %v2372
        %v2402 = vpack.c.b16 %v2375, %v2374
        %v2403 = vpack.c.b16 %v2377, %v2376
        %v2404 = vpack.c.b16 %v2379, %v2378
        %v2405 = vpack.c.b16 %v2381, %v2380
        %v2406 = vpack.c.b16 %v2383, %v2382
        %v2407 = vpack.c.b16 %v2385, %v2384
        %v2408 = vpack.c.b16 %v2387, %v2386
        %v2409 = vpack.c.b16 %v2389, %v2388
        %v2410 = vpack.c.b16 %v2391, %v2390
        %v2411 = vpack.c.b16 %v2393, %v2392
        %v2412 = vpack.c.b16 %v2395, %v2394
        %v2413 = vpack.c.b16 %v2397, %v2396
        %v2418 = vunpack.c.l.b16 %v2362
        %v2419 = vunpack.c.l.b16 %v2363
        %v2420 = vunpack.c.l.b16 %v2364
        %v2421 = vunpack.c.l.b16 %v2365
        %v2422 = vpack.c.b16 %v2419, %v2418
        %v2423 = vpack.c.b16 %v2421, %v2420
        %v2427 = vsel %vm1687, %v2398, 0
        %v2430 = vsel %vm1687, %v2399, 0
        %v2433 = vsel %vm1687, %v2400, 0
        %v2436 = vsel %vm1687, %v2401, 0
        %v2439 = vsel %vm1687, %v2402, 0
        %v2442 = vsel %vm1687, %v2403, 0
        %v2445 = vsel %vm1687, %v2404, 0
        %v2448 = vsel %vm1687, %v2405, 0
        %v2451 = vsel %vm1687, %v2406, 0
        %v2454 = vsel %vm1687, %v2407, 0
        %v2457 = vsel %vm1687, %v2408, 0
        %v2460 = vsel %vm1687, %v2409, 0
        %v2463 = vsel %vm1687, %v2410, 0
        %v2466 = vsel %vm1687, %v2411, 0
        %v2469 = vsel %vm1687, %v2412, 0
        %v2472 = vsel %vm1687, %v2413, 0
        %2474 = vmatprep.subr.bf16.mxu0 0
        %2475 = vmatpush1.bf16.msra.mxu0 0
        %2476 = vmatprep.subr.bf16.mxu0 0
        %2477 = vmatpush1.bf16.msra.mxu0 0
        %2478 = vmatprep.subr.bf16.mxu0 0
        %2479 = vmatpush1.bf16.msra.mxu0 0
        %2480 = vmatprep.subr.bf16.mxu0 0
        %2481 = vmatpush1.bf16.msra.mxu0 0
        %2482 = vmatprep.subr.bf16.mxu0 0
        %2483 = vmatpush1.bf16.msra.mxu0 0
        %2484 = vmatprep.subr.bf16.mxu0 0
        %2485 = vmatpush1.bf16.msra.mxu0 0
        %2486 = vmatprep.subr.bf16.mxu0 0
        %2487 = vmatpush1.bf16.msra.mxu0 %v2423
        %2488 = vmatprep.subr.bf16.mxu0 0
        %2489 = vmatpush1.bf16.msra.mxu0 %v2422
        %2490 = vmatprep.subr.bf16.mxu0 0
        %2491 = vmatpush2.bf16.msra.mxu0 0
        %2492 = vmatprep.subr.bf16.mxu0 0
        %2493 = vmatpush2.bf16.msra.mxu0 0
        %2494 = vmatprep.subr.bf16.mxu0 0
        %2495 = vmatpush2.bf16.msra.mxu0 0
        %2496 = vmatprep.subr.bf16.mxu0 0
        %2497 = vmatpush2.bf16.msra.mxu0 0
        %2498 = vmatprep.subr.bf16.mxu0 0
        %2499 = vmatpush2.bf16.msra.mxu0 0
        %2500 = vmatprep.subr.bf16.mxu0 0
        %2501 = vmatpush2.bf16.msra.mxu0 0
        %2502 = vmatprep.subr.bf16.mxu0 0
        %2503 = vmatpush2.bf16.msra.mxu0 0
        %2504 = vmatprep.subr.bf16.mxu0 0
        %2505 = vmatpush2.bf16.msra.mxu0 0
        %2506 = vmatprep.mubr.bf16.mxu0 0
        %2507 = vmatmul.mubr.bf16.gmra.mxu0 %v2427
        %v2508 = vpop.f32.mrf.mxu0
        %v2509 = vadd.f32 0.0, %v2508
        %v2510 = vpop.f32.mrf.mxu0
        %v2511 = vpop.f32.mrf.mxu0
        %v2512 = vadd.f32 0.0, %v2511
        %v2513 = vpop.f32.mrf.mxu0
        %2514 = vmatprep.mubr.bf16.mxu0 0
        %2515 = vmatmul.mubr.bf16.gmra.mxu0 %v2430
        %v2516 = vpop.f32.mrf.mxu0
        %v2517 = vadd.f32 0.0, %v2516
        %v2518 = vpop.f32.mrf.mxu0
        %v2519 = vpop.f32.mrf.mxu0
        %v2520 = vadd.f32 0.0, %v2519
        %v2521 = vpop.f32.mrf.mxu0
        %2522 = vmatprep.mubr.bf16.mxu0 0
        %2523 = vmatmul.mubr.bf16.gmra.mxu0 %v2433
        %v2524 = vpop.f32.mrf.mxu0
        %v2525 = vadd.f32 0.0, %v2524
        %v2526 = vpop.f32.mrf.mxu0
        %v2527 = vpop.f32.mrf.mxu0
        %v2528 = vadd.f32 0.0, %v2527
        %v2529 = vpop.f32.mrf.mxu0
        %2530 = vmatprep.mubr.bf16.mxu0 0
        %2531 = vmatmul.mubr.bf16.gmra.mxu0 %v2436
        %v2532 = vpop.f32.mrf.mxu0
        %v2533 = vadd.f32 0.0, %v2532
        %v2534 = vpop.f32.mrf.mxu0
        %v2535 = vpop.f32.mrf.mxu0
        %v2536 = vadd.f32 0.0, %v2535
        %v2537 = vpop.f32.mrf.mxu0
        %2538 = vmatprep.mubr.bf16.mxu0 0
        %2539 = vmatmul.mubr.bf16.gmra.mxu0 %v2439
        %v2540 = vpop.f32.mrf.mxu0
        %v2541 = vadd.f32 0.0, %v2540
        %v2542 = vpop.f32.mrf.mxu0
        %v2543 = vpop.f32.mrf.mxu0
        %v2544 = vadd.f32 0.0, %v2543
        %v2545 = vpop.f32.mrf.mxu0
        %2546 = vmatprep.mubr.bf16.mxu0 0
        %2547 = vmatmul.mubr.bf16.gmra.mxu0 %v2442
        %v2548 = vpop.f32.mrf.mxu0
        %v2549 = vadd.f32 0.0, %v2548
        %v2550 = vpop.f32.mrf.mxu0
        %v2551 = vpop.f32.mrf.mxu0
        %v2552 = vadd.f32 0.0, %v2551
        %v2553 = vpop.f32.mrf.mxu0
        %2554 = vmatprep.mubr.bf16.mxu0 0
        %2555 = vmatmul.mubr.bf16.gmra.mxu0 %v2445
        %v2556 = vpop.f32.mrf.mxu0
        %v2557 = vadd.f32 0.0, %v2556
        %v2558 = vpop.f32.mrf.mxu0
        %v2559 = vpop.f32.mrf.mxu0
        %v2560 = vadd.f32 0.0, %v2559
        %v2561 = vpop.f32.mrf.mxu0
        %2562 = vmatprep.mubr.bf16.mxu0 0
        %2563 = vmatmul.mubr.bf16.gmra.mxu0 %v2448
        %v2564 = vpop.f32.mrf.mxu0
        %v2565 = vadd.f32 0.0, %v2564
        %v2566 = vpop.f32.mrf.mxu0
        %v2567 = vpop.f32.mrf.mxu0
        %v2568 = vadd.f32 0.0, %v2567
        %v2569 = vpop.f32.mrf.mxu0
        %2570 = vmatprep.mubr.bf16.mxu0 0
        %2571 = vmatmul.mubr.bf16.gmra.mxu0 %v2451
        %v2572 = vpop.f32.mrf.mxu0
        %v2573 = vadd.f32 0.0, %v2572
        %v2574 = vpop.f32.mrf.mxu0
        %v2575 = vpop.f32.mrf.mxu0
        %v2576 = vadd.f32 0.0, %v2575
        %v2577 = vpop.f32.mrf.mxu0
        %2578 = vmatprep.mubr.bf16.mxu0 0
        %2579 = vmatmul.mubr.bf16.gmra.mxu0 %v2454
        %v2580 = vpop.f32.mrf.mxu0
        %v2581 = vadd.f32 0.0, %v2580
        %v2582 = vpop.f32.mrf.mxu0
        %v2583 = vpop.f32.mrf.mxu0
        %v2584 = vadd.f32 0.0, %v2583
        %v2585 = vpop.f32.mrf.mxu0
        %2586 = vmatprep.mubr.bf16.mxu0 0
        %2587 = vmatmul.mubr.bf16.gmra.mxu0 %v2457
        %v2588 = vpop.f32.mrf.mxu0
        %v2589 = vadd.f32 0.0, %v2588
        %v2590 = vpop.f32.mrf.mxu0
        %v2591 = vpop.f32.mrf.mxu0
        %v2592 = vadd.f32 0.0, %v2591
        %v2593 = vpop.f32.mrf.mxu0
        %2594 = vmatprep.mubr.bf16.mxu0 0
        %2595 = vmatmul.mubr.bf16.gmra.mxu0 %v2460
        %v2596 = vpop.f32.mrf.mxu0
        %v2597 = vadd.f32 0.0, %v2596
        %v2598 = vpop.f32.mrf.mxu0
        %v2599 = vpop.f32.mrf.mxu0
        %v2600 = vadd.f32 0.0, %v2599
        %v2601 = vpop.f32.mrf.mxu0
        %2602 = vmatprep.mubr.bf16.mxu0 0
        %2603 = vmatmul.mubr.bf16.gmra.mxu0 %v2463
        %v2604 = vpop.f32.mrf.mxu0
        %v2605 = vadd.f32 0.0, %v2604
        %v2606 = vpop.f32.mrf.mxu0
        %v2607 = vpop.f32.mrf.mxu0
        %v2608 = vadd.f32 0.0, %v2607
        %v2609 = vpop.f32.mrf.mxu0
        %2610 = vmatprep.mubr.bf16.mxu0 0
        %2611 = vmatmul.mubr.bf16.gmra.mxu0 %v2466
        %v2612 = vpop.f32.mrf.mxu0
        %v2613 = vadd.f32 0.0, %v2612
        %v2614 = vpop.f32.mrf.mxu0
        %v2615 = vpop.f32.mrf.mxu0
        %v2616 = vadd.f32 0.0, %v2615
        %v2617 = vpop.f32.mrf.mxu0
        %2618 = vmatprep.mubr.bf16.mxu0 0
        %2619 = vmatmul.mubr.bf16.gmra.mxu0 %v2469
        %v2620 = vpop.f32.mrf.mxu0
        %v2621 = vadd.f32 0.0, %v2620
        %v2622 = vpop.f32.mrf.mxu0
        %v2623 = vpop.f32.mrf.mxu0
        %v2624 = vadd.f32 0.0, %v2623
        %v2625 = vpop.f32.mrf.mxu0
        %2626 = vmatprep.mubr.bf16.mxu0 0
        %2627 = vmatmul.mubr.bf16.gmra.mxu0 %v2472
        %v2628 = vpop.f32.mrf.mxu0
        %v2629 = vadd.f32 0.0, %v2628
        %v2630 = vpop.f32.mrf.mxu0
        %v2631 = vpop.f32.mrf.mxu0
        %v2632 = vadd.f32 0.0, %v2631
        %v2633 = vpop.f32.mrf.mxu0
        %2634 = vdwg.mxu0
        %v2635 = vadd.f32 %v2072, %v2509
        %v2636 = vadd.f32 %v2075, %v2512
        %v2637 = vadd.f32 %v2080, %v2517
        %v2638 = vadd.f32 %v2083, %v2520
        %v2639 = vadd.f32 %v2088, %v2525
        %v2640 = vadd.f32 %v2091, %v2528
        %v2641 = vadd.f32 %v2096, %v2533
        %v2642 = vadd.f32 %v2099, %v2536
        %v2643 = vadd.f32 %v2104, %v2541
        %v2644 = vadd.f32 %v2107, %v2544
        %v2645 = vadd.f32 %v2112, %v2549
        %v2646 = vadd.f32 %v2115, %v2552
        %v2647 = vadd.f32 %v2120, %v2557
        %v2648 = vadd.f32 %v2123, %v2560
        %v2649 = vadd.f32 %v2128, %v2565
        %v2650 = vadd.f32 %v2131, %v2568
        %v2651 = vadd.f32 %v2136, %v2573
        %v2652 = vadd.f32 %v2139, %v2576
        %v2653 = vadd.f32 %v2144, %v2581
        %v2654 = vadd.f32 %v2147, %v2584
        %v2655 = vadd.f32 %v2152, %v2589
        %v2656 = vadd.f32 %v2155, %v2592
        %v2657 = vadd.f32 %v2160, %v2597
        %v2658 = vadd.f32 %v2163, %v2600
        %v2659 = vadd.f32 %v2168, %v2605
        %v2660 = vadd.f32 %v2171, %v2608
        %v2661 = vadd.f32 %v2176, %v2613
        %v2662 = vadd.f32 %v2179, %v2616
        %v2663 = vadd.f32 %v2184, %v2621
        %v2664 = vadd.f32 %v2187, %v2624
        %v2665 = vadd.f32 %v2192, %v2629
        %v2666 = vadd.f32 %v2195, %v2632
        %v2667 = vld [vmem:[%s1065] sm:$0xf]
        %v2668 = vld [vmem:[%s1065 + $0x4] sm:$0xf]
        %v2669 = vld [vmem:[%s1065 + $0xc] sm:$0xf]
        %v2670 = vld [vmem:[%s1065 + $0x10] sm:$0xf]
        %v2671 = vld [vmem:[%s1065 + $0x18] sm:$0xf]
        %v2672 = vld [vmem:[%s1065 + $0x1c] sm:$0xf]
        %v2673 = vld [vmem:[%s1065 + $0x24] sm:$0xf]
        %v2674 = vld [vmem:[%s1065 + $0x28] sm:$0xf]
        %v2675 = vld [vmem:[%s1065 + $0x30] sm:$0xf]
        %v2676 = vld [vmem:[%s1065 + $0x34] sm:$0xf]
        %v2677 = vld [vmem:[%s1065 + $0x3c] sm:$0xf]
        %v2678 = vld [vmem:[%s1065 + $0x40] sm:$0xf]
        %v2679 = vld [vmem:[%s1065 + $0x48] sm:$0xf]
        %v2680 = vld [vmem:[%s1065 + $0x4c] sm:$0xf]
        %v2681 = vld [vmem:[%s1065 + $0x54] sm:$0xf]
        %v2682 = vld [vmem:[%s1065 + $0x58] sm:$0xf]
        %v2683 = vld [vmem:[%s1065 + $0x60] sm:$0xf]
        %v2684 = vld [vmem:[%s1065 + $0x64] sm:$0xf]
        %v2685 = vld [vmem:[%s1065 + $0x6c] sm:$0xf]
        %v2686 = vld [vmem:[%s1065 + $0x70] sm:$0xf]
        %v2687 = vld [vmem:[%s1065 + $0x78] sm:$0xf]
        %v2688 = vld [vmem:[%s1065 + $0x7c] sm:$0xf]
        %v2689 = vld [vmem:[%s1065 + $0x84] sm:$0xf]
        %v2690 = vld [vmem:[%s1065 + $0x88] sm:$0xf]
        %v2691 = vld [vmem:[%s1065 + $0x90] sm:$0xf]
        %v2692 = vld [vmem:[%s1065 + $0x94] sm:$0xf]
        %v2693 = vld [vmem:[%s1065 + $0x9c] sm:$0xf]
        %v2694 = vld [vmem:[%s1065 + $0xa0] sm:$0xf]
        %v2695 = vld [vmem:[%s1065 + $0xa8] sm:$0xf]
        %v2696 = vld [vmem:[%s1065 + $0xac] sm:$0xf]
        %v2697 = vld [vmem:[%s1065 + $0xb4] sm:$0xf]
        %v2698 = vld [vmem:[%s1065 + $0xb8] sm:$0xf]
        %s2699 = scalar_lea.vmem %s3, 48
        %v2700 = vld [vmem:[%s2699] sm:$0xf]
        %v2701 = vld [vmem:[%s2699 + $0x4] sm:$0xf]
        %v2702 = vld [vmem:[%s2699 + $0x8] sm:$0xf]
        %v2703 = vld [vmem:[%s2699 + $0xc] sm:$0xf]
        %v2736 = vunpack.c.l.b16 %v2667
        %v2737 = vunpack.c.l.b16 %v2668
        %v2738 = vunpack.c.l.b16 %v2669
        %v2739 = vunpack.c.l.b16 %v2670
        %v2740 = vunpack.c.l.b16 %v2671
        %v2741 = vunpack.c.l.b16 %v2672
        %v2742 = vunpack.c.l.b16 %v2673
        %v2743 = vunpack.c.l.b16 %v2674
        %v2744 = vunpack.c.l.b16 %v2675
        %v2745 = vunpack.c.l.b16 %v2676
        %v2746 = vunpack.c.l.b16 %v2677
        %v2747 = vunpack.c.l.b16 %v2678
        %v2748 = vunpack.c.l.b16 %v2679
        %v2749 = vunpack.c.l.b16 %v2680
        %v2750 = vunpack.c.l.b16 %v2681
        %v2751 = vunpack.c.l.b16 %v2682
        %v2752 = vunpack.c.l.b16 %v2683
        %v2753 = vunpack.c.l.b16 %v2684
        %v2754 = vunpack.c.l.b16 %v2685
        %v2755 = vunpack.c.l.b16 %v2686
        %v2756 = vunpack.c.l.b16 %v2687
        %v2757 = vunpack.c.l.b16 %v2688
        %v2758 = vunpack.c.l.b16 %v2689
        %v2759 = vunpack.c.l.b16 %v2690
        %v2760 = vunpack.c.l.b16 %v2691
        %v2761 = vunpack.c.l.b16 %v2692
        %v2762 = vunpack.c.l.b16 %v2693
        %v2763 = vunpack.c.l.b16 %v2694
        %v2764 = vunpack.c.l.b16 %v2695
        %v2765 = vunpack.c.l.b16 %v2696
        %v2766 = vunpack.c.l.b16 %v2697
        %v2767 = vunpack.c.l.b16 %v2698
        %v2768 = vpack.c.b16 %v2737, %v2736
        %v2769 = vpack.c.b16 %v2739, %v2738
        %v2770 = vpack.c.b16 %v2741, %v2740
        %v2771 = vpack.c.b16 %v2743, %v2742
        %v2772 = vpack.c.b16 %v2745, %v2744
        %v2773 = vpack.c.b16 %v2747, %v2746
        %v2774 = vpack.c.b16 %v2749, %v2748
        %v2775 = vpack.c.b16 %v2751, %v2750
        %v2776 = vpack.c.b16 %v2753, %v2752
        %v2777 = vpack.c.b16 %v2755, %v2754
        %v2778 = vpack.c.b16 %v2757, %v2756
        %v2779 = vpack.c.b16 %v2759, %v2758
        %v2780 = vpack.c.b16 %v2761, %v2760
        %v2781 = vpack.c.b16 %v2763, %v2762
        %v2782 = vpack.c.b16 %v2765, %v2764
        %v2783 = vpack.c.b16 %v2767, %v2766
        %v2788 = vunpack.c.l.b16 %v2700
        %v2789 = vunpack.c.l.b16 %v2701
        %v2790 = vunpack.c.l.b16 %v2702
        %v2791 = vunpack.c.l.b16 %v2703
        %v2792 = vpack.c.b16 %v2789, %v2788
        %v2793 = vpack.c.b16 %v2791, %v2790
        %v2797 = vsel %vm1687, %v2768, 0
        %v2800 = vsel %vm1687, %v2769, 0
        %v2803 = vsel %vm1687, %v2770, 0
        %v2806 = vsel %vm1687, %v2771, 0
        %v2809 = vsel %vm1687, %v2772, 0
        %v2812 = vsel %vm1687, %v2773, 0
        %v2815 = vsel %vm1687, %v2774, 0
        %v2818 = vsel %vm1687, %v2775, 0
        %v2821 = vsel %vm1687, %v2776, 0
        %v2824 = vsel %vm1687, %v2777, 0
        %v2827 = vsel %vm1687, %v2778, 0
        %v2830 = vsel %vm1687, %v2779, 0
        %v2833 = vsel %vm1687, %v2780, 0
        %v2836 = vsel %vm1687, %v2781, 0
        %v2839 = vsel %vm1687, %v2782, 0
        %v2842 = vsel %vm1687, %v2783, 0
        %2844 = vmatprep.subr.bf16.mxu0 0
        %2845 = vmatpush1.bf16.msra.mxu0 0
        %2846 = vmatprep.subr.bf16.mxu0 0
        %2847 = vmatpush1.bf16.msra.mxu0 0
        %2848 = vmatprep.subr.bf16.mxu0 0
        %2849 = vmatpush1.bf16.msra.mxu0 0
        %2850 = vmatprep.subr.bf16.mxu0 0
        %2851 = vmatpush1.bf16.msra.mxu0 0
        %2852 = vmatprep.subr.bf16.mxu0 0
        %2853 = vmatpush1.bf16.msra.mxu0 0
        %2854 = vmatprep.subr.bf16.mxu0 0
        %2855 = vmatpush1.bf16.msra.mxu0 0
        %2856 = vmatprep.subr.bf16.mxu0 0
        %2857 = vmatpush1.bf16.msra.mxu0 %v2793
        %2858 = vmatprep.subr.bf16.mxu0 0
        %2859 = vmatpush1.bf16.msra.mxu0 %v2792
        %2860 = vmatprep.subr.bf16.mxu0 0
        %2861 = vmatpush2.bf16.msra.mxu0 0
        %2862 = vmatprep.subr.bf16.mxu0 0
        %2863 = vmatpush2.bf16.msra.mxu0 0
        %2864 = vmatprep.subr.bf16.mxu0 0
        %2865 = vmatpush2.bf16.msra.mxu0 0
        %2866 = vmatprep.subr.bf16.mxu0 0
        %2867 = vmatpush2.bf16.msra.mxu0 0
        %2868 = vmatprep.subr.bf16.mxu0 0
        %2869 = vmatpush2.bf16.msra.mxu0 0
        %2870 = vmatprep.subr.bf16.mxu0 0
        %2871 = vmatpush2.bf16.msra.mxu0 0
        %2872 = vmatprep.subr.bf16.mxu0 0
        %2873 = vmatpush2.bf16.msra.mxu0 0
        %2874 = vmatprep.subr.bf16.mxu0 0
        %2875 = vmatpush2.bf16.msra.mxu0 0
        %2876 = vmatprep.mubr.bf16.mxu0 0
        %2877 = vmatmul.mubr.bf16.gmra.mxu0 %v2797
        %v2878 = vpop.f32.mrf.mxu0
        %v2879 = vadd.f32 0.0, %v2878
        %v2880 = vpop.f32.mrf.mxu0
        %v2881 = vpop.f32.mrf.mxu0
        %v2882 = vadd.f32 0.0, %v2881
        %v2883 = vpop.f32.mrf.mxu0
        %2884 = vmatprep.mubr.bf16.mxu0 0
        %2885 = vmatmul.mubr.bf16.gmra.mxu0 %v2800
        %v2886 = vpop.f32.mrf.mxu0
        %v2887 = vadd.f32 0.0, %v2886
        %v2888 = vpop.f32.mrf.mxu0
        %v2889 = vpop.f32.mrf.mxu0
        %v2890 = vadd.f32 0.0, %v2889
        %v2891 = vpop.f32.mrf.mxu0
        %2892 = vmatprep.mubr.bf16.mxu0 0
        %2893 = vmatmul.mubr.bf16.gmra.mxu0 %v2803
        %v2894 = vpop.f32.mrf.mxu0
        %v2895 = vadd.f32 0.0, %v2894
        %v2896 = vpop.f32.mrf.mxu0
        %v2897 = vpop.f32.mrf.mxu0
        %v2898 = vadd.f32 0.0, %v2897
        %v2899 = vpop.f32.mrf.mxu0
        %2900 = vmatprep.mubr.bf16.mxu0 0
        %2901 = vmatmul.mubr.bf16.gmra.mxu0 %v2806
        %v2902 = vpop.f32.mrf.mxu0
        %v2903 = vadd.f32 0.0, %v2902
        %v2904 = vpop.f32.mrf.mxu0
        %v2905 = vpop.f32.mrf.mxu0
        %v2906 = vadd.f32 0.0, %v2905
        %v2907 = vpop.f32.mrf.mxu0
        %2908 = vmatprep.mubr.bf16.mxu0 0
        %2909 = vmatmul.mubr.bf16.gmra.mxu0 %v2809
        %v2910 = vpop.f32.mrf.mxu0
        %v2911 = vadd.f32 0.0, %v2910
        %v2912 = vpop.f32.mrf.mxu0
        %v2913 = vpop.f32.mrf.mxu0
        %v2914 = vadd.f32 0.0, %v2913
        %v2915 = vpop.f32.mrf.mxu0
        %2916 = vmatprep.mubr.bf16.mxu0 0
        %2917 = vmatmul.mubr.bf16.gmra.mxu0 %v2812
        %v2918 = vpop.f32.mrf.mxu0
        %v2919 = vadd.f32 0.0, %v2918
        %v2920 = vpop.f32.mrf.mxu0
        %v2921 = vpop.f32.mrf.mxu0
        %v2922 = vadd.f32 0.0, %v2921
        %v2923 = vpop.f32.mrf.mxu0
        %2924 = vmatprep.mubr.bf16.mxu0 0
        %2925 = vmatmul.mubr.bf16.gmra.mxu0 %v2815
        %v2926 = vpop.f32.mrf.mxu0
        %v2927 = vadd.f32 0.0, %v2926
        %v2928 = vpop.f32.mrf.mxu0
        %v2929 = vpop.f32.mrf.mxu0
        %v2930 = vadd.f32 0.0, %v2929
        %v2931 = vpop.f32.mrf.mxu0
        %2932 = vmatprep.mubr.bf16.mxu0 0
        %2933 = vmatmul.mubr.bf16.gmra.mxu0 %v2818
        %v2934 = vpop.f32.mrf.mxu0
        %v2935 = vadd.f32 0.0, %v2934
        %v2936 = vpop.f32.mrf.mxu0
        %v2937 = vpop.f32.mrf.mxu0
        %v2938 = vadd.f32 0.0, %v2937
        %v2939 = vpop.f32.mrf.mxu0
        %2940 = vmatprep.mubr.bf16.mxu0 0
        %2941 = vmatmul.mubr.bf16.gmra.mxu0 %v2821
        %v2942 = vpop.f32.mrf.mxu0
        %v2943 = vadd.f32 0.0, %v2942
        %v2944 = vpop.f32.mrf.mxu0
        %v2945 = vpop.f32.mrf.mxu0
        %v2946 = vadd.f32 0.0, %v2945
        %v2947 = vpop.f32.mrf.mxu0
        %2948 = vmatprep.mubr.bf16.mxu0 0
        %2949 = vmatmul.mubr.bf16.gmra.mxu0 %v2824
        %v2950 = vpop.f32.mrf.mxu0
        %v2951 = vadd.f32 0.0, %v2950
        %v2952 = vpop.f32.mrf.mxu0
        %v2953 = vpop.f32.mrf.mxu0
        %v2954 = vadd.f32 0.0, %v2953
        %v2955 = vpop.f32.mrf.mxu0
        %2956 = vmatprep.mubr.bf16.mxu0 0
        %2957 = vmatmul.mubr.bf16.gmra.mxu0 %v2827
        %v2958 = vpop.f32.mrf.mxu0
        %v2959 = vadd.f32 0.0, %v2958
        %v2960 = vpop.f32.mrf.mxu0
        %v2961 = vpop.f32.mrf.mxu0
        %v2962 = vadd.f32 0.0, %v2961
        %v2963 = vpop.f32.mrf.mxu0
        %2964 = vmatprep.mubr.bf16.mxu0 0
        %2965 = vmatmul.mubr.bf16.gmra.mxu0 %v2830
        %v2966 = vpop.f32.mrf.mxu0
        %v2967 = vadd.f32 0.0, %v2966
        %v2968 = vpop.f32.mrf.mxu0
        %v2969 = vpop.f32.mrf.mxu0
        %v2970 = vadd.f32 0.0, %v2969
        %v2971 = vpop.f32.mrf.mxu0
        %2972 = vmatprep.mubr.bf16.mxu0 0
        %2973 = vmatmul.mubr.bf16.gmra.mxu0 %v2833
        %v2974 = vpop.f32.mrf.mxu0
        %v2975 = vadd.f32 0.0, %v2974
        %v2976 = vpop.f32.mrf.mxu0
        %v2977 = vpop.f32.mrf.mxu0
        %v2978 = vadd.f32 0.0, %v2977
        %v2979 = vpop.f32.mrf.mxu0
        %2980 = vmatprep.mubr.bf16.mxu0 0
        %2981 = vmatmul.mubr.bf16.gmra.mxu0 %v2836
        %v2982 = vpop.f32.mrf.mxu0
        %v2983 = vadd.f32 0.0, %v2982
        %v2984 = vpop.f32.mrf.mxu0
        %v2985 = vpop.f32.mrf.mxu0
        %v2986 = vadd.f32 0.0, %v2985
        %v2987 = vpop.f32.mrf.mxu0
        %2988 = vmatprep.mubr.bf16.mxu0 0
        %2989 = vmatmul.mubr.bf16.gmra.mxu0 %v2839
        %v2990 = vpop.f32.mrf.mxu0
        %v2991 = vadd.f32 0.0, %v2990
        %v2992 = vpop.f32.mrf.mxu0
        %v2993 = vpop.f32.mrf.mxu0
        %v2994 = vadd.f32 0.0, %v2993
        %v2995 = vpop.f32.mrf.mxu0
        %2996 = vmatprep.mubr.bf16.mxu0 0
        %2997 = vmatmul.mubr.bf16.gmra.mxu0 %v2842
        %v2998 = vpop.f32.mrf.mxu0
        %v2999 = vadd.f32 0.0, %v2998
        %v3000 = vpop.f32.mrf.mxu0
        %v3001 = vpop.f32.mrf.mxu0
        %v3002 = vadd.f32 0.0, %v3001
        %v3003 = vpop.f32.mrf.mxu0
        %3004 = vdwg.mxu0
        %v3005 = vadd.f32 %v2635, %v2879
        %v3006 = vadd.f32 %v2636, %v2882
        %v3007 = vadd.f32 %v2637, %v2887
        %v3008 = vadd.f32 %v2638, %v2890
        %v3009 = vadd.f32 %v2639, %v2895
        %v3010 = vadd.f32 %v2640, %v2898
        %v3011 = vadd.f32 %v2641, %v2903
        %v3012 = vadd.f32 %v2642, %v2906
        %v3013 = vadd.f32 %v2643, %v2911
        %v3014 = vadd.f32 %v2644, %v2914
        %v3015 = vadd.f32 %v2645, %v2919
        %v3016 = vadd.f32 %v2646, %v2922
        %v3017 = vadd.f32 %v2647, %v2927
        %v3018 = vadd.f32 %v2648, %v2930
        %v3019 = vadd.f32 %v2649, %v2935
        %v3020 = vadd.f32 %v2650, %v2938
        %v3021 = vadd.f32 %v2651, %v2943
        %v3022 = vadd.f32 %v2652, %v2946
        %v3023 = vadd.f32 %v2653, %v2951
        %v3024 = vadd.f32 %v2654, %v2954
        %v3025 = vadd.f32 %v2655, %v2959
        %v3026 = vadd.f32 %v2656, %v2962
        %v3027 = vadd.f32 %v2657, %v2967
        %v3028 = vadd.f32 %v2658, %v2970
        %v3029 = vadd.f32 %v2659, %v2975
        %v3030 = vadd.f32 %v2660, %v2978
        %v3031 = vadd.f32 %v2661, %v2983
        %v3032 = vadd.f32 %v2662, %v2986
        %v3033 = vadd.f32 %v2663, %v2991
        %v3034 = vadd.f32 %v2664, %v2994
        %v3035 = vadd.f32 %v2665, %v2999
        %v3036 = vadd.f32 %v2666, %v3002
        %v3037 = vld [vmem:[%s1065] sm:$0xf]
        %v3038 = vld [vmem:[%s1065 + $0x4] sm:$0xf]
        %v3039 = vld [vmem:[%s1065 + $0x8] sm:$0x1]
        %v3040 = vld [vmem:[%s1065 + $0xc] sm:$0xf]
        %v3041 = vld [vmem:[%s1065 + $0x10] sm:$0xf]
        %v3042 = vld [vmem:[%s1065 + $0x14] sm:$0x1]
        %v3043 = vld [vmem:[%s1065 + $0x18] sm:$0xf]
        %v3044 = vld [vmem:[%s1065 + $0x1c] sm:$0xf]
        %v3045 = vld [vmem:[%s1065 + $0x20] sm:$0x1]
        %v3046 = vld [vmem:[%s1065 + $0x24] sm:$0xf]
        %v3047 = vld [vmem:[%s1065 + $0x28] sm:$0xf]
        %v3048 = vld [vmem:[%s1065 + $0x2c] sm:$0x1]
        %v3049 = vld [vmem:[%s1065 + $0x30] sm:$0xf]
        %v3050 = vld [vmem:[%s1065 + $0x34] sm:$0xf]
        %v3051 = vld [vmem:[%s1065 + $0x38] sm:$0x1]
        %v3052 = vld [vmem:[%s1065 + $0x3c] sm:$0xf]
        %v3053 = vld [vmem:[%s1065 + $0x40] sm:$0xf]
        %v3054 = vld [vmem:[%s1065 + $0x44] sm:$0x1]
        %v3055 = vld [vmem:[%s1065 + $0x48] sm:$0xf]
        %v3056 = vld [vmem:[%s1065 + $0x4c] sm:$0xf]
        %v3057 = vld [vmem:[%s1065 + $0x50] sm:$0x1]
        %v3058 = vld [vmem:[%s1065 + $0x54] sm:$0xf]
        %v3059 = vld [vmem:[%s1065 + $0x58] sm:$0xf]
        %v3060 = vld [vmem:[%s1065 + $0x5c] sm:$0x1]
        %v3061 = vld [vmem:[%s1065 + $0x60] sm:$0xf]
        %v3062 = vld [vmem:[%s1065 + $0x64] sm:$0xf]
        %v3063 = vld [vmem:[%s1065 + $0x68] sm:$0x1]
        %v3064 = vld [vmem:[%s1065 + $0x6c] sm:$0xf]
        %v3065 = vld [vmem:[%s1065 + $0x70] sm:$0xf]
        %v3066 = vld [vmem:[%s1065 + $0x74] sm:$0x1]
        %v3067 = vld [vmem:[%s1065 + $0x78] sm:$0xf]
        %v3068 = vld [vmem:[%s1065 + $0x7c] sm:$0xf]
        %v3069 = vld [vmem:[%s1065 + $0x80] sm:$0x1]
        %v3070 = vld [vmem:[%s1065 + $0x84] sm:$0xf]
        %v3071 = vld [vmem:[%s1065 + $0x88] sm:$0xf]
        %v3072 = vld [vmem:[%s1065 + $0x8c] sm:$0x1]
        %v3073 = vld [vmem:[%s1065 + $0x90] sm:$0xf]
        %v3074 = vld [vmem:[%s1065 + $0x94] sm:$0xf]
        %v3075 = vld [vmem:[%s1065 + $0x98] sm:$0x1]
        %v3076 = vld [vmem:[%s1065 + $0x9c] sm:$0xf]
        %v3077 = vld [vmem:[%s1065 + $0xa0] sm:$0xf]
        %v3078 = vld [vmem:[%s1065 + $0xa4] sm:$0x1]
        %v3079 = vld [vmem:[%s1065 + $0xa8] sm:$0xf]
        %v3080 = vld [vmem:[%s1065 + $0xac] sm:$0xf]
        %v3081 = vld [vmem:[%s1065 + $0xb0] sm:$0x1]
        %v3082 = vld [vmem:[%s1065 + $0xb4] sm:$0xf]
        %v3083 = vld [vmem:[%s1065 + $0xb8] sm:$0xf]
        %v3084 = vld [vmem:[%s1065 + $0xbc] sm:$0x1]
        %v3086 = vshrl.u32 %v3037, 16
        %v3088 = vrot.slane %v3086, 4
        %v3089 = vshll.u32 %v3037, 16
        %v3091 = vrot.slane %v3089, 5
        %v3092 = vor.u32 %v3088, %v3091
        %v3093 = vrot.slane %v3092, 4
        %v3095 = vshll.u32 %v3038, 16
        %v3097 = vrot.slane %v3095, 5
        %v3098 = vsel %vm1237, %v3093, %v3097
        %v3099 = vshrl.u32 %v3038, 16
        %v3101 = vrot.slane %v3099, 4
        %v3102 = vor.u32 %v3101, %v3097
        %v3103 = vrot.slane %v3102, 4
        %v3105 = vshll.u32 %v3039, 16
        %v3107 = vrot.slane %v3105, 5
        %v3108 = vsel %vm1237, %v3103, %v3107
        %v3110 = vshrl.u32 %v3040, 16
        %v3112 = vrot.slane %v3110, 4
        %v3113 = vshll.u32 %v3040, 16
        %v3115 = vrot.slane %v3113, 5
        %v3116 = vor.u32 %v3112, %v3115
        %v3117 = vrot.slane %v3116, 4
        %v3119 = vshll.u32 %v3041, 16
        %v3121 = vrot.slane %v3119, 5
        %v3122 = vsel %vm1237, %v3117, %v3121
        %v3123 = vshrl.u32 %v3041, 16
        %v3125 = vrot.slane %v3123, 4
        %v3126 = vor.u32 %v3125, %v3121
        %v3127 = vrot.slane %v3126, 4
        %v3129 = vshll.u32 %v3042, 16
        %v3131 = vrot.slane %v3129, 5
        %v3132 = vsel %vm1237, %v3127, %v3131
        %v3134 = vshrl.u32 %v3043, 16
        %v3136 = vrot.slane %v3134, 4
        %v3137 = vshll.u32 %v3043, 16
        %v3139 = vrot.slane %v3137, 5
        %v3140 = vor.u32 %v3136, %v3139
        %v3141 = vrot.slane %v3140, 4
        %v3143 = vshll.u32 %v3044, 16
        %v3145 = vrot.slane %v3143, 5
        %v3146 = vsel %vm1237, %v3141, %v3145
        %v3147 = vshrl.u32 %v3044, 16
        %v3149 = vrot.slane %v3147, 4
        %v3150 = vor.u32 %v3149, %v3145
        %v3151 = vrot.slane %v3150, 4
        %v3153 = vshll.u32 %v3045, 16
        %v3155 = vrot.slane %v3153, 5
        %v3156 = vsel %vm1237, %v3151, %v3155
        %v3158 = vshrl.u32 %v3046, 16
        %v3160 = vrot.slane %v3158, 4
        %v3161 = vshll.u32 %v3046, 16
        %v3163 = vrot.slane %v3161, 5
        %v3164 = vor.u32 %v3160, %v3163
        %v3165 = vrot.slane %v3164, 4
        %v3167 = vshll.u32 %v3047, 16
        %v3169 = vrot.slane %v3167, 5
        %v3170 = vsel %vm1237, %v3165, %v3169
        %v3171 = vshrl.u32 %v3047, 16
        %v3173 = vrot.slane %v3171, 4
        %v3174 = vor.u32 %v3173, %v3169
        %v3175 = vrot.slane %v3174, 4
        %v3177 = vshll.u32 %v3048, 16
        %v3179 = vrot.slane %v3177, 5
        %v3180 = vsel %vm1237, %v3175, %v3179
        %v3182 = vshrl.u32 %v3049, 16
        %v3184 = vrot.slane %v3182, 4
        %v3185 = vshll.u32 %v3049, 16
        %v3187 = vrot.slane %v3185, 5
        %v3188 = vor.u32 %v3184, %v3187
        %v3189 = vrot.slane %v3188, 4
        %v3191 = vshll.u32 %v3050, 16
        %v3193 = vrot.slane %v3191, 5
        %v3194 = vsel %vm1237, %v3189, %v3193
        %v3195 = vshrl.u32 %v3050, 16
        %v3197 = vrot.slane %v3195, 4
        %v3198 = vor.u32 %v3197, %v3193
        %v3199 = vrot.slane %v3198, 4
        %v3201 = vshll.u32 %v3051, 16
        %v3203 = vrot.slane %v3201, 5
        %v3204 = vsel %vm1237, %v3199, %v3203
        %v3206 = vshrl.u32 %v3052, 16
        %v3208 = vrot.slane %v3206, 4
        %v3209 = vshll.u32 %v3052, 16
        %v3211 = vrot.slane %v3209, 5
        %v3212 = vor.u32 %v3208, %v3211
        %v3213 = vrot.slane %v3212, 4
        %v3215 = vshll.u32 %v3053, 16
        %v3217 = vrot.slane %v3215, 5
        %v3218 = vsel %vm1237, %v3213, %v3217
        %v3219 = vshrl.u32 %v3053, 16
        %v3221 = vrot.slane %v3219, 4
        %v3222 = vor.u32 %v3221, %v3217
        %v3223 = vrot.slane %v3222, 4
        %v3225 = vshll.u32 %v3054, 16
        %v3227 = vrot.slane %v3225, 5
        %v3228 = vsel %vm1237, %v3223, %v3227
        %v3230 = vshrl.u32 %v3055, 16
        %v3232 = vrot.slane %v3230, 4
        %v3233 = vshll.u32 %v3055, 16
        %v3235 = vrot.slane %v3233, 5
        %v3236 = vor.u32 %v3232, %v3235
        %v3237 = vrot.slane %v3236, 4
        %v3239 = vshll.u32 %v3056, 16
        %v3241 = vrot.slane %v3239, 5
        %v3242 = vsel %vm1237, %v3237, %v3241
        %v3243 = vshrl.u32 %v3056, 16
        %v3245 = vrot.slane %v3243, 4
        %v3246 = vor.u32 %v3245, %v3241
        %v3247 = vrot.slane %v3246, 4
        %v3249 = vshll.u32 %v3057, 16
        %v3251 = vrot.slane %v3249, 5
        %v3252 = vsel %vm1237, %v3247, %v3251
        %v3254 = vshrl.u32 %v3058, 16
        %v3256 = vrot.slane %v3254, 4
        %v3257 = vshll.u32 %v3058, 16
        %v3259 = vrot.slane %v3257, 5
        %v3260 = vor.u32 %v3256, %v3259
        %v3261 = vrot.slane %v3260, 4
        %v3263 = vshll.u32 %v3059, 16
        %v3265 = vrot.slane %v3263, 5
        %v3266 = vsel %vm1237, %v3261, %v3265
        %v3267 = vshrl.u32 %v3059, 16
        %v3269 = vrot.slane %v3267, 4
        %v3270 = vor.u32 %v3269, %v3265
        %v3271 = vrot.slane %v3270, 4
        %v3273 = vshll.u32 %v3060, 16
        %v3275 = vrot.slane %v3273, 5
        %v3276 = vsel %vm1237, %v3271, %v3275
        %v3278 = vshrl.u32 %v3061, 16
        %v3280 = vrot.slane %v3278, 4
        %v3281 = vshll.u32 %v3061, 16
        %v3283 = vrot.slane %v3281, 5
        %v3284 = vor.u32 %v3280, %v3283
        %v3285 = vrot.slane %v3284, 4
        %v3287 = vshll.u32 %v3062, 16
        %v3289 = vrot.slane %v3287, 5
        %v3290 = vsel %vm1237, %v3285, %v3289
        %v3291 = vshrl.u32 %v3062, 16
        %v3293 = vrot.slane %v3291, 4
        %v3294 = vor.u32 %v3293, %v3289
        %v3295 = vrot.slane %v3294, 4
        %v3297 = vshll.u32 %v3063, 16
        %v3299 = vrot.slane %v3297, 5
        %v3300 = vsel %vm1237, %v3295, %v3299
        %v3302 = vshrl.u32 %v3064, 16
        %v3304 = vrot.slane %v3302, 4
        %v3305 = vshll.u32 %v3064, 16
        %v3307 = vrot.slane %v3305, 5
        %v3308 = vor.u32 %v3304, %v3307
        %v3309 = vrot.slane %v3308, 4
        %v3311 = vshll.u32 %v3065, 16
        %v3313 = vrot.slane %v3311, 5
        %v3314 = vsel %vm1237, %v3309, %v3313
        %v3315 = vshrl.u32 %v3065, 16
        %v3317 = vrot.slane %v3315, 4
        %v3318 = vor.u32 %v3317, %v3313
        %v3319 = vrot.slane %v3318, 4
        %v3321 = vshll.u32 %v3066, 16
        %v3323 = vrot.slane %v3321, 5
        %v3324 = vsel %vm1237, %v3319, %v3323
        %v3326 = vshrl.u32 %v3067, 16
        %v3328 = vrot.slane %v3326, 4
        %v3329 = vshll.u32 %v3067, 16
        %v3331 = vrot.slane %v3329, 5
        %v3332 = vor.u32 %v3328, %v3331
        %v3333 = vrot.slane %v3332, 4
        %v3335 = vshll.u32 %v3068, 16
        %v3337 = vrot.slane %v3335, 5
        %v3338 = vsel %vm1237, %v3333, %v3337
        %v3339 = vshrl.u32 %v3068, 16
        %v3341 = vrot.slane %v3339, 4
        %v3342 = vor.u32 %v3341, %v3337
        %v3343 = vrot.slane %v3342, 4
        %v3345 = vshll.u32 %v3069, 16
        %v3347 = vrot.slane %v3345, 5
        %v3348 = vsel %vm1237, %v3343, %v3347
        %v3350 = vshrl.u32 %v3070, 16
        %v3352 = vrot.slane %v3350, 4
        %v3353 = vshll.u32 %v3070, 16
        %v3355 = vrot.slane %v3353, 5
        %v3356 = vor.u32 %v3352, %v3355
        %v3357 = vrot.slane %v3356, 4
        %v3359 = vshll.u32 %v3071, 16
        %v3361 = vrot.slane %v3359, 5
        %v3362 = vsel %vm1237, %v3357, %v3361
        %v3363 = vshrl.u32 %v3071, 16
        %v3365 = vrot.slane %v3363, 4
        %v3366 = vor.u32 %v3365, %v3361
        %v3367 = vrot.slane %v3366, 4
        %v3369 = vshll.u32 %v3072, 16
        %v3371 = vrot.slane %v3369, 5
        %v3372 = vsel %vm1237, %v3367, %v3371
        %v3374 = vshrl.u32 %v3073, 16
        %v3376 = vrot.slane %v3374, 4
        %v3377 = vshll.u32 %v3073, 16
        %v3379 = vrot.slane %v3377, 5
        %v3380 = vor.u32 %v3376, %v3379
        %v3381 = vrot.slane %v3380, 4
        %v3383 = vshll.u32 %v3074, 16
        %v3385 = vrot.slane %v3383, 5
        %v3386 = vsel %vm1237, %v3381, %v3385
        %v3387 = vshrl.u32 %v3074, 16
        %v3389 = vrot.slane %v3387, 4
        %v3390 = vor.u32 %v3389, %v3385
        %v3391 = vrot.slane %v3390, 4
        %v3393 = vshll.u32 %v3075, 16
        %v3395 = vrot.slane %v3393, 5
        %v3396 = vsel %vm1237, %v3391, %v3395
        %v3398 = vshrl.u32 %v3076, 16
        %v3400 = vrot.slane %v3398, 4
        %v3401 = vshll.u32 %v3076, 16
        %v3403 = vrot.slane %v3401, 5
        %v3404 = vor.u32 %v3400, %v3403
        %v3405 = vrot.slane %v3404, 4
        %v3407 = vshll.u32 %v3077, 16
        %v3409 = vrot.slane %v3407, 5
        %v3410 = vsel %vm1237, %v3405, %v3409
        %v3411 = vshrl.u32 %v3077, 16
        %v3413 = vrot.slane %v3411, 4
        %v3414 = vor.u32 %v3413, %v3409
        %v3415 = vrot.slane %v3414, 4
        %v3417 = vshll.u32 %v3078, 16
        %v3419 = vrot.slane %v3417, 5
        %v3420 = vsel %vm1237, %v3415, %v3419
        %v3422 = vshrl.u32 %v3079, 16
        %v3424 = vrot.slane %v3422, 4
        %v3425 = vshll.u32 %v3079, 16
        %v3427 = vrot.slane %v3425, 5
        %v3428 = vor.u32 %v3424, %v3427
        %v3429 = vrot.slane %v3428, 4
        %v3431 = vshll.u32 %v3080, 16
        %v3433 = vrot.slane %v3431, 5
        %v3434 = vsel %vm1237, %v3429, %v3433
        %v3435 = vshrl.u32 %v3080, 16
        %v3437 = vrot.slane %v3435, 4
        %v3438 = vor.u32 %v3437, %v3433
        %v3439 = vrot.slane %v3438, 4
        %v3441 = vshll.u32 %v3081, 16
        %v3443 = vrot.slane %v3441, 5
        %v3444 = vsel %vm1237, %v3439, %v3443
        %v3446 = vshrl.u32 %v3082, 16
        %v3448 = vrot.slane %v3446, 4
        %v3449 = vshll.u32 %v3082, 16
        %v3451 = vrot.slane %v3449, 5
        %v3452 = vor.u32 %v3448, %v3451
        %v3453 = vrot.slane %v3452, 4
        %v3455 = vshll.u32 %v3083, 16
        %v3457 = vrot.slane %v3455, 5
        %v3458 = vsel %vm1237, %v3453, %v3457
        %v3459 = vshrl.u32 %v3083, 16
        %v3461 = vrot.slane %v3459, 4
        %v3462 = vor.u32 %v3461, %v3457
        %v3463 = vrot.slane %v3462, 4
        %v3465 = vshll.u32 %v3084, 16
        %v3467 = vrot.slane %v3465, 5
        %v3468 = vsel %vm1237, %v3463, %v3467
        %s3469 = scalar_lea.vmem %s3, 64
        %v3470 = vld [vmem:[%s3469] sm:$0xf]
        %v3471 = vld [vmem:[%s3469 + $0x4] sm:$0xf]
        %v3472 = vld [vmem:[%s3469 + $0x8] sm:$0xf]
        %v3473 = vld [vmem:[%s3469 + $0xc] sm:$0xf]
        %v3474 = vunpack.c.l.b16 %v3098
        %v3475 = vunpack.c.l.b16 %v3108
        %v3476 = vunpack.c.l.b16 %v3122
        %v3477 = vunpack.c.l.b16 %v3132
        %v3478 = vunpack.c.l.b16 %v3146
        %v3479 = vunpack.c.l.b16 %v3156
        %v3480 = vunpack.c.l.b16 %v3170
        %v3481 = vunpack.c.l.b16 %v3180
        %v3482 = vunpack.c.l.b16 %v3194
        %v3483 = vunpack.c.l.b16 %v3204
        %v3484 = vunpack.c.l.b16 %v3218
        %v3485 = vunpack.c.l.b16 %v3228
        %v3486 = vunpack.c.l.b16 %v3242
        %v3487 = vunpack.c.l.b16 %v3252
        %v3488 = vunpack.c.l.b16 %v3266
        %v3489 = vunpack.c.l.b16 %v3276
        %v3490 = vunpack.c.l.b16 %v3290
        %v3491 = vunpack.c.l.b16 %v3300
        %v3492 = vunpack.c.l.b16 %v3314
        %v3493 = vunpack.c.l.b16 %v3324
        %v3494 = vunpack.c.l.b16 %v3338
        %v3495 = vunpack.c.l.b16 %v3348
        %v3496 = vunpack.c.l.b16 %v3362
        %v3497 = vunpack.c.l.b16 %v3372
        %v3498 = vunpack.c.l.b16 %v3386
        %v3499 = vunpack.c.l.b16 %v3396
        %v3500 = vunpack.c.l.b16 %v3410
        %v3501 = vunpack.c.l.b16 %v3420
        %v3502 = vunpack.c.l.b16 %v3434
        %v3503 = vunpack.c.l.b16 %v3444
        %v3504 = vunpack.c.l.b16 %v3458
        %v3505 = vunpack.c.l.b16 %v3468
        %v3506 = vpack.c.b16 %v3475, %v3474
        %v3507 = vpack.c.b16 %v3477, %v3476
        %v3508 = vpack.c.b16 %v3479, %v3478
        %v3509 = vpack.c.b16 %v3481, %v3480
        %v3510 = vpack.c.b16 %v3483, %v3482
        %v3511 = vpack.c.b16 %v3485, %v3484
        %v3512 = vpack.c.b16 %v3487, %v3486
        %v3513 = vpack.c.b16 %v3489, %v3488
        %v3514 = vpack.c.b16 %v3491, %v3490
        %v3515 = vpack.c.b16 %v3493, %v3492
        %v3516 = vpack.c.b16 %v3495, %v3494
        %v3517 = vpack.c.b16 %v3497, %v3496
        %v3518 = vpack.c.b16 %v3499, %v3498
        %v3519 = vpack.c.b16 %v3501, %v3500
        %v3520 = vpack.c.b16 %v3503, %v3502
        %v3521 = vpack.c.b16 %v3505, %v3504
        %v3526 = vunpack.c.l.b16 %v3470
        %v3527 = vunpack.c.l.b16 %v3471
        %v3528 = vunpack.c.l.b16 %v3472
        %v3529 = vunpack.c.l.b16 %v3473
        %v3530 = vpack.c.b16 %v3527, %v3526
        %v3531 = vpack.c.b16 %v3529, %v3528
        %v3535 = vsel %vm1687, %v3506, 0
        %v3538 = vsel %vm1687, %v3507, 0
        %v3541 = vsel %vm1687, %v3508, 0
        %v3544 = vsel %vm1687, %v3509, 0
        %v3547 = vsel %vm1687, %v3510, 0
        %v3550 = vsel %vm1687, %v3511, 0
        %v3553 = vsel %vm1687, %v3512, 0
        %v3556 = vsel %vm1687, %v3513, 0
        %v3559 = vsel %vm1687, %v3514, 0
        %v3562 = vsel %vm1687, %v3515, 0
        %v3565 = vsel %vm1687, %v3516, 0
        %v3568 = vsel %vm1687, %v3517, 0
        %v3571 = vsel %vm1687, %v3518, 0
        %v3574 = vsel %vm1687, %v3519, 0
        %v3577 = vsel %vm1687, %v3520, 0
        %v3580 = vsel %vm1687, %v3521, 0
        %3582 = vmatprep.subr.bf16.mxu0 0
        %3583 = vmatpush1.bf16.msra.mxu0 0
        %3584 = vmatprep.subr.bf16.mxu0 0
        %3585 = vmatpush1.bf16.msra.mxu0 0
        %3586 = vmatprep.subr.bf16.mxu0 0
        %3587 = vmatpush1.bf16.msra.mxu0 0
        %3588 = vmatprep.subr.bf16.mxu0 0
        %3589 = vmatpush1.bf16.msra.mxu0 0
        %3590 = vmatprep.subr.bf16.mxu0 0
        %3591 = vmatpush1.bf16.msra.mxu0 0
        %3592 = vmatprep.subr.bf16.mxu0 0
        %3593 = vmatpush1.bf16.msra.mxu0 0
        %3594 = vmatprep.subr.bf16.mxu0 0
        %3595 = vmatpush1.bf16.msra.mxu0 %v3531
        %3596 = vmatprep.subr.bf16.mxu0 0
        %3597 = vmatpush1.bf16.msra.mxu0 %v3530
        %3598 = vmatprep.subr.bf16.mxu0 0
        %3599 = vmatpush2.bf16.msra.mxu0 0
        %3600 = vmatprep.subr.bf16.mxu0 0
        %3601 = vmatpush2.bf16.msra.mxu0 0
        %3602 = vmatprep.subr.bf16.mxu0 0
        %3603 = vmatpush2.bf16.msra.mxu0 0
        %3604 = vmatprep.subr.bf16.mxu0 0
        %3605 = vmatpush2.bf16.msra.mxu0 0
        %3606 = vmatprep.subr.bf16.mxu0 0
        %3607 = vmatpush2.bf16.msra.mxu0 0
        %3608 = vmatprep.subr.bf16.mxu0 0
        %3609 = vmatpush2.bf16.msra.mxu0 0
        %3610 = vmatprep.subr.bf16.mxu0 0
        %3611 = vmatpush2.bf16.msra.mxu0 0
        %3612 = vmatprep.subr.bf16.mxu0 0
        %3613 = vmatpush2.bf16.msra.mxu0 0
        %3614 = vmatprep.mubr.bf16.mxu0 0
        %3615 = vmatmul.mubr.bf16.gmra.mxu0 %v3535
        %v3616 = vpop.f32.mrf.mxu0
        %v3617 = vadd.f32 0.0, %v3616
        %v3618 = vpop.f32.mrf.mxu0
        %v3619 = vpop.f32.mrf.mxu0
        %v3620 = vadd.f32 0.0, %v3619
        %v3621 = vpop.f32.mrf.mxu0
        %3622 = vmatprep.mubr.bf16.mxu0 0
        %3623 = vmatmul.mubr.bf16.gmra.mxu0 %v3538
        %v3624 = vpop.f32.mrf.mxu0
        %v3625 = vadd.f32 0.0, %v3624
        %v3626 = vpop.f32.mrf.mxu0
        %v3627 = vpop.f32.mrf.mxu0
        %v3628 = vadd.f32 0.0, %v3627
        %v3629 = vpop.f32.mrf.mxu0
        %3630 = vmatprep.mubr.bf16.mxu0 0
        %3631 = vmatmul.mubr.bf16.gmra.mxu0 %v3541
        %v3632 = vpop.f32.mrf.mxu0
        %v3633 = vadd.f32 0.0, %v3632
        %v3634 = vpop.f32.mrf.mxu0
        %v3635 = vpop.f32.mrf.mxu0
        %v3636 = vadd.f32 0.0, %v3635
        %v3637 = vpop.f32.mrf.mxu0
        %3638 = vmatprep.mubr.bf16.mxu0 0
        %3639 = vmatmul.mubr.bf16.gmra.mxu0 %v3544
        %v3640 = vpop.f32.mrf.mxu0
        %v3641 = vadd.f32 0.0, %v3640
        %v3642 = vpop.f32.mrf.mxu0
        %v3643 = vpop.f32.mrf.mxu0
        %v3644 = vadd.f32 0.0, %v3643
        %v3645 = vpop.f32.mrf.mxu0
        %3646 = vmatprep.mubr.bf16.mxu0 0
        %3647 = vmatmul.mubr.bf16.gmra.mxu0 %v3547
        %v3648 = vpop.f32.mrf.mxu0
        %v3649 = vadd.f32 0.0, %v3648
        %v3650 = vpop.f32.mrf.mxu0
        %v3651 = vpop.f32.mrf.mxu0
        %v3652 = vadd.f32 0.0, %v3651
        %v3653 = vpop.f32.mrf.mxu0
        %3654 = vmatprep.mubr.bf16.mxu0 0
        %3655 = vmatmul.mubr.bf16.gmra.mxu0 %v3550
        %v3656 = vpop.f32.mrf.mxu0
        %v3657 = vadd.f32 0.0, %v3656
        %v3658 = vpop.f32.mrf.mxu0
        %v3659 = vpop.f32.mrf.mxu0
        %v3660 = vadd.f32 0.0, %v3659
        %v3661 = vpop.f32.mrf.mxu0
        %3662 = vmatprep.mubr.bf16.mxu0 0
        %3663 = vmatmul.mubr.bf16.gmra.mxu0 %v3553
        %v3664 = vpop.f32.mrf.mxu0
        %v3665 = vadd.f32 0.0, %v3664
        %v3666 = vpop.f32.mrf.mxu0
        %v3667 = vpop.f32.mrf.mxu0
        %v3668 = vadd.f32 0.0, %v3667
        %v3669 = vpop.f32.mrf.mxu0
        %3670 = vmatprep.mubr.bf16.mxu0 0
        %3671 = vmatmul.mubr.bf16.gmra.mxu0 %v3556
        %v3672 = vpop.f32.mrf.mxu0
        %v3673 = vadd.f32 0.0, %v3672
        %v3674 = vpop.f32.mrf.mxu0
        %v3675 = vpop.f32.mrf.mxu0
        %v3676 = vadd.f32 0.0, %v3675
        %v3677 = vpop.f32.mrf.mxu0
        %3678 = vmatprep.mubr.bf16.mxu0 0
        %3679 = vmatmul.mubr.bf16.gmra.mxu0 %v3559
        %v3680 = vpop.f32.mrf.mxu0
        %v3681 = vadd.f32 0.0, %v3680
        %v3682 = vpop.f32.mrf.mxu0
        %v3683 = vpop.f32.mrf.mxu0
        %v3684 = vadd.f32 0.0, %v3683
        %v3685 = vpop.f32.mrf.mxu0
        %3686 = vmatprep.mubr.bf16.mxu0 0
        %3687 = vmatmul.mubr.bf16.gmra.mxu0 %v3562
        %v3688 = vpop.f32.mrf.mxu0
        %v3689 = vadd.f32 0.0, %v3688
        %v3690 = vpop.f32.mrf.mxu0
        %v3691 = vpop.f32.mrf.mxu0
        %v3692 = vadd.f32 0.0, %v3691
        %v3693 = vpop.f32.mrf.mxu0
        %3694 = vmatprep.mubr.bf16.mxu0 0
        %3695 = vmatmul.mubr.bf16.gmra.mxu0 %v3565
        %v3696 = vpop.f32.mrf.mxu0
        %v3697 = vadd.f32 0.0, %v3696
        %v3698 = vpop.f32.mrf.mxu0
        %v3699 = vpop.f32.mrf.mxu0
        %v3700 = vadd.f32 0.0, %v3699
        %v3701 = vpop.f32.mrf.mxu0
        %3702 = vmatprep.mubr.bf16.mxu0 0
        %3703 = vmatmul.mubr.bf16.gmra.mxu0 %v3568
        %v3704 = vpop.f32.mrf.mxu0
        %v3705 = vadd.f32 0.0, %v3704
        %v3706 = vpop.f32.mrf.mxu0
        %v3707 = vpop.f32.mrf.mxu0
        %v3708 = vadd.f32 0.0, %v3707
        %v3709 = vpop.f32.mrf.mxu0
        %3710 = vmatprep.mubr.bf16.mxu0 0
        %3711 = vmatmul.mubr.bf16.gmra.mxu0 %v3571
        %v3712 = vpop.f32.mrf.mxu0
        %v3713 = vadd.f32 0.0, %v3712
        %v3714 = vpop.f32.mrf.mxu0
        %v3715 = vpop.f32.mrf.mxu0
        %v3716 = vadd.f32 0.0, %v3715
        %v3717 = vpop.f32.mrf.mxu0
        %3718 = vmatprep.mubr.bf16.mxu0 0
        %3719 = vmatmul.mubr.bf16.gmra.mxu0 %v3574
        %v3720 = vpop.f32.mrf.mxu0
        %v3721 = vadd.f32 0.0, %v3720
        %v3722 = vpop.f32.mrf.mxu0
        %v3723 = vpop.f32.mrf.mxu0
        %v3724 = vadd.f32 0.0, %v3723
        %v3725 = vpop.f32.mrf.mxu0
        %3726 = vmatprep.mubr.bf16.mxu0 0
        %3727 = vmatmul.mubr.bf16.gmra.mxu0 %v3577
        %v3728 = vpop.f32.mrf.mxu0
        %v3729 = vadd.f32 0.0, %v3728
        %v3730 = vpop.f32.mrf.mxu0
        %v3731 = vpop.f32.mrf.mxu0
        %v3732 = vadd.f32 0.0, %v3731
        %v3733 = vpop.f32.mrf.mxu0
        %3734 = vmatprep.mubr.bf16.mxu0 0
        %3735 = vmatmul.mubr.bf16.gmra.mxu0 %v3580
        %v3736 = vpop.f32.mrf.mxu0
        %v3737 = vadd.f32 0.0, %v3736
        %v3738 = vpop.f32.mrf.mxu0
        %v3739 = vpop.f32.mrf.mxu0
        %v3740 = vadd.f32 0.0, %v3739
        %v3741 = vpop.f32.mrf.mxu0
        %3742 = vdwg.mxu0
        %v3743 = vadd.f32 %v3005, %v3617
        %v3744 = vadd.f32 %v3006, %v3620
        %v3745 = vadd.f32 %v3007, %v3625
        %v3746 = vadd.f32 %v3008, %v3628
        %v3747 = vadd.f32 %v3009, %v3633
        %v3748 = vadd.f32 %v3010, %v3636
        %v3749 = vadd.f32 %v3011, %v3641
        %v3750 = vadd.f32 %v3012, %v3644
        %v3751 = vadd.f32 %v3013, %v3649
        %v3752 = vadd.f32 %v3014, %v3652
        %v3753 = vadd.f32 %v3015, %v3657
        %v3754 = vadd.f32 %v3016, %v3660
        %v3755 = vadd.f32 %v3017, %v3665
        %v3756 = vadd.f32 %v3018, %v3668
        %v3757 = vadd.f32 %v3019, %v3673
        %v3758 = vadd.f32 %v3020, %v3676
        %v3759 = vadd.f32 %v3021, %v3681
        %v3760 = vadd.f32 %v3022, %v3684
        %v3761 = vadd.f32 %v3023, %v3689
        %v3762 = vadd.f32 %v3024, %v3692
        %v3763 = vadd.f32 %v3025, %v3697
        %v3764 = vadd.f32 %v3026, %v3700
        %v3765 = vadd.f32 %v3027, %v3705
        %v3766 = vadd.f32 %v3028, %v3708
        %v3767 = vadd.f32 %v3029, %v3713
        %v3768 = vadd.f32 %v3030, %v3716
        %v3769 = vadd.f32 %v3031, %v3721
        %v3770 = vadd.f32 %v3032, %v3724
        %v3771 = vadd.f32 %v3033, %v3729
        %v3772 = vadd.f32 %v3034, %v3732
        %v3773 = vadd.f32 %v3035, %v3737
        %v3774 = vadd.f32 %v3036, %v3740
        %v3775 = vld [vmem:[%s1065] sm:$0xe]
        %v3776 = vld [vmem:[%s1065 + $0xc] sm:$0xe]
        %v3777 = vld [vmem:[%s1065 + $0x18] sm:$0xe]
        %v3778 = vld [vmem:[%s1065 + $0x24] sm:$0xe]
        %v3779 = vld [vmem:[%s1065 + $0x30] sm:$0xe]
        %v3780 = vld [vmem:[%s1065 + $0x3c] sm:$0xe]
        %v3781 = vld [vmem:[%s1065 + $0x48] sm:$0xe]
        %v3782 = vld [vmem:[%s1065 + $0x54] sm:$0xe]
        %v3783 = vld [vmem:[%s1065 + $0x60] sm:$0xe]
        %v3784 = vld [vmem:[%s1065 + $0x6c] sm:$0xe]
        %v3785 = vld [vmem:[%s1065 + $0x78] sm:$0xe]
        %v3786 = vld [vmem:[%s1065 + $0x84] sm:$0xe]
        %v3787 = vld [vmem:[%s1065 + $0x90] sm:$0xe]
        %v3788 = vld [vmem:[%s1065 + $0x9c] sm:$0xe]
        %v3789 = vld [vmem:[%s1065 + $0xa8] sm:$0xe]
        %v3790 = vld [vmem:[%s1065 + $0xb4] sm:$0xe]
        %v3839 = vrot.slane %v3775, 5
        %v3840 = vrot.slane %v3839, 4
        %v3841 = vrot.slane %v3038, 5
        %v3842 = vsel %vm2248, %v3840, %v3841
        %v3843 = vrot.slane %v3841, 4
        %v3844 = vrot.slane %v3039, 5
        %v3845 = vsel %vm2248, %v3843, %v3844
        %v3846 = vrot.slane %v3776, 5
        %v3847 = vrot.slane %v3846, 4
        %v3848 = vrot.slane %v3041, 5
        %v3849 = vsel %vm2248, %v3847, %v3848
        %v3850 = vrot.slane %v3848, 4
        %v3851 = vrot.slane %v3042, 5
        %v3852 = vsel %vm2248, %v3850, %v3851
        %v3853 = vrot.slane %v3777, 5
        %v3854 = vrot.slane %v3853, 4
        %v3855 = vrot.slane %v3044, 5
        %v3856 = vsel %vm2248, %v3854, %v3855
        %v3857 = vrot.slane %v3855, 4
        %v3858 = vrot.slane %v3045, 5
        %v3859 = vsel %vm2248, %v3857, %v3858
        %v3860 = vrot.slane %v3778, 5
        %v3861 = vrot.slane %v3860, 4
        %v3862 = vrot.slane %v3047, 5
        %v3863 = vsel %vm2248, %v3861, %v3862
        %v3864 = vrot.slane %v3862, 4
        %v3865 = vrot.slane %v3048, 5
        %v3866 = vsel %vm2248, %v3864, %v3865
        %v3867 = vrot.slane %v3779, 5
        %v3868 = vrot.slane %v3867, 4
        %v3869 = vrot.slane %v3050, 5
        %v3870 = vsel %vm2248, %v3868, %v3869
        %v3871 = vrot.slane %v3869, 4
        %v3872 = vrot.slane %v3051, 5
        %v3873 = vsel %vm2248, %v3871, %v3872
        %v3874 = vrot.slane %v3780, 5
        %v3875 = vrot.slane %v3874, 4
        %v3876 = vrot.slane %v3053, 5
        %v3877 = vsel %vm2248, %v3875, %v3876
        %v3878 = vrot.slane %v3876, 4
        %v3879 = vrot.slane %v3054, 5
        %v3880 = vsel %vm2248, %v3878, %v3879
        %v3881 = vrot.slane %v3781, 5
        %v3882 = vrot.slane %v3881, 4
        %v3883 = vrot.slane %v3056, 5
        %v3884 = vsel %vm2248, %v3882, %v3883
        %v3885 = vrot.slane %v3883, 4
        %v3886 = vrot.slane %v3057, 5
        %v3887 = vsel %vm2248, %v3885, %v3886
        %v3888 = vrot.slane %v3782, 5
        %v3889 = vrot.slane %v3888, 4
        %v3890 = vrot.slane %v3059, 5
        %v3891 = vsel %vm2248, %v3889, %v3890
        %v3892 = vrot.slane %v3890, 4
        %v3893 = vrot.slane %v3060, 5
        %v3894 = vsel %vm2248, %v3892, %v3893
        %v3895 = vrot.slane %v3783, 5
        %v3896 = vrot.slane %v3895, 4
        %v3897 = vrot.slane %v3062, 5
        %v3898 = vsel %vm2248, %v3896, %v3897
        %v3899 = vrot.slane %v3897, 4
        %v3900 = vrot.slane %v3063, 5
        %v3901 = vsel %vm2248, %v3899, %v3900
        %v3902 = vrot.slane %v3784, 5
        %v3903 = vrot.slane %v3902, 4
        %v3904 = vrot.slane %v3065, 5
        %v3905 = vsel %vm2248, %v3903, %v3904
        %v3906 = vrot.slane %v3904, 4
        %v3907 = vrot.slane %v3066, 5
        %v3908 = vsel %vm2248, %v3906, %v3907
        %v3909 = vrot.slane %v3785, 5
        %v3910 = vrot.slane %v3909, 4
        %v3911 = vrot.slane %v3068, 5
        %v3912 = vsel %vm2248, %v3910, %v3911
        %v3913 = vrot.slane %v3911, 4
        %v3914 = vrot.slane %v3069, 5
        %v3915 = vsel %vm2248, %v3913, %v3914
        %v3916 = vrot.slane %v3786, 5
        %v3917 = vrot.slane %v3916, 4
        %v3918 = vrot.slane %v3071, 5
        %v3919 = vsel %vm2248, %v3917, %v3918
        %v3920 = vrot.slane %v3918, 4
        %v3921 = vrot.slane %v3072, 5
        %v3922 = vsel %vm2248, %v3920, %v3921
        %v3923 = vrot.slane %v3787, 5
        %v3924 = vrot.slane %v3923, 4
        %v3925 = vrot.slane %v3074, 5
        %v3926 = vsel %vm2248, %v3924, %v3925
        %v3927 = vrot.slane %v3925, 4
        %v3928 = vrot.slane %v3075, 5
        %v3929 = vsel %vm2248, %v3927, %v3928
        %v3930 = vrot.slane %v3788, 5
        %v3931 = vrot.slane %v3930, 4
        %v3932 = vrot.slane %v3077, 5
        %v3933 = vsel %vm2248, %v3931, %v3932
        %v3934 = vrot.slane %v3932, 4
        %v3935 = vrot.slane %v3078, 5
        %v3936 = vsel %vm2248, %v3934, %v3935
        %v3937 = vrot.slane %v3789, 5
        %v3938 = vrot.slane %v3937, 4
        %v3939 = vrot.slane %v3080, 5
        %v3940 = vsel %vm2248, %v3938, %v3939
        %v3941 = vrot.slane %v3939, 4
        %v3942 = vrot.slane %v3081, 5
        %v3943 = vsel %vm2248, %v3941, %v3942
        %v3944 = vrot.slane %v3790, 5
        %v3945 = vrot.slane %v3944, 4
        %v3946 = vrot.slane %v3083, 5
        %v3947 = vsel %vm2248, %v3945, %v3946
        %v3948 = vrot.slane %v3946, 4
        %v3949 = vrot.slane %v3084, 5
        %v3950 = vsel %vm2248, %v3948, %v3949
        %s3951 = scalar_lea.vmem %s3, 80
        %v3952 = vld [vmem:[%s3951] sm:$0xf]
        %v3953 = vld [vmem:[%s3951 + $0x4] sm:$0xf]
        %v3954 = vld [vmem:[%s3951 + $0x8] sm:$0xf]
        %v3955 = vld [vmem:[%s3951 + $0xc] sm:$0xf]
        %v3956 = vunpack.c.l.b16 %v3842
        %v3957 = vunpack.c.l.b16 %v3845
        %v3958 = vunpack.c.l.b16 %v3849
        %v3959 = vunpack.c.l.b16 %v3852
        %v3960 = vunpack.c.l.b16 %v3856
        %v3961 = vunpack.c.l.b16 %v3859
        %v3962 = vunpack.c.l.b16 %v3863
        %v3963 = vunpack.c.l.b16 %v3866
        %v3964 = vunpack.c.l.b16 %v3870
        %v3965 = vunpack.c.l.b16 %v3873
        %v3966 = vunpack.c.l.b16 %v3877
        %v3967 = vunpack.c.l.b16 %v3880
        %v3968 = vunpack.c.l.b16 %v3884
        %v3969 = vunpack.c.l.b16 %v3887
        %v3970 = vunpack.c.l.b16 %v3891
        %v3971 = vunpack.c.l.b16 %v3894
        %v3972 = vunpack.c.l.b16 %v3898
        %v3973 = vunpack.c.l.b16 %v3901
        %v3974 = vunpack.c.l.b16 %v3905
        %v3975 = vunpack.c.l.b16 %v3908
        %v3976 = vunpack.c.l.b16 %v3912
        %v3977 = vunpack.c.l.b16 %v3915
        %v3978 = vunpack.c.l.b16 %v3919
        %v3979 = vunpack.c.l.b16 %v3922
        %v3980 = vunpack.c.l.b16 %v3926
        %v3981 = vunpack.c.l.b16 %v3929
        %v3982 = vunpack.c.l.b16 %v3933
        %v3983 = vunpack.c.l.b16 %v3936
        %v3984 = vunpack.c.l.b16 %v3940
        %v3985 = vunpack.c.l.b16 %v3943
        %v3986 = vunpack.c.l.b16 %v3947
        %v3987 = vunpack.c.l.b16 %v3950
        %v3988 = vpack.c.b16 %v3957, %v3956
        %v3989 = vpack.c.b16 %v3959, %v3958
        %v3990 = vpack.c.b16 %v3961, %v3960
        %v3991 = vpack.c.b16 %v3963, %v3962
        %v3992 = vpack.c.b16 %v3965, %v3964
        %v3993 = vpack.c.b16 %v3967, %v3966
        %v3994 = vpack.c.b16 %v3969, %v3968
        %v3995 = vpack.c.b16 %v3971, %v3970
        %v3996 = vpack.c.b16 %v3973, %v3972
        %v3997 = vpack.c.b16 %v3975, %v3974
        %v3998 = vpack.c.b16 %v3977, %v3976
        %v3999 = vpack.c.b16 %v3979, %v3978
        %v4000 = vpack.c.b16 %v3981, %v3980
        %v4001 = vpack.c.b16 %v3983, %v3982
        %v4002 = vpack.c.b16 %v3985, %v3984
        %v4003 = vpack.c.b16 %v3987, %v3986
        %v4008 = vunpack.c.l.b16 %v3952
        %v4009 = vunpack.c.l.b16 %v3953
        %v4010 = vunpack.c.l.b16 %v3954
        %v4011 = vunpack.c.l.b16 %v3955
        %v4012 = vpack.c.b16 %v4009, %v4008
        %v4013 = vpack.c.b16 %v4011, %v4010
        %v4017 = vsel %vm1687, %v3988, 0
        %v4020 = vsel %vm1687, %v3989, 0
        %v4023 = vsel %vm1687, %v3990, 0
        %v4026 = vsel %vm1687, %v3991, 0
        %v4029 = vsel %vm1687, %v3992, 0
        %v4032 = vsel %vm1687, %v3993, 0
        %v4035 = vsel %vm1687, %v3994, 0
        %v4038 = vsel %vm1687, %v3995, 0
        %v4041 = vsel %vm1687, %v3996, 0
        %v4044 = vsel %vm1687, %v3997, 0
        %v4047 = vsel %vm1687, %v3998, 0
        %v4050 = vsel %vm1687, %v3999, 0
        %v4053 = vsel %vm1687, %v4000, 0
        %v4056 = vsel %vm1687, %v4001, 0
        %v4059 = vsel %vm1687, %v4002, 0
        %v4062 = vsel %vm1687, %v4003, 0
        %4064 = vmatprep.subr.bf16.mxu0 0
        %4065 = vmatpush1.bf16.msra.mxu0 0
        %4066 = vmatprep.subr.bf16.mxu0 0
        %4067 = vmatpush1.bf16.msra.mxu0 0
        %4068 = vmatprep.subr.bf16.mxu0 0
        %4069 = vmatpush1.bf16.msra.mxu0 0
        %4070 = vmatprep.subr.bf16.mxu0 0
        %4071 = vmatpush1.bf16.msra.mxu0 0
        %4072 = vmatprep.subr.bf16.mxu0 0
        %4073 = vmatpush1.bf16.msra.mxu0 0
        %4074 = vmatprep.subr.bf16.mxu0 0
        %4075 = vmatpush1.bf16.msra.mxu0 0
        %4076 = vmatprep.subr.bf16.mxu0 0
        %4077 = vmatpush1.bf16.msra.mxu0 %v4013
        %4078 = vmatprep.subr.bf16.mxu0 0
        %4079 = vmatpush1.bf16.msra.mxu0 %v4012
        %4080 = vmatprep.subr.bf16.mxu0 0
        %4081 = vmatpush2.bf16.msra.mxu0 0
        %4082 = vmatprep.subr.bf16.mxu0 0
        %4083 = vmatpush2.bf16.msra.mxu0 0
        %4084 = vmatprep.subr.bf16.mxu0 0
        %4085 = vmatpush2.bf16.msra.mxu0 0
        %4086 = vmatprep.subr.bf16.mxu0 0
        %4087 = vmatpush2.bf16.msra.mxu0 0
        %4088 = vmatprep.subr.bf16.mxu0 0
        %4089 = vmatpush2.bf16.msra.mxu0 0
        %4090 = vmatprep.subr.bf16.mxu0 0
        %4091 = vmatpush2.bf16.msra.mxu0 0
        %4092 = vmatprep.subr.bf16.mxu0 0
        %4093 = vmatpush2.bf16.msra.mxu0 0
        %4094 = vmatprep.subr.bf16.mxu0 0
        %4095 = vmatpush2.bf16.msra.mxu0 0
        %4096 = vmatprep.mubr.bf16.mxu0 0
        %4097 = vmatmul.mubr.bf16.gmra.mxu0 %v4017
        %v4098 = vpop.f32.mrf.mxu0
        %v4099 = vadd.f32 0.0, %v4098
        %v4100 = vpop.f32.mrf.mxu0
        %v4101 = vpop.f32.mrf.mxu0
        %v4102 = vadd.f32 0.0, %v4101
        %v4103 = vpop.f32.mrf.mxu0
        %4104 = vmatprep.mubr.bf16.mxu0 0
        %4105 = vmatmul.mubr.bf16.gmra.mxu0 %v4020
        %v4106 = vpop.f32.mrf.mxu0
        %v4107 = vadd.f32 0.0, %v4106
        %v4108 = vpop.f32.mrf.mxu0
        %v4109 = vpop.f32.mrf.mxu0
        %v4110 = vadd.f32 0.0, %v4109
        %v4111 = vpop.f32.mrf.mxu0
        %4112 = vmatprep.mubr.bf16.mxu0 0
        %4113 = vmatmul.mubr.bf16.gmra.mxu0 %v4023
        %v4114 = vpop.f32.mrf.mxu0
        %v4115 = vadd.f32 0.0, %v4114
        %v4116 = vpop.f32.mrf.mxu0
        %v4117 = vpop.f32.mrf.mxu0
        %v4118 = vadd.f32 0.0, %v4117
        %v4119 = vpop.f32.mrf.mxu0
        %4120 = vmatprep.mubr.bf16.mxu0 0
        %4121 = vmatmul.mubr.bf16.gmra.mxu0 %v4026
        %v4122 = vpop.f32.mrf.mxu0
        %v4123 = vadd.f32 0.0, %v4122
        %v4124 = vpop.f32.mrf.mxu0
        %v4125 = vpop.f32.mrf.mxu0
        %v4126 = vadd.f32 0.0, %v4125
        %v4127 = vpop.f32.mrf.mxu0
        %4128 = vmatprep.mubr.bf16.mxu0 0
        %4129 = vmatmul.mubr.bf16.gmra.mxu0 %v4029
        %v4130 = vpop.f32.mrf.mxu0
        %v4131 = vadd.f32 0.0, %v4130
        %v4132 = vpop.f32.mrf.mxu0
        %v4133 = vpop.f32.mrf.mxu0
        %v4134 = vadd.f32 0.0, %v4133
        %v4135 = vpop.f32.mrf.mxu0
        %4136 = vmatprep.mubr.bf16.mxu0 0
        %4137 = vmatmul.mubr.bf16.gmra.mxu0 %v4032
        %v4138 = vpop.f32.mrf.mxu0
        %v4139 = vadd.f32 0.0, %v4138
        %v4140 = vpop.f32.mrf.mxu0
        %v4141 = vpop.f32.mrf.mxu0
        %v4142 = vadd.f32 0.0, %v4141
        %v4143 = vpop.f32.mrf.mxu0
        %4144 = vmatprep.mubr.bf16.mxu0 0
        %4145 = vmatmul.mubr.bf16.gmra.mxu0 %v4035
        %v4146 = vpop.f32.mrf.mxu0
        %v4147 = vadd.f32 0.0, %v4146
        %v4148 = vpop.f32.mrf.mxu0
        %v4149 = vpop.f32.mrf.mxu0
        %v4150 = vadd.f32 0.0, %v4149
        %v4151 = vpop.f32.mrf.mxu0
        %4152 = vmatprep.mubr.bf16.mxu0 0
        %4153 = vmatmul.mubr.bf16.gmra.mxu0 %v4038
        %v4154 = vpop.f32.mrf.mxu0
        %v4155 = vadd.f32 0.0, %v4154
        %v4156 = vpop.f32.mrf.mxu0
        %v4157 = vpop.f32.mrf.mxu0
        %v4158 = vadd.f32 0.0, %v4157
        %v4159 = vpop.f32.mrf.mxu0
        %4160 = vmatprep.mubr.bf16.mxu0 0
        %4161 = vmatmul.mubr.bf16.gmra.mxu0 %v4041
        %v4162 = vpop.f32.mrf.mxu0
        %v4163 = vadd.f32 0.0, %v4162
        %v4164 = vpop.f32.mrf.mxu0
        %v4165 = vpop.f32.mrf.mxu0
        %v4166 = vadd.f32 0.0, %v4165
        %v4167 = vpop.f32.mrf.mxu0
        %4168 = vmatprep.mubr.bf16.mxu0 0
        %4169 = vmatmul.mubr.bf16.gmra.mxu0 %v4044
        %v4170 = vpop.f32.mrf.mxu0
        %v4171 = vadd.f32 0.0, %v4170
        %v4172 = vpop.f32.mrf.mxu0
        %v4173 = vpop.f32.mrf.mxu0
        %v4174 = vadd.f32 0.0, %v4173
        %v4175 = vpop.f32.mrf.mxu0
        %4176 = vmatprep.mubr.bf16.mxu0 0
        %4177 = vmatmul.mubr.bf16.gmra.mxu0 %v4047
        %v4178 = vpop.f32.mrf.mxu0
        %v4179 = vadd.f32 0.0, %v4178
        %v4180 = vpop.f32.mrf.mxu0
        %v4181 = vpop.f32.mrf.mxu0
        %v4182 = vadd.f32 0.0, %v4181
        %v4183 = vpop.f32.mrf.mxu0
        %4184 = vmatprep.mubr.bf16.mxu0 0
        %4185 = vmatmul.mubr.bf16.gmra.mxu0 %v4050
        %v4186 = vpop.f32.mrf.mxu0
        %v4187 = vadd.f32 0.0, %v4186
        %v4188 = vpop.f32.mrf.mxu0
        %v4189 = vpop.f32.mrf.mxu0
        %v4190 = vadd.f32 0.0, %v4189
        %v4191 = vpop.f32.mrf.mxu0
        %4192 = vmatprep.mubr.bf16.mxu0 0
        %4193 = vmatmul.mubr.bf16.gmra.mxu0 %v4053
        %v4194 = vpop.f32.mrf.mxu0
        %v4195 = vadd.f32 0.0, %v4194
        %v4196 = vpop.f32.mrf.mxu0
        %v4197 = vpop.f32.mrf.mxu0
        %v4198 = vadd.f32 0.0, %v4197
        %v4199 = vpop.f32.mrf.mxu0
        %4200 = vmatprep.mubr.bf16.mxu0 0
        %4201 = vmatmul.mubr.bf16.gmra.mxu0 %v4056
        %v4202 = vpop.f32.mrf.mxu0
        %v4203 = vadd.f32 0.0, %v4202
        %v4204 = vpop.f32.mrf.mxu0
        %v4205 = vpop.f32.mrf.mxu0
        %v4206 = vadd.f32 0.0, %v4205
        %v4207 = vpop.f32.mrf.mxu0
        %4208 = vmatprep.mubr.bf16.mxu0 0
        %4209 = vmatmul.mubr.bf16.gmra.mxu0 %v4059
        %v4210 = vpop.f32.mrf.mxu0
        %v4211 = vadd.f32 0.0, %v4210
        %v4212 = vpop.f32.mrf.mxu0
        %v4213 = vpop.f32.mrf.mxu0
        %v4214 = vadd.f32 0.0, %v4213
        %v4215 = vpop.f32.mrf.mxu0
        %4216 = vmatprep.mubr.bf16.mxu0 0
        %4217 = vmatmul.mubr.bf16.gmra.mxu0 %v4062
        %v4218 = vpop.f32.mrf.mxu0
        %v4219 = vadd.f32 0.0, %v4218
        %v4220 = vpop.f32.mrf.mxu0
        %v4221 = vpop.f32.mrf.mxu0
        %v4222 = vadd.f32 0.0, %v4221
        %v4223 = vpop.f32.mrf.mxu0
        %4224 = vdwg.mxu0
        %v4225 = vadd.f32 %v3743, %v4099
        %v4226 = vadd.f32 %v3744, %v4102
        %v4227 = vadd.f32 %v3745, %v4107
        %v4228 = vadd.f32 %v3746, %v4110
        %v4229 = vadd.f32 %v3747, %v4115
        %v4230 = vadd.f32 %v3748, %v4118
        %v4231 = vadd.f32 %v3749, %v4123
        %v4232 = vadd.f32 %v3750, %v4126
        %v4233 = vadd.f32 %v3751, %v4131
        %v4234 = vadd.f32 %v3752, %v4134
        %v4235 = vadd.f32 %v3753, %v4139
        %v4236 = vadd.f32 %v3754, %v4142
        %v4237 = vadd.f32 %v3755, %v4147
        %v4238 = vadd.f32 %v3756, %v4150
        %v4239 = vadd.f32 %v3757, %v4155
        %v4240 = vadd.f32 %v3758, %v4158
        %v4241 = vadd.f32 %v3759, %v4163
        %v4242 = vadd.f32 %v3760, %v4166
        %v4243 = vadd.f32 %v3761, %v4171
        %v4244 = vadd.f32 %v3762, %v4174
        %v4245 = vadd.f32 %v3763, %v4179
        %v4246 = vadd.f32 %v3764, %v4182
        %v4247 = vadd.f32 %v3765, %v4187
        %v4248 = vadd.f32 %v3766, %v4190
        %v4249 = vadd.f32 %v3767, %v4195
        %v4250 = vadd.f32 %v3768, %v4198
        %v4251 = vadd.f32 %v3769, %v4203
        %v4252 = vadd.f32 %v3770, %v4206
        %v4253 = vadd.f32 %v3771, %v4211
        %v4254 = vadd.f32 %v3772, %v4214
        %v4255 = vadd.f32 %v3773, %v4219
        %v4256 = vadd.f32 %v3774, %v4222
        %s4257 = scalar_lea.vmem [#allocation2], 24
        %v4258 = vld [vmem:[%s4257] sm:$0xf]
        %v4259 = vld [vmem:[%s4257 + $0x4] sm:$0xf]
        %v4260 = vld [vmem:[%s4257 + $0xc] sm:$0xf]
        %v4261 = vld [vmem:[%s4257 + $0x10] sm:$0xf]
        %v4262 = vld [vmem:[%s4257 + $0x18] sm:$0xf]
        %v4263 = vld [vmem:[%s4257 + $0x1c] sm:$0xf]
        %v4264 = vld [vmem:[%s4257 + $0x24] sm:$0xf]
        %v4265 = vld [vmem:[%s4257 + $0x28] sm:$0xf]
        %v4266 = vld [vmem:[%s4257 + $0x30] sm:$0xf]
        %v4267 = vld [vmem:[%s4257 + $0x34] sm:$0xf]
        %v4268 = vld [vmem:[%s4257 + $0x3c] sm:$0xf]
        %v4269 = vld [vmem:[%s4257 + $0x40] sm:$0xf]
        %v4270 = vld [vmem:[%s4257 + $0x48] sm:$0xf]
        %v4271 = vld [vmem:[%s4257 + $0x4c] sm:$0xf]
        %v4272 = vld [vmem:[%s4257 + $0x54] sm:$0xf]
        %v4273 = vld [vmem:[%s4257 + $0x58] sm:$0xf]
        %v4274 = vld [vmem:[%s4257 + $0x60] sm:$0xf]
        %v4275 = vld [vmem:[%s4257 + $0x64] sm:$0xf]
        %v4276 = vld [vmem:[%s4257 + $0x6c] sm:$0xf]
        %v4277 = vld [vmem:[%s4257 + $0x70] sm:$0xf]
        %v4278 = vld [vmem:[%s4257 + $0x78] sm:$0xf]
        %v4279 = vld [vmem:[%s4257 + $0x7c] sm:$0xf]
        %v4280 = vld [vmem:[%s4257 + $0x84] sm:$0xf]
        %v4281 = vld [vmem:[%s4257 + $0x88] sm:$0xf]
        %v4282 = vld [vmem:[%s4257 + $0x90] sm:$0xf]
        %v4283 = vld [vmem:[%s4257 + $0x94] sm:$0xf]
        %v4284 = vld [vmem:[%s4257 + $0x9c] sm:$0xf]
        %v4285 = vld [vmem:[%s4257 + $0xa0] sm:$0xf]
        %v4286 = vld [vmem:[%s4257 + $0xa8] sm:$0xf]
        %v4287 = vld [vmem:[%s4257 + $0xac] sm:$0xf]
        %v4288 = vld [vmem:[%s4257 + $0xb4] sm:$0xf]
        %v4289 = vld [vmem:[%s4257 + $0xb8] sm:$0xf]
        %s4290 = scalar_lea.vmem %s3, 96
        %v4291 = vld [vmem:[%s4290] sm:$0xf]
        %v4292 = vld [vmem:[%s4290 + $0x4] sm:$0xf]
        %v4293 = vld [vmem:[%s4290 + $0x8] sm:$0xf]
        %v4294 = vld [vmem:[%s4290 + $0xc] sm:$0xf]
        %v4327 = vunpack.c.l.b16 %v4258
        %v4328 = vunpack.c.l.b16 %v4259
        %v4329 = vunpack.c.l.b16 %v4260
        %v4330 = vunpack.c.l.b16 %v4261
        %v4331 = vunpack.c.l.b16 %v4262
        %v4332 = vunpack.c.l.b16 %v4263
        %v4333 = vunpack.c.l.b16 %v4264
        %v4334 = vunpack.c.l.b16 %v4265
        %v4335 = vunpack.c.l.b16 %v4266
        %v4336 = vunpack.c.l.b16 %v4267
        %v4337 = vunpack.c.l.b16 %v4268
        %v4338 = vunpack.c.l.b16 %v4269
        %v4339 = vunpack.c.l.b16 %v4270
        %v4340 = vunpack.c.l.b16 %v4271
        %v4341 = vunpack.c.l.b16 %v4272
        %v4342 = vunpack.c.l.b16 %v4273
        %v4343 = vunpack.c.l.b16 %v4274
        %v4344 = vunpack.c.l.b16 %v4275
        %v4345 = vunpack.c.l.b16 %v4276
        %v4346 = vunpack.c.l.b16 %v4277
        %v4347 = vunpack.c.l.b16 %v4278
        %v4348 = vunpack.c.l.b16 %v4279
        %v4349 = vunpack.c.l.b16 %v4280
        %v4350 = vunpack.c.l.b16 %v4281
        %v4351 = vunpack.c.l.b16 %v4282
        %v4352 = vunpack.c.l.b16 %v4283
        %v4353 = vunpack.c.l.b16 %v4284
        %v4354 = vunpack.c.l.b16 %v4285
        %v4355 = vunpack.c.l.b16 %v4286
        %v4356 = vunpack.c.l.b16 %v4287
        %v4357 = vunpack.c.l.b16 %v4288
        %v4358 = vunpack.c.l.b16 %v4289
        %v4359 = vpack.c.b16 %v4328, %v4327
        %v4360 = vpack.c.b16 %v4330, %v4329
        %v4361 = vpack.c.b16 %v4332, %v4331
        %v4362 = vpack.c.b16 %v4334, %v4333
        %v4363 = vpack.c.b16 %v4336, %v4335
        %v4364 = vpack.c.b16 %v4338, %v4337
        %v4365 = vpack.c.b16 %v4340, %v4339
        %v4366 = vpack.c.b16 %v4342, %v4341
        %v4367 = vpack.c.b16 %v4344, %v4343
        %v4368 = vpack.c.b16 %v4346, %v4345
        %v4369 = vpack.c.b16 %v4348, %v4347
        %v4370 = vpack.c.b16 %v4350, %v4349
        %v4371 = vpack.c.b16 %v4352, %v4351
        %v4372 = vpack.c.b16 %v4354, %v4353
        %v4373 = vpack.c.b16 %v4356, %v4355
        %v4374 = vpack.c.b16 %v4358, %v4357
        %v4379 = vunpack.c.l.b16 %v4291
        %v4380 = vunpack.c.l.b16 %v4292
        %v4381 = vunpack.c.l.b16 %v4293
        %v4382 = vunpack.c.l.b16 %v4294
        %v4383 = vpack.c.b16 %v4380, %v4379
        %v4384 = vpack.c.b16 %v4382, %v4381
        %v4388 = vsel %vm1687, %v4359, 0
        %v4391 = vsel %vm1687, %v4360, 0
        %v4394 = vsel %vm1687, %v4361, 0
        %v4397 = vsel %vm1687, %v4362, 0
        %v4400 = vsel %vm1687, %v4363, 0
        %v4403 = vsel %vm1687, %v4364, 0
        %v4406 = vsel %vm1687, %v4365, 0
        %v4409 = vsel %vm1687, %v4366, 0
        %v4412 = vsel %vm1687, %v4367, 0
        %v4415 = vsel %vm1687, %v4368, 0
        %v4418 = vsel %vm1687, %v4369, 0
        %v4421 = vsel %vm1687, %v4370, 0
        %v4424 = vsel %vm1687, %v4371, 0
        %v4427 = vsel %vm1687, %v4372, 0
        %v4430 = vsel %vm1687, %v4373, 0
        %v4433 = vsel %vm1687, %v4374, 0
        %4435 = vmatprep.subr.bf16.mxu0 0
        %4436 = vmatpush1.bf16.msra.mxu0 0
        %4437 = vmatprep.subr.bf16.mxu0 0
        %4438 = vmatpush1.bf16.msra.mxu0 0
        %4439 = vmatprep.subr.bf16.mxu0 0
        %4440 = vmatpush1.bf16.msra.mxu0 0
        %4441 = vmatprep.subr.bf16.mxu0 0
        %4442 = vmatpush1.bf16.msra.mxu0 0
        %4443 = vmatprep.subr.bf16.mxu0 0
        %4444 = vmatpush1.bf16.msra.mxu0 0
        %4445 = vmatprep.subr.bf16.mxu0 0
        %4446 = vmatpush1.bf16.msra.mxu0 0
        %4447 = vmatprep.subr.bf16.mxu0 0
        %4448 = vmatpush1.bf16.msra.mxu0 %v4384
        %4449 = vmatprep.subr.bf16.mxu0 0
        %4450 = vmatpush1.bf16.msra.mxu0 %v4383
        %4451 = vmatprep.subr.bf16.mxu0 0
        %4452 = vmatpush2.bf16.msra.mxu0 0
        %4453 = vmatprep.subr.bf16.mxu0 0
        %4454 = vmatpush2.bf16.msra.mxu0 0
        %4455 = vmatprep.subr.bf16.mxu0 0
        %4456 = vmatpush2.bf16.msra.mxu0 0
        %4457 = vmatprep.subr.bf16.mxu0 0
        %4458 = vmatpush2.bf16.msra.mxu0 0
        %4459 = vmatprep.subr.bf16.mxu0 0
        %4460 = vmatpush2.bf16.msra.mxu0 0
        %4461 = vmatprep.subr.bf16.mxu0 0
        %4462 = vmatpush2.bf16.msra.mxu0 0
        %4463 = vmatprep.subr.bf16.mxu0 0
        %4464 = vmatpush2.bf16.msra.mxu0 0
        %4465 = vmatprep.subr.bf16.mxu0 0
        %4466 = vmatpush2.bf16.msra.mxu0 0
        %4467 = vmatprep.mubr.bf16.mxu0 0
        %4468 = vmatmul.mubr.bf16.gmra.mxu0 %v4388
        %v4469 = vpop.f32.mrf.mxu0
        %v4470 = vadd.f32 0.0, %v4469
        %v4471 = vpop.f32.mrf.mxu0
        %v4472 = vpop.f32.mrf.mxu0
        %v4473 = vadd.f32 0.0, %v4472
        %v4474 = vpop.f32.mrf.mxu0
        %4475 = vmatprep.mubr.bf16.mxu0 0
        %4476 = vmatmul.mubr.bf16.gmra.mxu0 %v4391
        %v4477 = vpop.f32.mrf.mxu0
        %v4478 = vadd.f32 0.0, %v4477
        %v4479 = vpop.f32.mrf.mxu0
        %v4480 = vpop.f32.mrf.mxu0
        %v4481 = vadd.f32 0.0, %v4480
        %v4482 = vpop.f32.mrf.mxu0
        %4483 = vmatprep.mubr.bf16.mxu0 0
        %4484 = vmatmul.mubr.bf16.gmra.mxu0 %v4394
        %v4485 = vpop.f32.mrf.mxu0
        %v4486 = vadd.f32 0.0, %v4485
        %v4487 = vpop.f32.mrf.mxu0
        %v4488 = vpop.f32.mrf.mxu0
        %v4489 = vadd.f32 0.0, %v4488
        %v4490 = vpop.f32.mrf.mxu0
        %4491 = vmatprep.mubr.bf16.mxu0 0
        %4492 = vmatmul.mubr.bf16.gmra.mxu0 %v4397
        %v4493 = vpop.f32.mrf.mxu0
        %v4494 = vadd.f32 0.0, %v4493
        %v4495 = vpop.f32.mrf.mxu0
        %v4496 = vpop.f32.mrf.mxu0
        %v4497 = vadd.f32 0.0, %v4496
        %v4498 = vpop.f32.mrf.mxu0
        %4499 = vmatprep.mubr.bf16.mxu0 0
        %4500 = vmatmul.mubr.bf16.gmra.mxu0 %v4400
        %v4501 = vpop.f32.mrf.mxu0
        %v4502 = vadd.f32 0.0, %v4501
        %v4503 = vpop.f32.mrf.mxu0
        %v4504 = vpop.f32.mrf.mxu0
        %v4505 = vadd.f32 0.0, %v4504
        %v4506 = vpop.f32.mrf.mxu0
        %4507 = vmatprep.mubr.bf16.mxu0 0
        %4508 = vmatmul.mubr.bf16.gmra.mxu0 %v4403
        %v4509 = vpop.f32.mrf.mxu0
        %v4510 = vadd.f32 0.0, %v4509
        %v4511 = vpop.f32.mrf.mxu0
        %v4512 = vpop.f32.mrf.mxu0
        %v4513 = vadd.f32 0.0, %v4512
        %v4514 = vpop.f32.mrf.mxu0
        %4515 = vmatprep.mubr.bf16.mxu0 0
        %4516 = vmatmul.mubr.bf16.gmra.mxu0 %v4406
        %v4517 = vpop.f32.mrf.mxu0
        %v4518 = vadd.f32 0.0, %v4517
        %v4519 = vpop.f32.mrf.mxu0
        %v4520 = vpop.f32.mrf.mxu0
        %v4521 = vadd.f32 0.0, %v4520
        %v4522 = vpop.f32.mrf.mxu0
        %4523 = vmatprep.mubr.bf16.mxu0 0
        %4524 = vmatmul.mubr.bf16.gmra.mxu0 %v4409
        %v4525 = vpop.f32.mrf.mxu0
        %v4526 = vadd.f32 0.0, %v4525
        %v4527 = vpop.f32.mrf.mxu0
        %v4528 = vpop.f32.mrf.mxu0
        %v4529 = vadd.f32 0.0, %v4528
        %v4530 = vpop.f32.mrf.mxu0
        %4531 = vmatprep.mubr.bf16.mxu0 0
        %4532 = vmatmul.mubr.bf16.gmra.mxu0 %v4412
        %v4533 = vpop.f32.mrf.mxu0
        %v4534 = vadd.f32 0.0, %v4533
        %v4535 = vpop.f32.mrf.mxu0
        %v4536 = vpop.f32.mrf.mxu0
        %v4537 = vadd.f32 0.0, %v4536
        %v4538 = vpop.f32.mrf.mxu0
        %4539 = vmatprep.mubr.bf16.mxu0 0
        %4540 = vmatmul.mubr.bf16.gmra.mxu0 %v4415
        %v4541 = vpop.f32.mrf.mxu0
        %v4542 = vadd.f32 0.0, %v4541
        %v4543 = vpop.f32.mrf.mxu0
        %v4544 = vpop.f32.mrf.mxu0
        %v4545 = vadd.f32 0.0, %v4544
        %v4546 = vpop.f32.mrf.mxu0
        %4547 = vmatprep.mubr.bf16.mxu0 0
        %4548 = vmatmul.mubr.bf16.gmra.mxu0 %v4418
        %v4549 = vpop.f32.mrf.mxu0
        %v4550 = vadd.f32 0.0, %v4549
        %v4551 = vpop.f32.mrf.mxu0
        %v4552 = vpop.f32.mrf.mxu0
        %v4553 = vadd.f32 0.0, %v4552
        %v4554 = vpop.f32.mrf.mxu0
        %4555 = vmatprep.mubr.bf16.mxu0 0
        %4556 = vmatmul.mubr.bf16.gmra.mxu0 %v4421
        %v4557 = vpop.f32.mrf.mxu0
        %v4558 = vadd.f32 0.0, %v4557
        %v4559 = vpop.f32.mrf.mxu0
        %v4560 = vpop.f32.mrf.mxu0
        %v4561 = vadd.f32 0.0, %v4560
        %v4562 = vpop.f32.mrf.mxu0
        %4563 = vmatprep.mubr.bf16.mxu0 0
        %4564 = vmatmul.mubr.bf16.gmra.mxu0 %v4424
        %v4565 = vpop.f32.mrf.mxu0
        %v4566 = vadd.f32 0.0, %v4565
        %v4567 = vpop.f32.mrf.mxu0
        %v4568 = vpop.f32.mrf.mxu0
        %v4569 = vadd.f32 0.0, %v4568
        %v4570 = vpop.f32.mrf.mxu0
        %4571 = vmatprep.mubr.bf16.mxu0 0
        %4572 = vmatmul.mubr.bf16.gmra.mxu0 %v4427
        %v4573 = vpop.f32.mrf.mxu0
        %v4574 = vadd.f32 0.0, %v4573
        %v4575 = vpop.f32.mrf.mxu0
        %v4576 = vpop.f32.mrf.mxu0
        %v4577 = vadd.f32 0.0, %v4576
        %v4578 = vpop.f32.mrf.mxu0
        %4579 = vmatprep.mubr.bf16.mxu0 0
        %4580 = vmatmul.mubr.bf16.gmra.mxu0 %v4430
        %v4581 = vpop.f32.mrf.mxu0
        %v4582 = vadd.f32 0.0, %v4581
        %v4583 = vpop.f32.mrf.mxu0
        %v4584 = vpop.f32.mrf.mxu0
        %v4585 = vadd.f32 0.0, %v4584
        %v4586 = vpop.f32.mrf.mxu0
        %4587 = vmatprep.mubr.bf16.mxu0 0
        %4588 = vmatmul.mubr.bf16.gmra.mxu0 %v4433
        %v4589 = vpop.f32.mrf.mxu0
        %v4590 = vadd.f32 0.0, %v4589
        %v4591 = vpop.f32.mrf.mxu0
        %v4592 = vpop.f32.mrf.mxu0
        %v4593 = vadd.f32 0.0, %v4592
        %v4594 = vpop.f32.mrf.mxu0
        %4595 = vdwg.mxu0
        %v4596 = vadd.f32 %v4225, %v4470
        %v4597 = vadd.f32 %v4226, %v4473
        %v4598 = vadd.f32 %v4227, %v4478
        %v4599 = vadd.f32 %v4228, %v4481
        %v4600 = vadd.f32 %v4229, %v4486
        %v4601 = vadd.f32 %v4230, %v4489
        %v4602 = vadd.f32 %v4231, %v4494
        %v4603 = vadd.f32 %v4232, %v4497
        %v4604 = vadd.f32 %v4233, %v4502
        %v4605 = vadd.f32 %v4234, %v4505
        %v4606 = vadd.f32 %v4235, %v4510
        %v4607 = vadd.f32 %v4236, %v4513
        %v4608 = vadd.f32 %v4237, %v4518
        %v4609 = vadd.f32 %v4238, %v4521
        %v4610 = vadd.f32 %v4239, %v4526
        %v4611 = vadd.f32 %v4240, %v4529
        %v4612 = vadd.f32 %v4241, %v4534
        %v4613 = vadd.f32 %v4242, %v4537
        %v4614 = vadd.f32 %v4243, %v4542
        %v4615 = vadd.f32 %v4244, %v4545
        %v4616 = vadd.f32 %v4245, %v4550
        %v4617 = vadd.f32 %v4246, %v4553
        %v4618 = vadd.f32 %v4247, %v4558
        %v4619 = vadd.f32 %v4248, %v4561
        %v4620 = vadd.f32 %v4249, %v4566
        %v4621 = vadd.f32 %v4250, %v4569
        %v4622 = vadd.f32 %v4251, %v4574
        %v4623 = vadd.f32 %v4252, %v4577
        %v4624 = vadd.f32 %v4253, %v4582
        %v4625 = vadd.f32 %v4254, %v4585
        %v4626 = vadd.f32 %v4255, %v4590
        %v4627 = vadd.f32 %v4256, %v4593
        %v4628 = vld [vmem:[%s4257] sm:$0xf]
        %v4629 = vld [vmem:[%s4257 + $0x4] sm:$0xf]
        %v4630 = vld [vmem:[%s4257 + $0x8] sm:$0x1]
        %v4631 = vld [vmem:[%s4257 + $0xc] sm:$0xf]
        %v4632 = vld [vmem:[%s4257 + $0x10] sm:$0xf]
        %v4633 = vld [vmem:[%s4257 + $0x14] sm:$0x1]
        %v4634 = vld [vmem:[%s4257 + $0x18] sm:$0xf]
        %v4635 = vld [vmem:[%s4257 + $0x1c] sm:$0xf]
        %v4636 = vld [vmem:[%s4257 + $0x20] sm:$0x1]
        %v4637 = vld [vmem:[%s4257 + $0x24] sm:$0xf]
        %v4638 = vld [vmem:[%s4257 + $0x28] sm:$0xf]
        %v4639 = vld [vmem:[%s4257 + $0x2c] sm:$0x1]
        %v4640 = vld [vmem:[%s4257 + $0x30] sm:$0xf]
        %v4641 = vld [vmem:[%s4257 + $0x34] sm:$0xf]
        %v4642 = vld [vmem:[%s4257 + $0x38] sm:$0x1]
        %v4643 = vld [vmem:[%s4257 + $0x3c] sm:$0xf]
        %v4644 = vld [vmem:[%s4257 + $0x40] sm:$0xf]
        %v4645 = vld [vmem:[%s4257 + $0x44] sm:$0x1]
        %v4646 = vld [vmem:[%s4257 + $0x48] sm:$0xf]
        %v4647 = vld [vmem:[%s4257 + $0x4c] sm:$0xf]
        %v4648 = vld [vmem:[%s4257 + $0x50] sm:$0x1]
        %v4649 = vld [vmem:[%s4257 + $0x54] sm:$0xf]
        %v4650 = vld [vmem:[%s4257 + $0x58] sm:$0xf]
        %v4651 = vld [vmem:[%s4257 + $0x5c] sm:$0x1]
        %v4652 = vld [vmem:[%s4257 + $0x60] sm:$0xf]
        %v4653 = vld [vmem:[%s4257 + $0x64] sm:$0xf]
        %v4654 = vld [vmem:[%s4257 + $0x68] sm:$0x1]
        %v4655 = vld [vmem:[%s4257 + $0x6c] sm:$0xf]
        %v4656 = vld [vmem:[%s4257 + $0x70] sm:$0xf]
        %v4657 = vld [vmem:[%s4257 + $0x74] sm:$0x1]
        %v4658 = vld [vmem:[%s4257 + $0x78] sm:$0xf]
        %v4659 = vld [vmem:[%s4257 + $0x7c] sm:$0xf]
        %v4660 = vld [vmem:[%s4257 + $0x80] sm:$0x1]
        %v4661 = vld [vmem:[%s4257 + $0x84] sm:$0xf]
        %v4662 = vld [vmem:[%s4257 + $0x88] sm:$0xf]
        %v4663 = vld [vmem:[%s4257 + $0x8c] sm:$0x1]
        %v4664 = vld [vmem:[%s4257 + $0x90] sm:$0xf]
        %v4665 = vld [vmem:[%s4257 + $0x94] sm:$0xf]
        %v4666 = vld [vmem:[%s4257 + $0x98] sm:$0x1]
        %v4667 = vld [vmem:[%s4257 + $0x9c] sm:$0xf]
        %v4668 = vld [vmem:[%s4257 + $0xa0] sm:$0xf]
        %v4669 = vld [vmem:[%s4257 + $0xa4] sm:$0x1]
        %v4670 = vld [vmem:[%s4257 + $0xa8] sm:$0xf]
        %v4671 = vld [vmem:[%s4257 + $0xac] sm:$0xf]
        %v4672 = vld [vmem:[%s4257 + $0xb0] sm:$0x1]
        %v4673 = vld [vmem:[%s4257 + $0xb4] sm:$0xf]
        %v4674 = vld [vmem:[%s4257 + $0xb8] sm:$0xf]
        %v4675 = vld [vmem:[%s4257 + $0xbc] sm:$0x1]
        %v4677 = vshrl.u32 %v4628, 16
        %v4679 = vrot.slane %v4677, 4
        %v4680 = vshll.u32 %v4628, 16
        %v4682 = vrot.slane %v4680, 5
        %v4683 = vor.u32 %v4679, %v4682
        %v4684 = vrot.slane %v4683, 4
        %v4686 = vshll.u32 %v4629, 16
        %v4688 = vrot.slane %v4686, 5
        %v4689 = vsel %vm1237, %v4684, %v4688
        %v4690 = vshrl.u32 %v4629, 16
        %v4692 = vrot.slane %v4690, 4
        %v4693 = vor.u32 %v4692, %v4688
        %v4694 = vrot.slane %v4693, 4
        %v4696 = vshll.u32 %v4630, 16
        %v4698 = vrot.slane %v4696, 5
        %v4699 = vsel %vm1237, %v4694, %v4698
        %v4701 = vshrl.u32 %v4631, 16
        %v4703 = vrot.slane %v4701, 4
        %v4704 = vshll.u32 %v4631, 16
        %v4706 = vrot.slane %v4704, 5
        %v4707 = vor.u32 %v4703, %v4706
        %v4708 = vrot.slane %v4707, 4
        %v4710 = vshll.u32 %v4632, 16
        %v4712 = vrot.slane %v4710, 5
        %v4713 = vsel %vm1237, %v4708, %v4712
        %v4714 = vshrl.u32 %v4632, 16
        %v4716 = vrot.slane %v4714, 4
        %v4717 = vor.u32 %v4716, %v4712
        %v4718 = vrot.slane %v4717, 4
        %v4720 = vshll.u32 %v4633, 16
        %v4722 = vrot.slane %v4720, 5
        %v4723 = vsel %vm1237, %v4718, %v4722
        %v4725 = vshrl.u32 %v4634, 16
        %v4727 = vrot.slane %v4725, 4
        %v4728 = vshll.u32 %v4634, 16
        %v4730 = vrot.slane %v4728, 5
        %v4731 = vor.u32 %v4727, %v4730
        %v4732 = vrot.slane %v4731, 4
        %v4734 = vshll.u32 %v4635, 16
        %v4736 = vrot.slane %v4734, 5
        %v4737 = vsel %vm1237, %v4732, %v4736
        %v4738 = vshrl.u32 %v4635, 16
        %v4740 = vrot.slane %v4738, 4
        %v4741 = vor.u32 %v4740, %v4736
        %v4742 = vrot.slane %v4741, 4
        %v4744 = vshll.u32 %v4636, 16
        %v4746 = vrot.slane %v4744, 5
        %v4747 = vsel %vm1237, %v4742, %v4746
        %v4749 = vshrl.u32 %v4637, 16
        %v4751 = vrot.slane %v4749, 4
        %v4752 = vshll.u32 %v4637, 16
        %v4754 = vrot.slane %v4752, 5
        %v4755 = vor.u32 %v4751, %v4754
        %v4756 = vrot.slane %v4755, 4
        %v4758 = vshll.u32 %v4638, 16
        %v4760 = vrot.slane %v4758, 5
        %v4761 = vsel %vm1237, %v4756, %v4760
        %v4762 = vshrl.u32 %v4638, 16
        %v4764 = vrot.slane %v4762, 4
        %v4765 = vor.u32 %v4764, %v4760
        %v4766 = vrot.slane %v4765, 4
        %v4768 = vshll.u32 %v4639, 16
        %v4770 = vrot.slane %v4768, 5
        %v4771 = vsel %vm1237, %v4766, %v4770
        %v4773 = vshrl.u32 %v4640, 16
        %v4775 = vrot.slane %v4773, 4
        %v4776 = vshll.u32 %v4640, 16
        %v4778 = vrot.slane %v4776, 5
        %v4779 = vor.u32 %v4775, %v4778
        %v4780 = vrot.slane %v4779, 4
        %v4782 = vshll.u32 %v4641, 16
        %v4784 = vrot.slane %v4782, 5
        %v4785 = vsel %vm1237, %v4780, %v4784
        %v4786 = vshrl.u32 %v4641, 16
        %v4788 = vrot.slane %v4786, 4
        %v4789 = vor.u32 %v4788, %v4784
        %v4790 = vrot.slane %v4789, 4
        %v4792 = vshll.u32 %v4642, 16
        %v4794 = vrot.slane %v4792, 5
        %v4795 = vsel %vm1237, %v4790, %v4794
        %v4797 = vshrl.u32 %v4643, 16
        %v4799 = vrot.slane %v4797, 4
        %v4800 = vshll.u32 %v4643, 16
        %v4802 = vrot.slane %v4800, 5
        %v4803 = vor.u32 %v4799, %v4802
        %v4804 = vrot.slane %v4803, 4
        %v4806 = vshll.u32 %v4644, 16
        %v4808 = vrot.slane %v4806, 5
        %v4809 = vsel %vm1237, %v4804, %v4808
        %v4810 = vshrl.u32 %v4644, 16
        %v4812 = vrot.slane %v4810, 4
        %v4813 = vor.u32 %v4812, %v4808
        %v4814 = vrot.slane %v4813, 4
        %v4816 = vshll.u32 %v4645, 16
        %v4818 = vrot.slane %v4816, 5
        %v4819 = vsel %vm1237, %v4814, %v4818
        %v4821 = vshrl.u32 %v4646, 16
        %v4823 = vrot.slane %v4821, 4
        %v4824 = vshll.u32 %v4646, 16
        %v4826 = vrot.slane %v4824, 5
        %v4827 = vor.u32 %v4823, %v4826
        %v4828 = vrot.slane %v4827, 4
        %v4830 = vshll.u32 %v4647, 16
        %v4832 = vrot.slane %v4830, 5
        %v4833 = vsel %vm1237, %v4828, %v4832
        %v4834 = vshrl.u32 %v4647, 16
        %v4836 = vrot.slane %v4834, 4
        %v4837 = vor.u32 %v4836, %v4832
        %v4838 = vrot.slane %v4837, 4
        %v4840 = vshll.u32 %v4648, 16
        %v4842 = vrot.slane %v4840, 5
        %v4843 = vsel %vm1237, %v4838, %v4842
        %v4845 = vshrl.u32 %v4649, 16
        %v4847 = vrot.slane %v4845, 4
        %v4848 = vshll.u32 %v4649, 16
        %v4850 = vrot.slane %v4848, 5
        %v4851 = vor.u32 %v4847, %v4850
        %v4852 = vrot.slane %v4851, 4
        %v4854 = vshll.u32 %v4650, 16
        %v4856 = vrot.slane %v4854, 5
        %v4857 = vsel %vm1237, %v4852, %v4856
        %v4858 = vshrl.u32 %v4650, 16
        %v4860 = vrot.slane %v4858, 4
        %v4861 = vor.u32 %v4860, %v4856
        %v4862 = vrot.slane %v4861, 4
        %v4864 = vshll.u32 %v4651, 16
        %v4866 = vrot.slane %v4864, 5
        %v4867 = vsel %vm1237, %v4862, %v4866
        %v4869 = vshrl.u32 %v4652, 16
        %v4871 = vrot.slane %v4869, 4
        %v4872 = vshll.u32 %v4652, 16
        %v4874 = vrot.slane %v4872, 5
        %v4875 = vor.u32 %v4871, %v4874
        %v4876 = vrot.slane %v4875, 4
        %v4878 = vshll.u32 %v4653, 16
        %v4880 = vrot.slane %v4878, 5
        %v4881 = vsel %vm1237, %v4876, %v4880
        %v4882 = vshrl.u32 %v4653, 16
        %v4884 = vrot.slane %v4882, 4
        %v4885 = vor.u32 %v4884, %v4880
        %v4886 = vrot.slane %v4885, 4
        %v4888 = vshll.u32 %v4654, 16
        %v4890 = vrot.slane %v4888, 5
        %v4891 = vsel %vm1237, %v4886, %v4890
        %v4893 = vshrl.u32 %v4655, 16
        %v4895 = vrot.slane %v4893, 4
        %v4896 = vshll.u32 %v4655, 16
        %v4898 = vrot.slane %v4896, 5
        %v4899 = vor.u32 %v4895, %v4898
        %v4900 = vrot.slane %v4899, 4
        %v4902 = vshll.u32 %v4656, 16
        %v4904 = vrot.slane %v4902, 5
        %v4905 = vsel %vm1237, %v4900, %v4904
        %v4906 = vshrl.u32 %v4656, 16
        %v4908 = vrot.slane %v4906, 4
        %v4909 = vor.u32 %v4908, %v4904
        %v4910 = vrot.slane %v4909, 4
        %v4912 = vshll.u32 %v4657, 16
        %v4914 = vrot.slane %v4912, 5
        %v4915 = vsel %vm1237, %v4910, %v4914
        %v4917 = vshrl.u32 %v4658, 16
        %v4919 = vrot.slane %v4917, 4
        %v4920 = vshll.u32 %v4658, 16
        %v4922 = vrot.slane %v4920, 5
        %v4923 = vor.u32 %v4919, %v4922
        %v4924 = vrot.slane %v4923, 4
        %v4926 = vshll.u32 %v4659, 16
        %v4928 = vrot.slane %v4926, 5
        %v4929 = vsel %vm1237, %v4924, %v4928
        %v4930 = vshrl.u32 %v4659, 16
        %v4932 = vrot.slane %v4930, 4
        %v4933 = vor.u32 %v4932, %v4928
        %v4934 = vrot.slane %v4933, 4
        %v4936 = vshll.u32 %v4660, 16
        %v4938 = vrot.slane %v4936, 5
        %v4939 = vsel %vm1237, %v4934, %v4938
        %v4941 = vshrl.u32 %v4661, 16
        %v4943 = vrot.slane %v4941, 4
        %v4944 = vshll.u32 %v4661, 16
        %v4946 = vrot.slane %v4944, 5
        %v4947 = vor.u32 %v4943, %v4946
        %v4948 = vrot.slane %v4947, 4
        %v4950 = vshll.u32 %v4662, 16
        %v4952 = vrot.slane %v4950, 5
        %v4953 = vsel %vm1237, %v4948, %v4952
        %v4954 = vshrl.u32 %v4662, 16
        %v4956 = vrot.slane %v4954, 4
        %v4957 = vor.u32 %v4956, %v4952
        %v4958 = vrot.slane %v4957, 4
        %v4960 = vshll.u32 %v4663, 16
        %v4962 = vrot.slane %v4960, 5
        %v4963 = vsel %vm1237, %v4958, %v4962
        %v4965 = vshrl.u32 %v4664, 16
        %v4967 = vrot.slane %v4965, 4
        %v4968 = vshll.u32 %v4664, 16
        %v4970 = vrot.slane %v4968, 5
        %v4971 = vor.u32 %v4967, %v4970
        %v4972 = vrot.slane %v4971, 4
        %v4974 = vshll.u32 %v4665, 16
        %v4976 = vrot.slane %v4974, 5
        %v4977 = vsel %vm1237, %v4972, %v4976
        %v4978 = vshrl.u32 %v4665, 16
        %v4980 = vrot.slane %v4978, 4
        %v4981 = vor.u32 %v4980, %v4976
        %v4982 = vrot.slane %v4981, 4
        %v4984 = vshll.u32 %v4666, 16
        %v4986 = vrot.slane %v4984, 5
        %v4987 = vsel %vm1237, %v4982, %v4986
        %v4989 = vshrl.u32 %v4667, 16
        %v4991 = vrot.slane %v4989, 4
        %v4992 = vshll.u32 %v4667, 16
        %v4994 = vrot.slane %v4992, 5
        %v4995 = vor.u32 %v4991, %v4994
        %v4996 = vrot.slane %v4995, 4
        %v4998 = vshll.u32 %v4668, 16
        %v5000 = vrot.slane %v4998, 5
        %v5001 = vsel %vm1237, %v4996, %v5000
        %v5002 = vshrl.u32 %v4668, 16
        %v5004 = vrot.slane %v5002, 4
        %v5005 = vor.u32 %v5004, %v5000
        %v5006 = vrot.slane %v5005, 4
        %v5008 = vshll.u32 %v4669, 16
        %v5010 = vrot.slane %v5008, 5
        %v5011 = vsel %vm1237, %v5006, %v5010
        %v5013 = vshrl.u32 %v4670, 16
        %v5015 = vrot.slane %v5013, 4
        %v5016 = vshll.u32 %v4670, 16
        %v5018 = vrot.slane %v5016, 5
        %v5019 = vor.u32 %v5015, %v5018
        %v5020 = vrot.slane %v5019, 4
        %v5022 = vshll.u32 %v4671, 16
        %v5024 = vrot.slane %v5022, 5
        %v5025 = vsel %vm1237, %v5020, %v5024
        %v5026 = vshrl.u32 %v4671, 16
        %v5028 = vrot.slane %v5026, 4
        %v5029 = vor.u32 %v5028, %v5024
        %v5030 = vrot.slane %v5029, 4
        %v5032 = vshll.u32 %v4672, 16
        %v5034 = vrot.slane %v5032, 5
        %v5035 = vsel %vm1237, %v5030, %v5034
        %v5037 = vshrl.u32 %v4673, 16
        %v5039 = vrot.slane %v5037, 4
        %v5040 = vshll.u32 %v4673, 16
        %v5042 = vrot.slane %v5040, 5
        %v5043 = vor.u32 %v5039, %v5042
        %v5044 = vrot.slane %v5043, 4
        %v5046 = vshll.u32 %v4674, 16
        %v5048 = vrot.slane %v5046, 5
        %v5049 = vsel %vm1237, %v5044, %v5048
        %v5050 = vshrl.u32 %v4674, 16
        %v5052 = vrot.slane %v5050, 4
        %v5053 = vor.u32 %v5052, %v5048
        %v5054 = vrot.slane %v5053, 4
        %v5056 = vshll.u32 %v4675, 16
        %v5058 = vrot.slane %v5056, 5
        %v5059 = vsel %vm1237, %v5054, %v5058
        %s5060 = scalar_lea.vmem %s3, 112
        %v5061 = vld [vmem:[%s5060] sm:$0xf]
        %v5062 = vld [vmem:[%s5060 + $0x4] sm:$0xf]
        %v5063 = vld [vmem:[%s5060 + $0x8] sm:$0xf]
        %v5064 = vld [vmem:[%s5060 + $0xc] sm:$0xf]
        %v5065 = vunpack.c.l.b16 %v4689
        %v5066 = vunpack.c.l.b16 %v4699
        %v5067 = vunpack.c.l.b16 %v4713
        %v5068 = vunpack.c.l.b16 %v4723
        %v5069 = vunpack.c.l.b16 %v4737
        %v5070 = vunpack.c.l.b16 %v4747
        %v5071 = vunpack.c.l.b16 %v4761
        %v5072 = vunpack.c.l.b16 %v4771
        %v5073 = vunpack.c.l.b16 %v4785
        %v5074 = vunpack.c.l.b16 %v4795
        %v5075 = vunpack.c.l.b16 %v4809
        %v5076 = vunpack.c.l.b16 %v4819
        %v5077 = vunpack.c.l.b16 %v4833
        %v5078 = vunpack.c.l.b16 %v4843
        %v5079 = vunpack.c.l.b16 %v4857
        %v5080 = vunpack.c.l.b16 %v4867
        %v5081 = vunpack.c.l.b16 %v4881
        %v5082 = vunpack.c.l.b16 %v4891
        %v5083 = vunpack.c.l.b16 %v4905
        %v5084 = vunpack.c.l.b16 %v4915
        %v5085 = vunpack.c.l.b16 %v4929
        %v5086 = vunpack.c.l.b16 %v4939
        %v5087 = vunpack.c.l.b16 %v4953
        %v5088 = vunpack.c.l.b16 %v4963
        %v5089 = vunpack.c.l.b16 %v4977
        %v5090 = vunpack.c.l.b16 %v4987
        %v5091 = vunpack.c.l.b16 %v5001
        %v5092 = vunpack.c.l.b16 %v5011
        %v5093 = vunpack.c.l.b16 %v5025
        %v5094 = vunpack.c.l.b16 %v5035
        %v5095 = vunpack.c.l.b16 %v5049
        %v5096 = vunpack.c.l.b16 %v5059
        %v5097 = vpack.c.b16 %v5066, %v5065
        %v5098 = vpack.c.b16 %v5068, %v5067
        %v5099 = vpack.c.b16 %v5070, %v5069
        %v5100 = vpack.c.b16 %v5072, %v5071
        %v5101 = vpack.c.b16 %v5074, %v5073
        %v5102 = vpack.c.b16 %v5076, %v5075
        %v5103 = vpack.c.b16 %v5078, %v5077
        %v5104 = vpack.c.b16 %v5080, %v5079
        %v5105 = vpack.c.b16 %v5082, %v5081
        %v5106 = vpack.c.b16 %v5084, %v5083
        %v5107 = vpack.c.b16 %v5086, %v5085
        %v5108 = vpack.c.b16 %v5088, %v5087
        %v5109 = vpack.c.b16 %v5090, %v5089
        %v5110 = vpack.c.b16 %v5092, %v5091
        %v5111 = vpack.c.b16 %v5094, %v5093
        %v5112 = vpack.c.b16 %v5096, %v5095
        %v5117 = vunpack.c.l.b16 %v5061
        %v5118 = vunpack.c.l.b16 %v5062
        %v5119 = vunpack.c.l.b16 %v5063
        %v5120 = vunpack.c.l.b16 %v5064
        %v5121 = vpack.c.b16 %v5118, %v5117
        %v5122 = vpack.c.b16 %v5120, %v5119
        %v5126 = vsel %vm1687, %v5097, 0
        %v5129 = vsel %vm1687, %v5098, 0
        %v5132 = vsel %vm1687, %v5099, 0
        %v5135 = vsel %vm1687, %v5100, 0
        %v5138 = vsel %vm1687, %v5101, 0
        %v5141 = vsel %vm1687, %v5102, 0
        %v5144 = vsel %vm1687, %v5103, 0
        %v5147 = vsel %vm1687, %v5104, 0
        %v5150 = vsel %vm1687, %v5105, 0
        %v5153 = vsel %vm1687, %v5106, 0
        %v5156 = vsel %vm1687, %v5107, 0
        %v5159 = vsel %vm1687, %v5108, 0
        %v5162 = vsel %vm1687, %v5109, 0
        %v5165 = vsel %vm1687, %v5110, 0
        %v5168 = vsel %vm1687, %v5111, 0
        %v5171 = vsel %vm1687, %v5112, 0
        %5173 = vmatprep.subr.bf16.mxu0 0
        %5174 = vmatpush1.bf16.msra.mxu0 0
        %5175 = vmatprep.subr.bf16.mxu0 0
        %5176 = vmatpush1.bf16.msra.mxu0 0
        %5177 = vmatprep.subr.bf16.mxu0 0
        %5178 = vmatpush1.bf16.msra.mxu0 0
        %5179 = vmatprep.subr.bf16.mxu0 0
        %5180 = vmatpush1.bf16.msra.mxu0 0
        %5181 = vmatprep.subr.bf16.mxu0 0
        %5182 = vmatpush1.bf16.msra.mxu0 0
        %5183 = vmatprep.subr.bf16.mxu0 0
        %5184 = vmatpush1.bf16.msra.mxu0 0
        %5185 = vmatprep.subr.bf16.mxu0 0
        %5186 = vmatpush1.bf16.msra.mxu0 %v5122
        %5187 = vmatprep.subr.bf16.mxu0 0
        %5188 = vmatpush1.bf16.msra.mxu0 %v5121
        %5189 = vmatprep.subr.bf16.mxu0 0
        %5190 = vmatpush2.bf16.msra.mxu0 0
        %5191 = vmatprep.subr.bf16.mxu0 0
        %5192 = vmatpush2.bf16.msra.mxu0 0
        %5193 = vmatprep.subr.bf16.mxu0 0
        %5194 = vmatpush2.bf16.msra.mxu0 0
        %5195 = vmatprep.subr.bf16.mxu0 0
        %5196 = vmatpush2.bf16.msra.mxu0 0
        %5197 = vmatprep.subr.bf16.mxu0 0
        %5198 = vmatpush2.bf16.msra.mxu0 0
        %5199 = vmatprep.subr.bf16.mxu0 0
        %5200 = vmatpush2.bf16.msra.mxu0 0
        %5201 = vmatprep.subr.bf16.mxu0 0
        %5202 = vmatpush2.bf16.msra.mxu0 0
        %5203 = vmatprep.subr.bf16.mxu0 0
        %5204 = vmatpush2.bf16.msra.mxu0 0
        %5205 = vmatprep.mubr.bf16.mxu0 0
        %5206 = vmatmul.mubr.bf16.gmra.mxu0 %v5126
        %v5207 = vpop.f32.mrf.mxu0
        %v5208 = vadd.f32 0.0, %v5207
        %v5209 = vpop.f32.mrf.mxu0
        %v5210 = vpop.f32.mrf.mxu0
        %v5211 = vadd.f32 0.0, %v5210
        %v5212 = vpop.f32.mrf.mxu0
        %5213 = vmatprep.mubr.bf16.mxu0 0
        %5214 = vmatmul.mubr.bf16.gmra.mxu0 %v5129
        %v5215 = vpop.f32.mrf.mxu0
        %v5216 = vadd.f32 0.0, %v5215
        %v5217 = vpop.f32.mrf.mxu0
        %v5218 = vpop.f32.mrf.mxu0
        %v5219 = vadd.f32 0.0, %v5218
        %v5220 = vpop.f32.mrf.mxu0
        %5221 = vmatprep.mubr.bf16.mxu0 0
        %5222 = vmatmul.mubr.bf16.gmra.mxu0 %v5132
        %v5223 = vpop.f32.mrf.mxu0
        %v5224 = vadd.f32 0.0, %v5223
        %v5225 = vpop.f32.mrf.mxu0
        %v5226 = vpop.f32.mrf.mxu0
        %v5227 = vadd.f32 0.0, %v5226
        %v5228 = vpop.f32.mrf.mxu0
        %5229 = vmatprep.mubr.bf16.mxu0 0
        %5230 = vmatmul.mubr.bf16.gmra.mxu0 %v5135
        %v5231 = vpop.f32.mrf.mxu0
        %v5232 = vadd.f32 0.0, %v5231
        %v5233 = vpop.f32.mrf.mxu0
        %v5234 = vpop.f32.mrf.mxu0
        %v5235 = vadd.f32 0.0, %v5234
        %v5236 = vpop.f32.mrf.mxu0
        %5237 = vmatprep.mubr.bf16.mxu0 0
        %5238 = vmatmul.mubr.bf16.gmra.mxu0 %v5138
        %v5239 = vpop.f32.mrf.mxu0
        %v5240 = vadd.f32 0.0, %v5239
        %v5241 = vpop.f32.mrf.mxu0
        %v5242 = vpop.f32.mrf.mxu0
        %v5243 = vadd.f32 0.0, %v5242
        %v5244 = vpop.f32.mrf.mxu0
        %5245 = vmatprep.mubr.bf16.mxu0 0
        %5246 = vmatmul.mubr.bf16.gmra.mxu0 %v5141
        %v5247 = vpop.f32.mrf.mxu0
        %v5248 = vadd.f32 0.0, %v5247
        %v5249 = vpop.f32.mrf.mxu0
        %v5250 = vpop.f32.mrf.mxu0
        %v5251 = vadd.f32 0.0, %v5250
        %v5252 = vpop.f32.mrf.mxu0
        %5253 = vmatprep.mubr.bf16.mxu0 0
        %5254 = vmatmul.mubr.bf16.gmra.mxu0 %v5144
        %v5255 = vpop.f32.mrf.mxu0
        %v5256 = vadd.f32 0.0, %v5255
        %v5257 = vpop.f32.mrf.mxu0
        %v5258 = vpop.f32.mrf.mxu0
        %v5259 = vadd.f32 0.0, %v5258
        %v5260 = vpop.f32.mrf.mxu0
        %5261 = vmatprep.mubr.bf16.mxu0 0
        %5262 = vmatmul.mubr.bf16.gmra.mxu0 %v5147
        %v5263 = vpop.f32.mrf.mxu0
        %v5264 = vadd.f32 0.0, %v5263
        %v5265 = vpop.f32.mrf.mxu0
        %v5266 = vpop.f32.mrf.mxu0
        %v5267 = vadd.f32 0.0, %v5266
        %v5268 = vpop.f32.mrf.mxu0
        %5269 = vmatprep.mubr.bf16.mxu0 0
        %5270 = vmatmul.mubr.bf16.gmra.mxu0 %v5150
        %v5271 = vpop.f32.mrf.mxu0
        %v5272 = vadd.f32 0.0, %v5271
        %v5273 = vpop.f32.mrf.mxu0
        %v5274 = vpop.f32.mrf.mxu0
        %v5275 = vadd.f32 0.0, %v5274
        %v5276 = vpop.f32.mrf.mxu0
        %5277 = vmatprep.mubr.bf16.mxu0 0
        %5278 = vmatmul.mubr.bf16.gmra.mxu0 %v5153
        %v5279 = vpop.f32.mrf.mxu0
        %v5280 = vadd.f32 0.0, %v5279
        %v5281 = vpop.f32.mrf.mxu0
        %v5282 = vpop.f32.mrf.mxu0
        %v5283 = vadd.f32 0.0, %v5282
        %v5284 = vpop.f32.mrf.mxu0
        %5285 = vmatprep.mubr.bf16.mxu0 0
        %5286 = vmatmul.mubr.bf16.gmra.mxu0 %v5156
        %v5287 = vpop.f32.mrf.mxu0
        %v5288 = vadd.f32 0.0, %v5287
        %v5289 = vpop.f32.mrf.mxu0
        %v5290 = vpop.f32.mrf.mxu0
        %v5291 = vadd.f32 0.0, %v5290
        %v5292 = vpop.f32.mrf.mxu0
        %5293 = vmatprep.mubr.bf16.mxu0 0
        %5294 = vmatmul.mubr.bf16.gmra.mxu0 %v5159
        %v5295 = vpop.f32.mrf.mxu0
        %v5296 = vadd.f32 0.0, %v5295
        %v5297 = vpop.f32.mrf.mxu0
        %v5298 = vpop.f32.mrf.mxu0
        %v5299 = vadd.f32 0.0, %v5298
        %v5300 = vpop.f32.mrf.mxu0
        %5301 = vmatprep.mubr.bf16.mxu0 0
        %5302 = vmatmul.mubr.bf16.gmra.mxu0 %v5162
        %v5303 = vpop.f32.mrf.mxu0
        %v5304 = vadd.f32 0.0, %v5303
        %v5305 = vpop.f32.mrf.mxu0
        %v5306 = vpop.f32.mrf.mxu0
        %v5307 = vadd.f32 0.0, %v5306
        %v5308 = vpop.f32.mrf.mxu0
        %5309 = vmatprep.mubr.bf16.mxu0 0
        %5310 = vmatmul.mubr.bf16.gmra.mxu0 %v5165
        %v5311 = vpop.f32.mrf.mxu0
        %v5312 = vadd.f32 0.0, %v5311
        %v5313 = vpop.f32.mrf.mxu0
        %v5314 = vpop.f32.mrf.mxu0
        %v5315 = vadd.f32 0.0, %v5314
        %v5316 = vpop.f32.mrf.mxu0
        %5317 = vmatprep.mubr.bf16.mxu0 0
        %5318 = vmatmul.mubr.bf16.gmra.mxu0 %v5168
        %v5319 = vpop.f32.mrf.mxu0
        %v5320 = vadd.f32 0.0, %v5319
        %v5321 = vpop.f32.mrf.mxu0
        %v5322 = vpop.f32.mrf.mxu0
        %v5323 = vadd.f32 0.0, %v5322
        %v5324 = vpop.f32.mrf.mxu0
        %5325 = vmatprep.mubr.bf16.mxu0 0
        %5326 = vmatmul.mubr.bf16.gmra.mxu0 %v5171
        %v5327 = vpop.f32.mrf.mxu0
        %v5328 = vadd.f32 0.0, %v5327
        %v5329 = vpop.f32.mrf.mxu0
        %v5330 = vpop.f32.mrf.mxu0
        %v5331 = vadd.f32 0.0, %v5330
        %v5332 = vpop.f32.mrf.mxu0
        %5333 = vdwg.mxu0
        %v5334 = vadd.f32 %v4596, %v5208
        %v5335 = vadd.f32 %v4597, %v5211
        %v5336 = vadd.f32 %v4598, %v5216
        %v5337 = vadd.f32 %v4599, %v5219
        %v5338 = vadd.f32 %v4600, %v5224
        %v5339 = vadd.f32 %v4601, %v5227
        %v5340 = vadd.f32 %v4602, %v5232
        %v5341 = vadd.f32 %v4603, %v5235
        %v5342 = vadd.f32 %v4604, %v5240
        %v5343 = vadd.f32 %v4605, %v5243
        %v5344 = vadd.f32 %v4606, %v5248
        %v5345 = vadd.f32 %v4607, %v5251
        %v5346 = vadd.f32 %v4608, %v5256
        %v5347 = vadd.f32 %v4609, %v5259
        %v5348 = vadd.f32 %v4610, %v5264
        %v5349 = vadd.f32 %v4611, %v5267
        %v5350 = vadd.f32 %v4612, %v5272
        %v5351 = vadd.f32 %v4613, %v5275
        %v5352 = vadd.f32 %v4614, %v5280
        %v5353 = vadd.f32 %v4615, %v5283
        %v5354 = vadd.f32 %v4616, %v5288
        %v5355 = vadd.f32 %v4617, %v5291
        %v5356 = vadd.f32 %v4618, %v5296
        %v5357 = vadd.f32 %v4619, %v5299
        %v5358 = vadd.f32 %v4620, %v5304
        %v5359 = vadd.f32 %v4621, %v5307
        %v5360 = vadd.f32 %v4622, %v5312
        %v5361 = vadd.f32 %v4623, %v5315
        %v5362 = vadd.f32 %v4624, %v5320
        %v5363 = vadd.f32 %v4625, %v5323
        %v5364 = vadd.f32 %v4626, %v5328
        %v5365 = vadd.f32 %v4627, %v5331
        %v5366 = vld [vmem:[%s4257] sm:$0xe]
        %v5367 = vld [vmem:[%s4257 + $0xc] sm:$0xe]
        %v5368 = vld [vmem:[%s4257 + $0x18] sm:$0xe]
        %v5369 = vld [vmem:[%s4257 + $0x24] sm:$0xe]
        %v5370 = vld [vmem:[%s4257 + $0x30] sm:$0xe]
        %v5371 = vld [vmem:[%s4257 + $0x3c] sm:$0xe]
        %v5372 = vld [vmem:[%s4257 + $0x48] sm:$0xe]
        %v5373 = vld [vmem:[%s4257 + $0x54] sm:$0xe]
        %v5374 = vld [vmem:[%s4257 + $0x60] sm:$0xe]
        %v5375 = vld [vmem:[%s4257 + $0x6c] sm:$0xe]
        %v5376 = vld [vmem:[%s4257 + $0x78] sm:$0xe]
        %v5377 = vld [vmem:[%s4257 + $0x84] sm:$0xe]
        %v5378 = vld [vmem:[%s4257 + $0x90] sm:$0xe]
        %v5379 = vld [vmem:[%s4257 + $0x9c] sm:$0xe]
        %v5380 = vld [vmem:[%s4257 + $0xa8] sm:$0xe]
        %v5381 = vld [vmem:[%s4257 + $0xb4] sm:$0xe]
        %v5430 = vrot.slane %v5366, 5
        %v5431 = vrot.slane %v5430, 4
        %v5432 = vrot.slane %v4629, 5
        %v5433 = vsel %vm2248, %v5431, %v5432
        %v5434 = vrot.slane %v5432, 4
        %v5435 = vrot.slane %v4630, 5
        %v5436 = vsel %vm2248, %v5434, %v5435
        %v5437 = vrot.slane %v5367, 5
        %v5438 = vrot.slane %v5437, 4
        %v5439 = vrot.slane %v4632, 5
        %v5440 = vsel %vm2248, %v5438, %v5439
        %v5441 = vrot.slane %v5439, 4
        %v5442 = vrot.slane %v4633, 5
        %v5443 = vsel %vm2248, %v5441, %v5442
        %v5444 = vrot.slane %v5368, 5
        %v5445 = vrot.slane %v5444, 4
        %v5446 = vrot.slane %v4635, 5
        %v5447 = vsel %vm2248, %v5445, %v5446
        %v5448 = vrot.slane %v5446, 4
        %v5449 = vrot.slane %v4636, 5
        %v5450 = vsel %vm2248, %v5448, %v5449
        %v5451 = vrot.slane %v5369, 5
        %v5452 = vrot.slane %v5451, 4
        %v5453 = vrot.slane %v4638, 5
        %v5454 = vsel %vm2248, %v5452, %v5453
        %v5455 = vrot.slane %v5453, 4
        %v5456 = vrot.slane %v4639, 5
        %v5457 = vsel %vm2248, %v5455, %v5456
        %v5458 = vrot.slane %v5370, 5
        %v5459 = vrot.slane %v5458, 4
        %v5460 = vrot.slane %v4641, 5
        %v5461 = vsel %vm2248, %v5459, %v5460
        %v5462 = vrot.slane %v5460, 4
        %v5463 = vrot.slane %v4642, 5
        %v5464 = vsel %vm2248, %v5462, %v5463
        %v5465 = vrot.slane %v5371, 5
        %v5466 = vrot.slane %v5465, 4
        %v5467 = vrot.slane %v4644, 5
        %v5468 = vsel %vm2248, %v5466, %v5467
        %v5469 = vrot.slane %v5467, 4
        %v5470 = vrot.slane %v4645, 5
        %v5471 = vsel %vm2248, %v5469, %v5470
        %v5472 = vrot.slane %v5372, 5
        %v5473 = vrot.slane %v5472, 4
        %v5474 = vrot.slane %v4647, 5
        %v5475 = vsel %vm2248, %v5473, %v5474
        %v5476 = vrot.slane %v5474, 4
        %v5477 = vrot.slane %v4648, 5
        %v5478 = vsel %vm2248, %v5476, %v5477
        %v5479 = vrot.slane %v5373, 5
        %v5480 = vrot.slane %v5479, 4
        %v5481 = vrot.slane %v4650, 5
        %v5482 = vsel %vm2248, %v5480, %v5481
        %v5483 = vrot.slane %v5481, 4
        %v5484 = vrot.slane %v4651, 5
        %v5485 = vsel %vm2248, %v5483, %v5484
        %v5486 = vrot.slane %v5374, 5
        %v5487 = vrot.slane %v5486, 4
        %v5488 = vrot.slane %v4653, 5
        %v5489 = vsel %vm2248, %v5487, %v5488
        %v5490 = vrot.slane %v5488, 4
        %v5491 = vrot.slane %v4654, 5
        %v5492 = vsel %vm2248, %v5490, %v5491
        %v5493 = vrot.slane %v5375, 5
        %v5494 = vrot.slane %v5493, 4
        %v5495 = vrot.slane %v4656, 5
        %v5496 = vsel %vm2248, %v5494, %v5495
        %v5497 = vrot.slane %v5495, 4
        %v5498 = vrot.slane %v4657, 5
        %v5499 = vsel %vm2248, %v5497, %v5498
        %v5500 = vrot.slane %v5376, 5
        %v5501 = vrot.slane %v5500, 4
        %v5502 = vrot.slane %v4659, 5
        %v5503 = vsel %vm2248, %v5501, %v5502
        %v5504 = vrot.slane %v5502, 4
        %v5505 = vrot.slane %v4660, 5
        %v5506 = vsel %vm2248, %v5504, %v5505
        %v5507 = vrot.slane %v5377, 5
        %v5508 = vrot.slane %v5507, 4
        %v5509 = vrot.slane %v4662, 5
        %v5510 = vsel %vm2248, %v5508, %v5509
        %v5511 = vrot.slane %v5509, 4
        %v5512 = vrot.slane %v4663, 5
        %v5513 = vsel %vm2248, %v5511, %v5512
        %v5514 = vrot.slane %v5378, 5
        %v5515 = vrot.slane %v5514, 4
        %v5516 = vrot.slane %v4665, 5
        %v5517 = vsel %vm2248, %v5515, %v5516
        %v5518 = vrot.slane %v5516, 4
        %v5519 = vrot.slane %v4666, 5
        %v5520 = vsel %vm2248, %v5518, %v5519
        %v5521 = vrot.slane %v5379, 5
        %v5522 = vrot.slane %v5521, 4
        %v5523 = vrot.slane %v4668, 5
        %v5524 = vsel %vm2248, %v5522, %v5523
        %v5525 = vrot.slane %v5523, 4
        %v5526 = vrot.slane %v4669, 5
        %v5527 = vsel %vm2248, %v5525, %v5526
        %v5528 = vrot.slane %v5380, 5
        %v5529 = vrot.slane %v5528, 4
        %v5530 = vrot.slane %v4671, 5
        %v5531 = vsel %vm2248, %v5529, %v5530
        %v5532 = vrot.slane %v5530, 4
        %v5533 = vrot.slane %v4672, 5
        %v5534 = vsel %vm2248, %v5532, %v5533
        %v5535 = vrot.slane %v5381, 5
        %v5536 = vrot.slane %v5535, 4
        %v5537 = vrot.slane %v4674, 5
        %v5538 = vsel %vm2248, %v5536, %v5537
        %v5539 = vrot.slane %v5537, 4
        %v5540 = vrot.slane %v4675, 5
        %v5541 = vsel %vm2248, %v5539, %v5540
        %s5542 = scalar_lea.vmem %s3, 128
        %v5543 = vld [vmem:[%s5542] sm:$0xf]
        %v5544 = vld [vmem:[%s5542 + $0x4] sm:$0xf]
        %v5545 = vld [vmem:[%s5542 + $0x8] sm:$0xf]
        %v5546 = vld [vmem:[%s5542 + $0xc] sm:$0xf]
        %v5547 = vunpack.c.l.b16 %v5433
        %v5548 = vunpack.c.l.b16 %v5436
        %v5549 = vunpack.c.l.b16 %v5440
        %v5550 = vunpack.c.l.b16 %v5443
        %v5551 = vunpack.c.l.b16 %v5447
        %v5552 = vunpack.c.l.b16 %v5450
        %v5553 = vunpack.c.l.b16 %v5454
        %v5554 = vunpack.c.l.b16 %v5457
        %v5555 = vunpack.c.l.b16 %v5461
        %v5556 = vunpack.c.l.b16 %v5464
        %v5557 = vunpack.c.l.b16 %v5468
        %v5558 = vunpack.c.l.b16 %v5471
        %v5559 = vunpack.c.l.b16 %v5475
        %v5560 = vunpack.c.l.b16 %v5478
        %v5561 = vunpack.c.l.b16 %v5482
        %v5562 = vunpack.c.l.b16 %v5485
        %v5563 = vunpack.c.l.b16 %v5489
        %v5564 = vunpack.c.l.b16 %v5492
        %v5565 = vunpack.c.l.b16 %v5496
        %v5566 = vunpack.c.l.b16 %v5499
        %v5567 = vunpack.c.l.b16 %v5503
        %v5568 = vunpack.c.l.b16 %v5506
        %v5569 = vunpack.c.l.b16 %v5510
        %v5570 = vunpack.c.l.b16 %v5513
        %v5571 = vunpack.c.l.b16 %v5517
        %v5572 = vunpack.c.l.b16 %v5520
        %v5573 = vunpack.c.l.b16 %v5524
        %v5574 = vunpack.c.l.b16 %v5527
        %v5575 = vunpack.c.l.b16 %v5531
        %v5576 = vunpack.c.l.b16 %v5534
        %v5577 = vunpack.c.l.b16 %v5538
        %v5578 = vunpack.c.l.b16 %v5541
        %v5579 = vpack.c.b16 %v5548, %v5547
        %v5580 = vpack.c.b16 %v5550, %v5549
        %v5581 = vpack.c.b16 %v5552, %v5551
        %v5582 = vpack.c.b16 %v5554, %v5553
        %v5583 = vpack.c.b16 %v5556, %v5555
        %v5584 = vpack.c.b16 %v5558, %v5557
        %v5585 = vpack.c.b16 %v5560, %v5559
        %v5586 = vpack.c.b16 %v5562, %v5561
        %v5587 = vpack.c.b16 %v5564, %v5563
        %v5588 = vpack.c.b16 %v5566, %v5565
        %v5589 = vpack.c.b16 %v5568, %v5567
        %v5590 = vpack.c.b16 %v5570, %v5569
        %v5591 = vpack.c.b16 %v5572, %v5571
        %v5592 = vpack.c.b16 %v5574, %v5573
        %v5593 = vpack.c.b16 %v5576, %v5575
        %v5594 = vpack.c.b16 %v5578, %v5577
        %v5599 = vunpack.c.l.b16 %v5543
        %v5600 = vunpack.c.l.b16 %v5544
        %v5601 = vunpack.c.l.b16 %v5545
        %v5602 = vunpack.c.l.b16 %v5546
        %v5603 = vpack.c.b16 %v5600, %v5599
        %v5604 = vpack.c.b16 %v5602, %v5601
        %v5608 = vsel %vm1687, %v5579, 0
        %v5611 = vsel %vm1687, %v5580, 0
        %v5614 = vsel %vm1687, %v5581, 0
        %v5617 = vsel %vm1687, %v5582, 0
        %v5620 = vsel %vm1687, %v5583, 0
        %v5623 = vsel %vm1687, %v5584, 0
        %v5626 = vsel %vm1687, %v5585, 0
        %v5629 = vsel %vm1687, %v5586, 0
        %v5632 = vsel %vm1687, %v5587, 0
        %v5635 = vsel %vm1687, %v5588, 0
        %v5638 = vsel %vm1687, %v5589, 0
        %v5641 = vsel %vm1687, %v5590, 0
        %v5644 = vsel %vm1687, %v5591, 0
        %v5647 = vsel %vm1687, %v5592, 0
        %v5650 = vsel %vm1687, %v5593, 0
        %v5653 = vsel %vm1687, %v5594, 0
        %5655 = vmatprep.subr.bf16.mxu0 0
        %5656 = vmatpush1.bf16.msra.mxu0 0
        %5657 = vmatprep.subr.bf16.mxu0 0
        %5658 = vmatpush1.bf16.msra.mxu0 0
        %5659 = vmatprep.subr.bf16.mxu0 0
        %5660 = vmatpush1.bf16.msra.mxu0 0
        %5661 = vmatprep.subr.bf16.mxu0 0
        %5662 = vmatpush1.bf16.msra.mxu0 0
        %5663 = vmatprep.subr.bf16.mxu0 0
        %5664 = vmatpush1.bf16.msra.mxu0 0
        %5665 = vmatprep.subr.bf16.mxu0 0
        %5666 = vmatpush1.bf16.msra.mxu0 0
        %5667 = vmatprep.subr.bf16.mxu0 0
        %5668 = vmatpush1.bf16.msra.mxu0 %v5604
        %5669 = vmatprep.subr.bf16.mxu0 0
        %5670 = vmatpush1.bf16.msra.mxu0 %v5603
        %5671 = vmatprep.subr.bf16.mxu0 0
        %5672 = vmatpush2.bf16.msra.mxu0 0
        %5673 = vmatprep.subr.bf16.mxu0 0
        %5674 = vmatpush2.bf16.msra.mxu0 0
        %5675 = vmatprep.subr.bf16.mxu0 0
        %5676 = vmatpush2.bf16.msra.mxu0 0
        %5677 = vmatprep.subr.bf16.mxu0 0
        %5678 = vmatpush2.bf16.msra.mxu0 0
        %5679 = vmatprep.subr.bf16.mxu0 0
        %5680 = vmatpush2.bf16.msra.mxu0 0
        %5681 = vmatprep.subr.bf16.mxu0 0
        %5682 = vmatpush2.bf16.msra.mxu0 0
        %5683 = vmatprep.subr.bf16.mxu0 0
        %5684 = vmatpush2.bf16.msra.mxu0 0
        %5685 = vmatprep.subr.bf16.mxu0 0
        %5686 = vmatpush2.bf16.msra.mxu0 0
        %5687 = vmatprep.mubr.bf16.mxu0 0
        %5688 = vmatmul.mubr.bf16.gmra.mxu0 %v5608
        %v5689 = vpop.f32.mrf.mxu0
        %v5690 = vadd.f32 0.0, %v5689
        %v5691 = vpop.f32.mrf.mxu0
        %v5692 = vpop.f32.mrf.mxu0
        %v5693 = vadd.f32 0.0, %v5692
        %v5694 = vpop.f32.mrf.mxu0
        %5695 = vmatprep.mubr.bf16.mxu0 0
        %5696 = vmatmul.mubr.bf16.gmra.mxu0 %v5611
        %v5697 = vpop.f32.mrf.mxu0
        %v5698 = vadd.f32 0.0, %v5697
        %v5699 = vpop.f32.mrf.mxu0
        %v5700 = vpop.f32.mrf.mxu0
        %v5701 = vadd.f32 0.0, %v5700
        %v5702 = vpop.f32.mrf.mxu0
        %5703 = vmatprep.mubr.bf16.mxu0 0
        %5704 = vmatmul.mubr.bf16.gmra.mxu0 %v5614
        %v5705 = vpop.f32.mrf.mxu0
        %v5706 = vadd.f32 0.0, %v5705
        %v5707 = vpop.f32.mrf.mxu0
        %v5708 = vpop.f32.mrf.mxu0
        %v5709 = vadd.f32 0.0, %v5708
        %v5710 = vpop.f32.mrf.mxu0
        %5711 = vmatprep.mubr.bf16.mxu0 0
        %5712 = vmatmul.mubr.bf16.gmra.mxu0 %v5617
        %v5713 = vpop.f32.mrf.mxu0
        %v5714 = vadd.f32 0.0, %v5713
        %v5715 = vpop.f32.mrf.mxu0
        %v5716 = vpop.f32.mrf.mxu0
        %v5717 = vadd.f32 0.0, %v5716
        %v5718 = vpop.f32.mrf.mxu0
        %5719 = vmatprep.mubr.bf16.mxu0 0
        %5720 = vmatmul.mubr.bf16.gmra.mxu0 %v5620
        %v5721 = vpop.f32.mrf.mxu0
        %v5722 = vadd.f32 0.0, %v5721
        %v5723 = vpop.f32.mrf.mxu0
        %v5724 = vpop.f32.mrf.mxu0
        %v5725 = vadd.f32 0.0, %v5724
        %v5726 = vpop.f32.mrf.mxu0
        %5727 = vmatprep.mubr.bf16.mxu0 0
        %5728 = vmatmul.mubr.bf16.gmra.mxu0 %v5623
        %v5729 = vpop.f32.mrf.mxu0
        %v5730 = vadd.f32 0.0, %v5729
        %v5731 = vpop.f32.mrf.mxu0
        %v5732 = vpop.f32.mrf.mxu0
        %v5733 = vadd.f32 0.0, %v5732
        %v5734 = vpop.f32.mrf.mxu0
        %5735 = vmatprep.mubr.bf16.mxu0 0
        %5736 = vmatmul.mubr.bf16.gmra.mxu0 %v5626
        %v5737 = vpop.f32.mrf.mxu0
        %v5738 = vadd.f32 0.0, %v5737
        %v5739 = vpop.f32.mrf.mxu0
        %v5740 = vpop.f32.mrf.mxu0
        %v5741 = vadd.f32 0.0, %v5740
        %v5742 = vpop.f32.mrf.mxu0
        %5743 = vmatprep.mubr.bf16.mxu0 0
        %5744 = vmatmul.mubr.bf16.gmra.mxu0 %v5629
        %v5745 = vpop.f32.mrf.mxu0
        %v5746 = vadd.f32 0.0, %v5745
        %v5747 = vpop.f32.mrf.mxu0
        %v5748 = vpop.f32.mrf.mxu0
        %v5749 = vadd.f32 0.0, %v5748
        %v5750 = vpop.f32.mrf.mxu0
        %5751 = vmatprep.mubr.bf16.mxu0 0
        %5752 = vmatmul.mubr.bf16.gmra.mxu0 %v5632
        %v5753 = vpop.f32.mrf.mxu0
        %v5754 = vadd.f32 0.0, %v5753
        %v5755 = vpop.f32.mrf.mxu0
        %v5756 = vpop.f32.mrf.mxu0
        %v5757 = vadd.f32 0.0, %v5756
        %v5758 = vpop.f32.mrf.mxu0
        %5759 = vmatprep.mubr.bf16.mxu0 0
        %5760 = vmatmul.mubr.bf16.gmra.mxu0 %v5635
        %v5761 = vpop.f32.mrf.mxu0
        %v5762 = vadd.f32 0.0, %v5761
        %v5763 = vpop.f32.mrf.mxu0
        %v5764 = vpop.f32.mrf.mxu0
        %v5765 = vadd.f32 0.0, %v5764
        %v5766 = vpop.f32.mrf.mxu0
        %5767 = vmatprep.mubr.bf16.mxu0 0
        %5768 = vmatmul.mubr.bf16.gmra.mxu0 %v5638
        %v5769 = vpop.f32.mrf.mxu0
        %v5770 = vadd.f32 0.0, %v5769
        %v5771 = vpop.f32.mrf.mxu0
        %v5772 = vpop.f32.mrf.mxu0
        %v5773 = vadd.f32 0.0, %v5772
        %v5774 = vpop.f32.mrf.mxu0
        %5775 = vmatprep.mubr.bf16.mxu0 0
        %5776 = vmatmul.mubr.bf16.gmra.mxu0 %v5641
        %v5777 = vpop.f32.mrf.mxu0
        %v5778 = vadd.f32 0.0, %v5777
        %v5779 = vpop.f32.mrf.mxu0
        %v5780 = vpop.f32.mrf.mxu0
        %v5781 = vadd.f32 0.0, %v5780
        %v5782 = vpop.f32.mrf.mxu0
        %5783 = vmatprep.mubr.bf16.mxu0 0
        %5784 = vmatmul.mubr.bf16.gmra.mxu0 %v5644
        %v5785 = vpop.f32.mrf.mxu0
        %v5786 = vadd.f32 0.0, %v5785
        %v5787 = vpop.f32.mrf.mxu0
        %v5788 = vpop.f32.mrf.mxu0
        %v5789 = vadd.f32 0.0, %v5788
        %v5790 = vpop.f32.mrf.mxu0
        %5791 = vmatprep.mubr.bf16.mxu0 0
        %5792 = vmatmul.mubr.bf16.gmra.mxu0 %v5647
        %v5793 = vpop.f32.mrf.mxu0
        %v5794 = vadd.f32 0.0, %v5793
        %v5795 = vpop.f32.mrf.mxu0
        %v5796 = vpop.f32.mrf.mxu0
        %v5797 = vadd.f32 0.0, %v5796
        %v5798 = vpop.f32.mrf.mxu0
        %5799 = vmatprep.mubr.bf16.mxu0 0
        %5800 = vmatmul.mubr.bf16.gmra.mxu0 %v5650
        %v5801 = vpop.f32.mrf.mxu0
        %v5802 = vadd.f32 0.0, %v5801
        %v5803 = vpop.f32.mrf.mxu0
        %v5804 = vpop.f32.mrf.mxu0
        %v5805 = vadd.f32 0.0, %v5804
        %v5806 = vpop.f32.mrf.mxu0
        %5807 = vmatprep.mubr.bf16.mxu0 0
        %5808 = vmatmul.mubr.bf16.gmra.mxu0 %v5653
        %v5809 = vpop.f32.mrf.mxu0
        %v5810 = vadd.f32 0.0, %v5809
        %v5811 = vpop.f32.mrf.mxu0
        %v5812 = vpop.f32.mrf.mxu0
        %v5813 = vadd.f32 0.0, %v5812
        %v5814 = vpop.f32.mrf.mxu0
        %5815 = vdwg.mxu0
        %v5816 = vadd.f32 %v5334, %v5690
        %v5817 = vadd.f32 %v5335, %v5693
        %v5818 = vadd.f32 %v5336, %v5698
        %v5819 = vadd.f32 %v5337, %v5701
        %v5820 = vadd.f32 %v5338, %v5706
        %v5821 = vadd.f32 %v5339, %v5709
        %v5822 = vadd.f32 %v5340, %v5714
        %v5823 = vadd.f32 %v5341, %v5717
        %v5824 = vadd.f32 %v5342, %v5722
        %v5825 = vadd.f32 %v5343, %v5725
        %v5826 = vadd.f32 %v5344, %v5730
        %v5827 = vadd.f32 %v5345, %v5733
        %v5828 = vadd.f32 %v5346, %v5738
        %v5829 = vadd.f32 %v5347, %v5741
        %v5830 = vadd.f32 %v5348, %v5746
        %v5831 = vadd.f32 %v5349, %v5749
        %v5832 = vadd.f32 %v5350, %v5754
        %v5833 = vadd.f32 %v5351, %v5757
        %v5834 = vadd.f32 %v5352, %v5762
        %v5835 = vadd.f32 %v5353, %v5765
        %v5836 = vadd.f32 %v5354, %v5770
        %v5837 = vadd.f32 %v5355, %v5773
        %v5838 = vadd.f32 %v5356, %v5778
        %v5839 = vadd.f32 %v5357, %v5781
        %v5840 = vadd.f32 %v5358, %v5786
        %v5841 = vadd.f32 %v5359, %v5789
        %v5842 = vadd.f32 %v5360, %v5794
        %v5843 = vadd.f32 %v5361, %v5797
        %v5844 = vadd.f32 %v5362, %v5802
        %v5845 = vadd.f32 %v5363, %v5805
        %v5846 = vadd.f32 %v5364, %v5810
        %v5847 = vadd.f32 %v5365, %v5813
        %v5848 = vld [vmem:[%s4] sm:$0x1]
        %v5850 = vlaneseq
        %v5851 = vshrl.u32 %v5850, 7
        %v5852 = vsub.s32 0, %v5851
        %v5853 = vrot.slane %v5848, %v5852
        %v5855 = vadd.f32 %v5816, %v5853
        %v5856 = vadd.f32 %v5817, %v5853
        %v5857 = vadd.f32 %v5818, %v5853
        %v5858 = vadd.f32 %v5819, %v5853
        %v5859 = vadd.f32 %v5820, %v5853
        %v5860 = vadd.f32 %v5821, %v5853
        %v5861 = vadd.f32 %v5822, %v5853
        %v5862 = vadd.f32 %v5823, %v5853
        %v5863 = vadd.f32 %v5824, %v5853
        %v5864 = vadd.f32 %v5825, %v5853
        %v5865 = vadd.f32 %v5826, %v5853
        %v5866 = vadd.f32 %v5827, %v5853
        %v5867 = vadd.f32 %v5828, %v5853
        %v5868 = vadd.f32 %v5829, %v5853
        %v5869 = vadd.f32 %v5830, %v5853
        %v5870 = vadd.f32 %v5831, %v5853
        %v5871 = vadd.f32 %v5832, %v5853
        %v5872 = vadd.f32 %v5833, %v5853
        %v5873 = vadd.f32 %v5834, %v5853
        %v5874 = vadd.f32 %v5835, %v5853
        %v5875 = vadd.f32 %v5836, %v5853
        %v5876 = vadd.f32 %v5837, %v5853
        %v5877 = vadd.f32 %v5838, %v5853
        %v5878 = vadd.f32 %v5839, %v5853
        %v5879 = vadd.f32 %v5840, %v5853
        %v5880 = vadd.f32 %v5841, %v5853
        %v5881 = vadd.f32 %v5842, %v5853
        %v5882 = vadd.f32 %v5843, %v5853
        %v5883 = vadd.f32 %v5844, %v5853
        %v5884 = vadd.f32 %v5845, %v5853
        %v5885 = vadd.f32 %v5846, %v5853
        %v5886 = vadd.f32 %v5847, %v5853
        %v5887 = vmax.f32 %v5855, 0.0
        %v5888 = vmax.f32 %v5856, 0.0
        %v5889 = vmax.f32 %v5857, 0.0
        %v5890 = vmax.f32 %v5858, 0.0
        %v5891 = vmax.f32 %v5859, 0.0
        %v5892 = vmax.f32 %v5860, 0.0
        %v5893 = vmax.f32 %v5861, 0.0
        %v5894 = vmax.f32 %v5862, 0.0
        %v5895 = vmax.f32 %v5863, 0.0
        %v5896 = vmax.f32 %v5864, 0.0
        %v5897 = vmax.f32 %v5865, 0.0
        %v5898 = vmax.f32 %v5866, 0.0
        %v5899 = vmax.f32 %v5867, 0.0
        %v5900 = vmax.f32 %v5868, 0.0
        %v5901 = vmax.f32 %v5869, 0.0
        %v5902 = vmax.f32 %v5870, 0.0
        %v5903 = vmax.f32 %v5871, 0.0
        %v5904 = vmax.f32 %v5872, 0.0
        %v5905 = vmax.f32 %v5873, 0.0
        %v5906 = vmax.f32 %v5874, 0.0
        %v5907 = vmax.f32 %v5875, 0.0
        %v5908 = vmax.f32 %v5876, 0.0
        %v5909 = vmax.f32 %v5877, 0.0
        %v5910 = vmax.f32 %v5878, 0.0
        %v5911 = vmax.f32 %v5879, 0.0
        %v5912 = vmax.f32 %v5880, 0.0
        %v5913 = vmax.f32 %v5881, 0.0
        %v5914 = vmax.f32 %v5882, 0.0
        %v5915 = vmax.f32 %v5883, 0.0
        %v5916 = vmax.f32 %v5884, 0.0
        %v5917 = vmax.f32 %v5885, 0.0
        %v5918 = vmax.f32 %v5886, 0.0
        %v5919 = vpack.c.bf16 %v5888, %v5887
        %v5920 = vpack.c.bf16 %v5890, %v5889
        %v5921 = vpack.c.bf16 %v5892, %v5891
        %v5922 = vpack.c.bf16 %v5894, %v5893
        %v5923 = vpack.c.bf16 %v5896, %v5895
        %v5924 = vpack.c.bf16 %v5898, %v5897
        %v5925 = vpack.c.bf16 %v5900, %v5899
        %v5926 = vpack.c.bf16 %v5902, %v5901
        %v5927 = vpack.c.bf16 %v5904, %v5903
        %v5928 = vpack.c.bf16 %v5906, %v5905
        %v5929 = vpack.c.bf16 %v5908, %v5907
        %v5930 = vpack.c.bf16 %v5910, %v5909
        %v5931 = vpack.c.bf16 %v5912, %v5911
        %v5932 = vpack.c.bf16 %v5914, %v5913
        %v5933 = vpack.c.bf16 %v5916, %v5915
        %v5934 = vpack.c.bf16 %v5918, %v5917
        %v5935 = vld [vmem:[%s5] sm:$0xf]
        %v5936 = vld [vmem:[%s5 + $0x4] sm:$0xf]
        %v5937 = vld [vmem:[%s5 + $0x8] sm:$0xf]
        %v5938 = vld [vmem:[%s5 + $0xc] sm:$0xf]
        %v5939 = vld [vmem:[%s6] sm:$0x1]
        %v5941 = vlaneseq
        %v5942 = vshrl.u32 %v5941, 7
        %v5943 = vsub.s32 0, %v5942
        %v5944 = vrot.slane %v5939, %v5943
        %v5950 = vunpack.c.l.b16 %v5935
        %v5951 = vunpack.c.l.b16 %v5936
        %v5952 = vunpack.c.l.b16 %v5937
        %v5953 = vunpack.c.l.b16 %v5938
        %v5954 = vpack.c.b16 %v5951, %v5950
        %v5955 = vpack.c.b16 %v5953, %v5952
        %v5959 = vsel %vm1687, %v5919, 0
        %v5962 = vsel %vm1687, %v5920, 0
        %v5965 = vsel %vm1687, %v5921, 0
        %v5968 = vsel %vm1687, %v5922, 0
        %v5971 = vsel %vm1687, %v5923, 0
        %v5974 = vsel %vm1687, %v5924, 0
        %v5977 = vsel %vm1687, %v5925, 0
        %v5980 = vsel %vm1687, %v5926, 0
        %v5983 = vsel %vm1687, %v5927, 0
        %v5986 = vsel %vm1687, %v5928, 0
        %v5989 = vsel %vm1687, %v5929, 0
        %v5992 = vsel %vm1687, %v5930, 0
        %v5995 = vsel %vm1687, %v5931, 0
        %v5998 = vsel %vm1687, %v5932, 0
        %v6001 = vsel %vm1687, %v5933, 0
        %v6004 = vsel %vm1687, %v5934, 0
        %6006 = vmatprep.subr.bf16.mxu0 0
        %6007 = vmatpush1.bf16.msra.mxu0 0
        %6008 = vmatprep.subr.bf16.mxu0 0
        %6009 = vmatpush1.bf16.msra.mxu0 0
        %6010 = vmatprep.subr.bf16.mxu0 0
        %6011 = vmatpush1.bf16.msra.mxu0 0
        %6012 = vmatprep.subr.bf16.mxu0 0
        %6013 = vmatpush1.bf16.msra.mxu0 0
        %6014 = vmatprep.subr.bf16.mxu0 0
        %6015 = vmatpush1.bf16.msra.mxu0 0
        %6016 = vmatprep.subr.bf16.mxu0 0
        %6017 = vmatpush1.bf16.msra.mxu0 0
        %6018 = vmatprep.subr.bf16.mxu0 0
        %6019 = vmatpush1.bf16.msra.mxu0 %v5955
        %6020 = vmatprep.subr.bf16.mxu0 0
        %6021 = vmatpush1.bf16.msra.mxu0 %v5954
        %6022 = vmatprep.subr.bf16.mxu0 0
        %6023 = vmatpush2.bf16.msra.mxu0 0
        %6024 = vmatprep.subr.bf16.mxu0 0
        %6025 = vmatpush2.bf16.msra.mxu0 0
        %6026 = vmatprep.subr.bf16.mxu0 0
        %6027 = vmatpush2.bf16.msra.mxu0 0
        %6028 = vmatprep.subr.bf16.mxu0 0
        %6029 = vmatpush2.bf16.msra.mxu0 0
        %6030 = vmatprep.subr.bf16.mxu0 0
        %6031 = vmatpush2.bf16.msra.mxu0 0
        %6032 = vmatprep.subr.bf16.mxu0 0
        %6033 = vmatpush2.bf16.msra.mxu0 0
        %6034 = vmatprep.subr.bf16.mxu0 0
        %6035 = vmatpush2.bf16.msra.mxu0 0
        %6036 = vmatprep.subr.bf16.mxu0 0
        %6037 = vmatpush2.bf16.msra.mxu0 0
        %6038 = vmatprep.mubr.bf16.mxu0 0
        %6039 = vmatmul.mubr.bf16.gmra.mxu0 %v5959
        %v6040 = vpop.f32.mrf.mxu0
        %v6041 = vadd.f32 %v5944, %v6040
        %v6042 = vpop.f32.mrf.mxu0
        %v6043 = vpop.f32.mrf.mxu0
        %v6044 = vadd.f32 %v5944, %v6043
        %v6045 = vpop.f32.mrf.mxu0
        %6046 = vmatprep.mubr.bf16.mxu0 0
        %6047 = vmatmul.mubr.bf16.gmra.mxu0 %v5962
        %v6048 = vpop.f32.mrf.mxu0
        %v6049 = vadd.f32 %v5944, %v6048
        %v6050 = vpop.f32.mrf.mxu0
        %v6051 = vpop.f32.mrf.mxu0
        %v6052 = vadd.f32 %v5944, %v6051
        %v6053 = vpop.f32.mrf.mxu0
        %6054 = vmatprep.mubr.bf16.mxu0 0
        %6055 = vmatmul.mubr.bf16.gmra.mxu0 %v5965
        %v6056 = vpop.f32.mrf.mxu0
        %v6057 = vadd.f32 %v5944, %v6056
        %v6058 = vpop.f32.mrf.mxu0
        %v6059 = vpop.f32.mrf.mxu0
        %v6060 = vadd.f32 %v5944, %v6059
        %v6061 = vpop.f32.mrf.mxu0
        %6062 = vmatprep.mubr.bf16.mxu0 0
        %6063 = vmatmul.mubr.bf16.gmra.mxu0 %v5968
        %v6064 = vpop.f32.mrf.mxu0
        %v6065 = vadd.f32 %v5944, %v6064
        %v6066 = vpop.f32.mrf.mxu0
        %v6067 = vpop.f32.mrf.mxu0
        %v6068 = vadd.f32 %v5944, %v6067
        %v6069 = vpop.f32.mrf.mxu0
        %6070 = vmatprep.mubr.bf16.mxu0 0
        %6071 = vmatmul.mubr.bf16.gmra.mxu0 %v5971
        %v6072 = vpop.f32.mrf.mxu0
        %v6073 = vadd.f32 %v5944, %v6072
        %v6074 = vpop.f32.mrf.mxu0
        %v6075 = vpop.f32.mrf.mxu0
        %v6076 = vadd.f32 %v5944, %v6075
        %v6077 = vpop.f32.mrf.mxu0
        %6078 = vmatprep.mubr.bf16.mxu0 0
        %6079 = vmatmul.mubr.bf16.gmra.mxu0 %v5974
        %v6080 = vpop.f32.mrf.mxu0
        %v6081 = vadd.f32 %v5944, %v6080
        %v6082 = vpop.f32.mrf.mxu0
        %v6083 = vpop.f32.mrf.mxu0
        %v6084 = vadd.f32 %v5944, %v6083
        %v6085 = vpop.f32.mrf.mxu0
        %6086 = vmatprep.mubr.bf16.mxu0 0
        %6087 = vmatmul.mubr.bf16.gmra.mxu0 %v5977
        %v6088 = vpop.f32.mrf.mxu0
        %v6089 = vadd.f32 %v5944, %v6088
        %v6090 = vpop.f32.mrf.mxu0
        %v6091 = vpop.f32.mrf.mxu0
        %v6092 = vadd.f32 %v5944, %v6091
        %v6093 = vpop.f32.mrf.mxu0
        %6094 = vmatprep.mubr.bf16.mxu0 0
        %6095 = vmatmul.mubr.bf16.gmra.mxu0 %v5980
        %v6096 = vpop.f32.mrf.mxu0
        %v6097 = vadd.f32 %v5944, %v6096
        %v6098 = vpop.f32.mrf.mxu0
        %v6099 = vpop.f32.mrf.mxu0
        %v6100 = vadd.f32 %v5944, %v6099
        %v6101 = vpop.f32.mrf.mxu0
        %6102 = vmatprep.mubr.bf16.mxu0 0
        %6103 = vmatmul.mubr.bf16.gmra.mxu0 %v5983
        %v6104 = vpop.f32.mrf.mxu0
        %v6105 = vadd.f32 %v5944, %v6104
        %v6106 = vpop.f32.mrf.mxu0
        %v6107 = vpop.f32.mrf.mxu0
        %v6108 = vadd.f32 %v5944, %v6107
        %v6109 = vpop.f32.mrf.mxu0
        %6110 = vmatprep.mubr.bf16.mxu0 0
        %6111 = vmatmul.mubr.bf16.gmra.mxu0 %v5986
        %v6112 = vpop.f32.mrf.mxu0
        %v6113 = vadd.f32 %v5944, %v6112
        %v6114 = vpop.f32.mrf.mxu0
        %v6115 = vpop.f32.mrf.mxu0
        %v6116 = vadd.f32 %v5944, %v6115
        %v6117 = vpop.f32.mrf.mxu0
        %6118 = vmatprep.mubr.bf16.mxu0 0
        %6119 = vmatmul.mubr.bf16.gmra.mxu0 %v5989
        %v6120 = vpop.f32.mrf.mxu0
        %v6121 = vadd.f32 %v5944, %v6120
        %v6122 = vpop.f32.mrf.mxu0
        %v6123 = vpop.f32.mrf.mxu0
        %v6124 = vadd.f32 %v5944, %v6123
        %v6125 = vpop.f32.mrf.mxu0
        %6126 = vmatprep.mubr.bf16.mxu0 0
        %6127 = vmatmul.mubr.bf16.gmra.mxu0 %v5992
        %v6128 = vpop.f32.mrf.mxu0
        %v6129 = vadd.f32 %v5944, %v6128
        %v6130 = vpop.f32.mrf.mxu0
        %v6131 = vpop.f32.mrf.mxu0
        %v6132 = vadd.f32 %v5944, %v6131
        %v6133 = vpop.f32.mrf.mxu0
        %6134 = vmatprep.mubr.bf16.mxu0 0
        %6135 = vmatmul.mubr.bf16.gmra.mxu0 %v5995
        %v6136 = vpop.f32.mrf.mxu0
        %v6137 = vadd.f32 %v5944, %v6136
        %v6138 = vpop.f32.mrf.mxu0
        %v6139 = vpop.f32.mrf.mxu0
        %v6140 = vadd.f32 %v5944, %v6139
        %v6141 = vpop.f32.mrf.mxu0
        %6142 = vmatprep.mubr.bf16.mxu0 0
        %6143 = vmatmul.mubr.bf16.gmra.mxu0 %v5998
        %v6144 = vpop.f32.mrf.mxu0
        %v6145 = vadd.f32 %v5944, %v6144
        %v6146 = vpop.f32.mrf.mxu0
        %v6147 = vpop.f32.mrf.mxu0
        %v6148 = vadd.f32 %v5944, %v6147
        %v6149 = vpop.f32.mrf.mxu0
        %6150 = vmatprep.mubr.bf16.mxu0 0
        %6151 = vmatmul.mubr.bf16.gmra.mxu0 %v6001
        %v6152 = vpop.f32.mrf.mxu0
        %v6153 = vadd.f32 %v5944, %v6152
        %v6154 = vpop.f32.mrf.mxu0
        %v6155 = vpop.f32.mrf.mxu0
        %v6156 = vadd.f32 %v5944, %v6155
        %v6157 = vpop.f32.mrf.mxu0
        %6158 = vmatprep.mubr.bf16.mxu0 0
        %6159 = vmatmul.mubr.bf16.gmra.mxu0 %v6004
        %v6160 = vpop.f32.mrf.mxu0
        %v6161 = vadd.f32 %v5944, %v6160
        %v6162 = vpop.f32.mrf.mxu0
        %v6163 = vpop.f32.mrf.mxu0
        %v6164 = vadd.f32 %v5944, %v6163
        %v6165 = vpop.f32.mrf.mxu0
        %6166 = vdwg.mxu0
        %v6167 = vadd.f32 %v6041, %v278
        %v6168 = vadd.f32 %v6044, %v279
        %v6169 = vadd.f32 %v6049, %v280
        %v6170 = vadd.f32 %v6052, %v281
        %v6171 = vadd.f32 %v6057, %v282
        %v6172 = vadd.f32 %v6060, %v283
        %v6173 = vadd.f32 %v6065, %v284
        %v6174 = vadd.f32 %v6068, %v285
        %v6175 = vadd.f32 %v6073, %v286
        %v6176 = vadd.f32 %v6076, %v287
        %v6177 = vadd.f32 %v6081, %v288
        %v6178 = vadd.f32 %v6084, %v289
        %v6179 = vadd.f32 %v6089, %v290
        %v6180 = vadd.f32 %v6092, %v291
        %v6181 = vadd.f32 %v6097, %v292
        %v6182 = vadd.f32 %v6100, %v293
        %v6183 = vadd.f32 %v6105, %v294
        %v6184 = vadd.f32 %v6108, %v295
        %v6185 = vadd.f32 %v6113, %v296
        %v6186 = vadd.f32 %v6116, %v297
        %v6187 = vadd.f32 %v6121, %v298
        %v6188 = vadd.f32 %v6124, %v299
        %v6189 = vadd.f32 %v6129, %v300
        %v6190 = vadd.f32 %v6132, %v301
        %v6191 = vadd.f32 %v6137, %v302
        %v6192 = vadd.f32 %v6140, %v303
        %v6193 = vadd.f32 %v6145, %v304
        %v6194 = vadd.f32 %v6148, %v305
        %v6195 = vadd.f32 %v6153, %v306
        %v6196 = vadd.f32 %v6156, %v307
        %v6197 = vadd.f32 %v6161, %v308
        %v6198 = vadd.f32 %v6164, %v309
        %v6199 = vmax.f32 %v6167, 0.0
        %v6200 = vmax.f32 %v6168, 0.0
        %v6201 = vmax.f32 %v6169, 0.0
        %v6202 = vmax.f32 %v6170, 0.0
        %v6203 = vmax.f32 %v6171, 0.0
        %v6204 = vmax.f32 %v6172, 0.0
        %v6205 = vmax.f32 %v6173, 0.0
        %v6206 = vmax.f32 %v6174, 0.0
        %v6207 = vmax.f32 %v6175, 0.0
        %v6208 = vmax.f32 %v6176, 0.0
        %v6209 = vmax.f32 %v6177, 0.0
        %v6210 = vmax.f32 %v6178, 0.0
        %v6211 = vmax.f32 %v6179, 0.0
        %v6212 = vmax.f32 %v6180, 0.0
        %v6213 = vmax.f32 %v6181, 0.0
        %v6214 = vmax.f32 %v6182, 0.0
        %v6215 = vmax.f32 %v6183, 0.0
        %v6216 = vmax.f32 %v6184, 0.0
        %v6217 = vmax.f32 %v6185, 0.0
        %v6218 = vmax.f32 %v6186, 0.0
        %v6219 = vmax.f32 %v6187, 0.0
        %v6220 = vmax.f32 %v6188, 0.0
        %v6221 = vmax.f32 %v6189, 0.0
        %v6222 = vmax.f32 %v6190, 0.0
        %v6223 = vmax.f32 %v6191, 0.0
        %v6224 = vmax.f32 %v6192, 0.0
        %v6225 = vmax.f32 %v6193, 0.0
        %v6226 = vmax.f32 %v6194, 0.0
        %v6227 = vmax.f32 %v6195, 0.0
        %v6228 = vmax.f32 %v6196, 0.0
        %v6229 = vmax.f32 %v6197, 0.0
        %v6230 = vmax.f32 %v6198, 0.0
        %6231 = vst [vmem:[%s271] sm:$0xff] %v6199
        %6232 = vst [vmem:[%s271 + $0x8] sm:$0xff] %v6200
        %6233 = vst [vmem:[%s271 + $0x10] sm:$0xff] %v6201
        %6234 = vst [vmem:[%s271 + $0x18] sm:$0xff] %v6202
        %6235 = vst [vmem:[%s271 + $0x20] sm:$0xff] %v6203
        %6236 = vst [vmem:[%s271 + $0x28] sm:$0xff] %v6204
        %6237 = vst [vmem:[%s271 + $0x30] sm:$0xff] %v6205
        %6238 = vst [vmem:[%s271 + $0x38] sm:$0xff] %v6206
        %6239 = vst [vmem:[%s271 + $0x40] sm:$0xff] %v6207
        %6240 = vst [vmem:[%s271 + $0x48] sm:$0xff] %v6208
        %6241 = vst [vmem:[%s271 + $0x50] sm:$0xff] %v6209
        %6242 = vst [vmem:[%s271 + $0x58] sm:$0xff] %v6210
        %6243 = vst [vmem:[%s271 + $0x60] sm:$0xff] %v6211
        %6244 = vst [vmem:[%s271 + $0x68] sm:$0xff] %v6212
        %6245 = vst [vmem:[%s271 + $0x70] sm:$0xff] %v6213
        %6246 = vst [vmem:[%s271 + $0x78] sm:$0xff] %v6214
        %6247 = vst [vmem:[%s271 + $0x80] sm:$0xff] %v6215
        %6248 = vst [vmem:[%s271 + $0x88] sm:$0xff] %v6216
        %6249 = vst [vmem:[%s271 + $0x90] sm:$0xff] %v6217
        %6250 = vst [vmem:[%s271 + $0x98] sm:$0xff] %v6218
        %6251 = vst [vmem:[%s271 + $0xa0] sm:$0xff] %v6219
        %6252 = vst [vmem:[%s271 + $0xa8] sm:$0xff] %v6220
        %6253 = vst [vmem:[%s271 + $0xb0] sm:$0xff] %v6221
        %6254 = vst [vmem:[%s271 + $0xb8] sm:$0xff] %v6222
        %6255 = vst [vmem:[%s271 + $0xc0] sm:$0xff] %v6223
        %6256 = vst [vmem:[%s271 + $0xc8] sm:$0xff] %v6224
        %6257 = vst [vmem:[%s271 + $0xd0] sm:$0xff] %v6225
        %6258 = vst [vmem:[%s271 + $0xd8] sm:$0xff] %v6226
        %6259 = vst [vmem:[%s271 + $0xe0] sm:$0xff] %v6227
        %6260 = vst [vmem:[%s271 + $0xe8] sm:$0xff] %v6228
        %6261 = vst [vmem:[%s271 + $0xf0] sm:$0xff] %v6229
        %6262 = vst [vmem:[%s271 + $0xf8] sm:$0xff] %v6230
        %s6263 = sand.u32 %s181, 1
        %s6264 = scalar_lea.sflag [#allocation4], %s6263
        %s6265 = sand.u32 %s181, 1
        %s6266 = smul.addr %s6265, 256
        %s6267 = scalar_lea.vmem [#allocation3], %s6266
        // Predicated region
        $region49: #{bottleneck_forward.1} parent=47 // pred_check
          %p6268 = pneg %p191
        $region50: #{bottleneck_forward.1} parent=47 // pred_check_branch
          %6270 = sbr.rel (%p6268) target = $region52
        $region51: #{bottleneck_forward.1} parent=47 // pred_region
          %s6272 = ssub.s32 4096, 4096
          %6273 = vsyncadd %s6264, %s6272
          %s6274 = smul.addr %s21, 32
          %s6275 = smul.addr %s6274, 128
          %s6276 = scalar_lea.hbm %s7, %s6275
          %s6277 = sshll.u32 %s6267, 4
          %s6278 = int_to_ptr.vmem [resolvable:$true] %s6277
          %6283 = dma.vmem_to_hbm [thread:$0]  %s6278, 4096, %s6276, %s6264, 128, 128, 8
        $region52: #{bottleneck_forward.1} parent=47 // pred_fallthru
          _
      $region48: #{bottleneck_forward.1} parent=5 // pred_fallthru
        _
      %p6284 = scmp.le.s32.totalorder 2, %s16
      // Predicated region
      $region53: #{bottleneck_forward.1} parent=5 // pred_check
        %p6285 = pneg %p6284
      $region54: #{bottleneck_forward.1} parent=5 // pred_check_branch
        %6287 = sbr.rel (%p6285) target = $region56
      $region55: #{bottleneck_forward.1} parent=5 // pred_region
        %s6288 = ssub.s32 %s16, 2
        // Predicated region
        $region57: #{bottleneck_forward.1} parent=55 // pred_check
          %p6289 = pneg %p197
        $region58: #{bottleneck_forward.1} parent=55 // pred_check_branch
          %6291 = sbr.rel (%p6289) target = $region60
        $region59: #{bottleneck_forward.1} parent=55 // pred_region
          %s6292 = sand.u32 %s182, 1
          %s6293 = scalar_lea.sflag [#allocation4], %s6292
          %s6294 = sand.u32 %s182, 1
          %s6295 = smul.addr %s6294, 256
          %s6296 = scalar_lea.vmem [#allocation3], %s6295
          %6297 = dma.done %s6293, 4096
        $region60: #{bottleneck_forward.1} parent=55 // pred_fallthru
          _
      $region56: #{bottleneck_forward.1} parent=5 // pred_fallthru
        _
    $region6: #{bottleneck_forward.1} parent=1 // loop_footer
      %s20 = sadd.s32 1, %s16
    $region7: #{bottleneck_forward.1} parent=1 // loop_footer_branch
      %15 = sbr.rel target = $region3
    $region8: #{bottleneck_forward.1} parent=1 // loop_exit
      _
    %6298 = vsyncpa [#allocation4], 1
    %s6299 = scalar_lea.sflag [#allocation4], 1
    %6300 = vsyncpa %s6299, 1

</llo_original>
